<compile_context>
chip_gen: v5e
topology: v5e:2x2
jax: 0.10.0
libtpu: 0.0.40
codegen_flags: <defaults>
</compile_context>

<pallas_src>
import functools

import numpy as np
import jax
import jax.numpy as jnp
from jax import lax
from jax.experimental import pallas as pl
from jax.experimental.pallas import tpu as pltpu


def _round_up(x, m):
    return ((x + m - 1) // m) * m


# ----------------------------------------------------------------------------
# Pallas kernel: Tt masked-GRU timesteps per grid point.
# ----------------------------------------------------------------------------
def gru_block_kernel(hard_lens, Tt, m_ref, gxr_ref, gxz_ref, gxn_ref,
                     whr_ref, whz_ref, whn_ref, bhn_ref,
                     out_ref, last_ref, h_ref):
    # m_ref:   hard_lens -> [Bb, 1] int32 (resident lens); else [Bb, Tt] f32 mask
    # gx*_ref: [Bb, Tt, H]  per-gate input projections (biases folded, bf16/f32)
    # wh*_ref: [H, H]       per-gate recurrent weights  (VMEM-resident)
    # bhn_ref: [1, H]       n-gate recurrent bias (must stay inside r*(.))
    # out_ref: [Bb, Tt, H]  last_ref: [Bb, H]  h_ref: [Bb, H] f32 scratch carry
    tb = pl.program_id(1)

    @pl.when(tb == 0)
    def _():
        h_ref[...] = jnp.zeros_like(h_ref)

    w_r = whr_ref[...]
    w_z = whz_ref[...]
    w_n = whn_ref[...]
    b_n = bhn_ref[...].astype(jnp.float32)            # [1, H] (hoisted)
    if hard_lens:
        lens = m_ref[...]                              # [Bb, 1] int32 (hoisted)

    h = h_ref[...]                                     # [Bb, H] f32 carry

    # Statically unrolled time loop (Tt is small; full unroll gives the LLO
    # scheduler visibility and static sub-block indices).
    # TODO(synk): for very large Tt, switch to lax.fori_loop(unroll=k).
    for tt in range(Tt):
        if hard_lens:
            t_glob = tb * Tt + tt
            m = (t_glob < lens).astype(jnp.float32)    # [Bb, 1]
        else:
            m = m_ref[:, tt:tt + 1].astype(jnp.float32)

        hc = h.astype(w_r.dtype)                       # bf16 cast for the MXU
        gh_r = jnp.dot(hc, w_r, preferred_element_type=jnp.float32)
        gh_z = jnp.dot(hc, w_z, preferred_element_type=jnp.float32)
        gh_n = jnp.dot(hc, w_n, preferred_element_type=jnp.float32)

        # PyTorch GRU gate ordering r, z, n; b_ih and b_hh_{r,z} already in gx.
        r = jax.nn.sigmoid(gxr_ref[:, tt, :].astype(jnp.float32) + gh_r)
        z = jax.nn.sigmoid(gxz_ref[:, tt, :].astype(jnp.float32) + gh_z)
        n = jnp.tanh(gxn_ref[:, tt, :].astype(jnp.float32) + r * (gh_n + b_n))

        # new_h = (1-z)*n + z*h == n + z*(h - n) ; h_next = h + m*(new_h - h)
        new_h = n + z * (h - n)
        h = h + m * (new_h - h)

        if hard_lens:
            # pad_packed_sequence semantics: padded positions of `out` are zero.
            out_ref[:, tt, :] = (m * h).astype(out_ref.dtype)
        else:
            out_ref[:, tt, :] = h.astype(out_ref.dtype)

    h_ref[...] = h
    # Write every time block (last writeback wins) -> final carried hidden.
    last_ref[...] = h.astype(last_ref.dtype)


# ----------------------------------------------------------------------------
# Wrapper: hoisted per-gate input projection + pallas_call plumbing.
# ----------------------------------------------------------------------------
def gru_encoder_forward(x, lens_or_mask, params, *, block_b=None, time_block=16,
                        compute_dtype=jnp.bfloat16, out_dtype=jnp.float32):
    """x: [B, T, D]; lens_or_mask: [B] int or [B, T] float.
    Returns (last_hidden [B, H] f32, out [B, T, H] out_dtype)."""
    B, T, D = x.shape
    H = params["w_hh"].shape[1]
    hard_lens = (lens_or_mask.ndim == 1)

    # ---- tile selection -----------------------------------------------------
    Bp = _round_up(B, 8)
    if block_b is None:
        # 256 fills the 256-wide MXU on v6e/v7x; small batches stay one block.
        # TODO(synk): on v7x prefer >=2 batch blocks so the "parallel" axis can
        # actually shard across the two TensorCores.
        block_b = Bp if Bp <= 256 else 256
    block_b = _round_up(block_b, 8)
    Bp = _round_up(Bp, block_b)

    Tt = max(8, _round_up(min(time_block, T), 8))      # sublane-aligned time tile
    Tp = _round_up(T, Tt)

    # ---- pad inputs (padded rows/steps have mask/lens == 0 -> h unchanged) --
    if Bp != B or Tp != T:
        x = jnp.pad(x, ((0, Bp - B), (0, Tp - T), (0, 0)))
    if hard_lens:
        lens = lens_or_mask.astype(jnp.int32)
        if Bp != B:
            lens = jnp.pad(lens, (0, Bp - B))
        m_arg = lens[:, None]                                        # [Bp, 1]
        m_spec = pl.BlockSpec((block_b, 1), lambda b, t: (b, 0))     # resident
    else:
        mask = lens_or_mask.astype(jnp.float32)
        if Bp != B or Tp != T:
            mask = jnp.pad(mask, ((0, Bp - B), (0, Tp - T)))
        m_arg = mask                                                 # [Bp, Tp]
        m_spec = pl.BlockSpec((block_b, Tt), lambda b, t: (b, t))

    # ---- hoisted per-gate input projection (one bf16 MXU matmul per gate) ---
    w_ih, b_ih, b_hh = params["w_ih"], params["b_ih"], params["b_hh"]
    xc = x.astype(compute_dtype)

    def proj(lo, hi, extra_bias_f32):
        g = jnp.einsum("btd,hd->bth", xc, w_ih[lo:hi].astype(compute_dtype),
                       preferred_element_type=jnp.float32)
        g = g + (b_ih[lo:hi].astype(jnp.float32) + extra_bias_f32)[None, None, :]
        return g.astype(compute_dtype)                 # [Bp, Tp, H], batch-major

    # Fold b_hh_r / b_hh_z into gx; only b_hh_n must stay inside r*(.).
    gx_r = proj(0, H, b_hh[:H].astype(jnp.float32))
    gx_z = proj(H, 2 * H, b_hh[H:2 * H].astype(jnp.float32))
    gx_n = proj(2 * H, 3 * H, jnp.zeros((H,), jnp.float32))

    whh = params["w_hh"]                               # [3H, H]
    wh_r = whh[:H].T.astype(compute_dtype)             # [H, H] per-gate, lane-dense
    wh_z = whh[H:2 * H].T.astype(compute_dtype)
    wh_n = whh[2 * H:].T.astype(compute_dtype)
    bh_n = b_hh[2 * H:].astype(jnp.float32)[None, :]   # [1, H]

    grid = (Bp // block_b, Tp // Tt)

    # ---- VMEM budget: double-buffered gx (x3) + out + mask, resident weights.
    cbytes = np.dtype(compute_dtype).itemsize
    obytes = np.dtype(out_dtype).itemsize
    est = (2 * block_b * Tt * H * (3 * cbytes + obytes)   # gx x3 + out, 2-buffered
           + 2 * block_b * Tt * 4                         # mask
           + 2 * 3 * H * H * cbytes + 2 * H * 4           # weights + bias
           + 4 * block_b * H * 4)                         # scratch + slack
    vmem_limit = int(min(100 * 2**20, max(32 * 2**20, 2 * est)))

    out, last_h = pl.pallas_call(
        functools.partial(gru_block_kernel, hard_lens, Tt),
        grid=grid,
        in_specs=[
            m_spec,
            pl.BlockSpec((block_b, Tt, H), lambda b, t: (b, t, 0)),   # gx_r
            pl.BlockSpec((block_b, Tt, H), lambda b, t: (b, t, 0)),   # gx_z
            pl.BlockSpec((block_b, Tt, H), lambda b, t: (b, t, 0)),   # gx_n
            # TODO(synk): single-buffer the resident weights
            # (pipeline_mode=pl.Buffered(1)) to free VMEM for larger tiles.
            pl.BlockSpec((H, H), lambda b, t: (0, 0)),                # W_hh_r
            pl.BlockSpec((H, H), lambda b, t: (0, 0)),                # W_hh_z
            pl.BlockSpec((H, H), lambda b, t: (0, 0)),                # W_hh_n
            pl.BlockSpec((1, H), lambda b, t: (0, 0)),                # b_hh_n
        ],
        out_specs=(
            pl.BlockSpec((block_b, Tt, H), lambda b, t: (b, t, 0)),   # out [B,T,H]
            pl.BlockSpec((block_b, H), lambda b, t: (b, 0)),          # last hidden
        ),
        out_shape=(jax.ShapeDtypeStruct((Bp, Tp, H), out_dtype),
                   jax.ShapeDtypeStruct((Bp, H), jnp.float32)),
        scratch_shapes=[pltpu.VMEM((block_b, H), jnp.float32)],
        compiler_params=pltpu.CompilerParams(
            dimension_semantics=("parallel", "arbitrary"),
            vmem_limit_bytes=vmem_limit),
    )(m_arg, gx_r, gx_z, gx_n, wh_r, wh_z, wh_n, bh_n)

    # TODO(synk): pad_packed_sequence also trims `out` to max(lens); we keep T
    # (padded positions are zeroed in-kernel for the hard-lens branch).
    return last_h[:B], out[:B, :T]


# ----------------------------------------------------------------------------
# Deterministic parameter init (same shapes/init range as torch.nn.GRU)
# ----------------------------------------------------------------------------
def init_gru_params(key, input_dim, hidden_dim, dtype=jnp.float32):
    k = 1.0 / jnp.sqrt(hidden_dim)
    k1, k2, k3, k4 = jax.random.split(key, 4)
    return {
        "w_ih": jax.random.uniform(k1, (3 * hidden_dim, input_dim), dtype, -k, k),
        "w_hh": jax.random.uniform(k2, (3 * hidden_dim, hidden_dim), dtype, -k, k),
        "b_ih": jax.random.uniform(k3, (3 * hidden_dim,), dtype, -k, k),
        "b_hh": jax.random.uniform(k4, (3 * hidden_dim,), dtype, -k, k),
    }


# ----------------------------------------------------------------------------
# Pure-JAX reference (correctness check)
# ----------------------------------------------------------------------------
def gru_encoder_ref(x, mask, params):
    wih, whh, bih, bhh = params["w_ih"], params["w_hh"], params["b_ih"], params["b_hh"]
    H = whh.shape[1]

    def cell(h, inputs):
        x_t, m_t = inputs
        gx = x_t @ wih.T + bih
        gh = h @ whh.T + bhh
        r = jax.nn.sigmoid(gx[:, :H] + gh[:, :H])
        z = jax.nn.sigmoid(gx[:, H:2 * H] + gh[:, H:2 * H])
        n = jnp.tanh(gx[:, 2 * H:] + r * gh[:, 2 * H:])
        new_h = (1.0 - z) * n + z * h
        h_next = m_t[:, None] * new_h + (1.0 - m_t[:, None]) * h
        return h_next, h_next

    h0 = jnp.zeros((x.shape[0], H), x.dtype)
    xs = (jnp.transpose(x, (1, 0, 2)), jnp.transpose(mask, (1, 0)))
    last, outs = lax.scan(cell, h0, xs)
    return last, jnp.transpose(outs, (1, 0, 2))


if __name__ == "__main__":
    key = jax.random.PRNGKey(0)
    kx, km, kp, kx2, km2, kl2 = jax.random.split(key, 6)

    # ---- Case A: small shapes, default bf16 compute --------------------------
    B, T, D, H = 2, 8, 16, 32
    x = jax.random.normal(kx, (B, T, D), dtype=jnp.float32)
    soft_mask = jax.random.uniform(km, (B, T), dtype=jnp.float32)
    params = init_gru_params(kp, D, H)

    last_h, out = gru_encoder_forward(x, soft_mask, params)           # bf16 path
    jax.block_until_ready((last_h, out))
    ref_last, ref_out = gru_encoder_ref(x, soft_mask, params)
    assert last_h.shape == (B, H) and out.shape == (B, T, H)
    assert jnp.allclose(last_h, ref_last, atol=5e-2, rtol=5e-2)
    assert jnp.allclose(out, ref_out, atol=5e-2, rtol=5e-2)

    lens = jnp.array([8, 5], dtype=jnp.int32)
    last_h2, out2 = gru_encoder_forward(x, lens, params)               # bf16 path
    jax.block_until_ready((last_h2, out2))
    hard_mask = (jnp.arange(T)[None, :] < lens[:, None]).astype(jnp.float32)
    ref_last2, ref_out2 = gru_encoder_ref(x, hard_mask, params)
    assert jnp.allclose(last_h2, ref_last2, atol=5e-2, rtol=5e-2)
    assert jnp.allclose(out2, ref_out2 * hard_mask[..., None], atol=5e-2, rtol=5e-2)

    # ---- Case B: multi-block grid (2 batch blocks x 3 time blocks), f32 ------
    B2, T2 = 10, 20
    x2 = jax.random.normal(kx2, (B2, T2, D), dtype=jnp.float32)
    soft_mask2 = jax.random.uniform(km2, (B2, T2), dtype=jnp.float32)
    lens2 = jax.random.randint(kl2, (B2,), 1, T2 + 1).astype(jnp.int32)

    last_h3, out3 = gru_encoder_forward(x2, soft_mask2, params, block_b=8,
                                        time_block=8, compute_dtype=jnp.float32)
    jax.block_until_ready((last_h3, out3))
    ref_last3, ref_out3 = gru_encoder_ref(x2, soft_mask2, params)
    assert jnp.allclose(last_h3, ref_last3, atol=1e-4, rtol=1e-4)
    assert jnp.allclose(out3, ref_out3, atol=1e-4, rtol=1e-4)

    last_h4, out4 = gru_encoder_forward(x2, lens2, params, block_b=8,
                                        time_block=8, compute_dtype=jnp.float32)
    jax.block_until_ready((last_h4, out4))
    hard_mask2 = (jnp.arange(T2)[None, :] < lens2[:, None]).astype(jnp.float32)
    ref_last4, ref_out4 = gru_encoder_ref(x2, hard_mask2, params)
    assert jnp.allclose(last_h4, ref_last4, atol=1e-4, rtol=1e-4)
    assert jnp.allclose(out4, ref_out4 * hard_mask2[..., None], atol=1e-4, rtol=1e-4)

    print("KERNEL_OK")
</pallas_src>

<mosaic_0001>
module attributes {stable_mosaic.version = 11 : i64} {
  func.func @gru_block_kernel(%arg0: i32, %arg1: i32, %arg2: memref<8x8xf32, #tpu.memory_space<vmem>>, %arg3: memref<8x8x32xbf16, #tpu.memory_space<vmem>>, %arg4: memref<8x8x32xbf16, #tpu.memory_space<vmem>>, %arg5: memref<8x8x32xbf16, #tpu.memory_space<vmem>>, %arg6: memref<32x32xbf16, #tpu.memory_space<vmem>>, %arg7: memref<32x32xbf16, #tpu.memory_space<vmem>>, %arg8: memref<32x32xbf16, #tpu.memory_space<vmem>>, %arg9: memref<1x32xf32, #tpu.memory_space<vmem>>, %arg10: memref<8x8x32xf32, #tpu.memory_space<vmem>>, %arg11: memref<8x32xf32, #tpu.memory_space<vmem>>, %arg12: memref<8x32xf32, #tpu.memory_space<vmem>>) attributes {dimension_semantics = [#tpu.dimension_semantics<parallel>, #tpu.dimension_semantics<arbitrary>], iteration_bounds = array<i64: 1, 1>, scalar_prefetch = 0 : i64, scratch_operands = 1 : i64, tpu.core_type = #tpu.core_type<tc>, window_params = [{transform_indices = @transform_0, window_bounds = array<i64: 8, 8>}, {transform_indices = @transform_1, window_bounds = array<i64: 8, 8, 32>}, {transform_indices = @transform_2, window_bounds = array<i64: 8, 8, 32>}, {transform_indices = @transform_3, window_bounds = array<i64: 8, 8, 32>}, {pipeline_mode = #tpu.pipeline_mode<synchronous>, transform_indices = @transform_4, window_bounds = array<i64: 32, 32>}, {pipeline_mode = #tpu.pipeline_mode<synchronous>, transform_indices = @transform_5, window_bounds = array<i64: 32, 32>}, {pipeline_mode = #tpu.pipeline_mode<synchronous>, transform_indices = @transform_6, window_bounds = array<i64: 32, 32>}, {pipeline_mode = #tpu.pipeline_mode<synchronous>, transform_indices = @transform_7, window_bounds = array<i64: 1, 32>}, {transform_indices = @transform_8, window_bounds = array<i64: 8, 8, 32>}, {transform_indices = @transform_9, window_bounds = array<i64: 8, 32>}]} {
    %c0_i32 = arith.constant 0 : i32
    %0 = arith.cmpi eq, %arg1, %c0_i32 : i32
    %1 = arith.extui %0 : i1 to i32
    %c0_i32_0 = arith.constant 0 : i32
    %2 = arith.cmpi ne, %1, %c0_i32_0 : i32
    scf.if %2 {
      %cst_158 = arith.constant 0.000000e+00 : f32
      %338 = vector.broadcast %cst_158 : f32 to vector<8x32xf32>
      %c0_159 = arith.constant 0 : index
      %c0_160 = arith.constant 0 : index
      %339 = vector.load %arg12[%c0_159, %c0_160] : memref<8x32xf32, #tpu.memory_space<vmem>>, vector<8x32xf32>
      tpu.vector_store %arg12[%c0_159, %c0_160], %338 {strides = array<i32>} : memref<8x32xf32, #tpu.memory_space<vmem>>, vector<8x32xf32>,
    } else {
    }
    %c0 = arith.constant 0 : index
    %c0_1 = arith.constant 0 : index
    %3 = vector.load %arg6[%c0, %c0_1] : memref<32x32xbf16, #tpu.memory_space<vmem>>, vector<32x32xbf16>
    %c0_2 = arith.constant 0 : index
    %c0_3 = arith.constant 0 : index
    %4 = vector.load %arg7[%c0_2, %c0_3] : memref<32x32xbf16, #tpu.memory_space<vmem>>, vector<32x32xbf16>
    %c0_4 = arith.constant 0 : index
    %c0_5 = arith.constant 0 : index
    %5 = vector.load %arg8[%c0_4, %c0_5] : memref<32x32xbf16, #tpu.memory_space<vmem>>, vector<32x32xbf16>
    %c0_6 = arith.constant 0 : index
    %c0_7 = arith.constant 0 : index
    %6 = vector.load %arg9[%c0_6, %c0_7] : memref<1x32xf32, #tpu.memory_space<vmem>>, vector<1x32xf32>
    %c0_8 = arith.constant 0 : index
    %c0_9 = arith.constant 0 : index
    %7 = vector.load %arg12[%c0_8, %c0_9] : memref<8x32xf32, #tpu.memory_space<vmem>>, vector<8x32xf32>
    %c0_10 = arith.constant 0 : index
    %c0_11 = arith.constant 0 : index
    %8 = vector.load %arg2[%c0_10, %c0_11] : memref<8x8xf32, #tpu.memory_space<vmem>>, vector<8x1xf32>
    %9 = arith.truncf %7 : vector<8x32xf32> to vector<8x32xbf16>
    %cst = arith.constant dense<0.000000e+00> : vector<8x32xf32>
    %10 = tpu.matmul %9, %3, %cst {dimension_numbers = #tpu.dot_dimension_numbers<[1], [0], [0], [1], [0, 0, 1, 1], [], []>} : vector<8x32xbf16>, vector<32x32xbf16>, vector<8x32xf32> -> vector<8x32xf32>
    %cst_12 = arith.constant dense<0.000000e+00> : vector<8x32xf32>
    %11 = tpu.matmul %9, %4, %cst_12 {dimension_numbers = #tpu.dot_dimension_numbers<[1], [0], [0], [1], [0, 0, 1, 1], [], []>} : vector<8x32xbf16>, vector<32x32xbf16>, vector<8x32xf32> -> vector<8x32xf32>
    %cst_13 = arith.constant dense<0.000000e+00> : vector<8x32xf32>
    %12 = tpu.matmul %9, %5, %cst_13 {dimension_numbers = #tpu.dot_dimension_numbers<[1], [0], [0], [1], [0, 0, 1, 1], [], []>} : vector<8x32xbf16>, vector<32x32xbf16>, vector<8x32xf32> -> vector<8x32xf32>
    %c0_14 = arith.constant 0 : index
    %c0_15 = arith.constant 0 : index
    %c0_16 = arith.constant 0 : index
    %13 = vector.load %arg3[%c0_14, %c0_15, %c0_16] : memref<8x8x32xbf16, #tpu.memory_space<vmem>>, vector<8x1x32xbf16>
    %14 = vector.shape_cast %13 : vector<8x1x32xbf16> to vector<8x32xbf16>
    %15 = arith.extf %14 : vector<8x32xbf16> to vector<8x32xf32>
    %16 = arith.addf %15, %10 : vector<8x32xf32>
    %17 = arith.negf %16 : vector<8x32xf32>
    %18 = math.exp %17 : vector<8x32xf32>
    %cst_17 = arith.constant 1.000000e+00 : f32
    %19 = vector.broadcast %cst_17 : f32 to vector<8x32xf32>
    %20 = arith.addf %19, %18 : vector<8x32xf32>
    %21 = arith.divf %19, %20 : vector<8x32xf32>
    %c0_18 = arith.constant 0 : index
    %c0_19 = arith.constant 0 : index
    %c0_20 = arith.constant 0 : index
    %22 = vector.load %arg4[%c0_18, %c0_19, %c0_20] : memref<8x8x32xbf16, #tpu.memory_space<vmem>>, vector<8x1x32xbf16>
    %23 = vector.shape_cast %22 : vector<8x1x32xbf16> to vector<8x32xbf16>
    %24 = arith.extf %23 : vector<8x32xbf16> to vector<8x32xf32>
    %25 = arith.addf %24, %11 : vector<8x32xf32>
    %26 = arith.negf %25 : vector<8x32xf32>
    %27 = math.exp %26 : vector<8x32xf32>
    %cst_21 = arith.constant 1.000000e+00 : f32
    %28 = vector.broadcast %cst_21 : f32 to vector<8x32xf32>
    %29 = arith.addf %28, %27 : vector<8x32xf32>
    %30 = arith.divf %28, %29 : vector<8x32xf32>
    %c0_22 = arith.constant 0 : index
    %c0_23 = arith.constant 0 : index
    %c0_24 = arith.constant 0 : index
    %31 = vector.load %arg5[%c0_22, %c0_23, %c0_24] : memref<8x8x32xbf16, #tpu.memory_space<vmem>>, vector<8x1x32xbf16>
    %32 = vector.shape_cast %31 : vector<8x1x32xbf16> to vector<8x32xbf16>
    %33 = arith.extf %32 : vector<8x32xbf16> to vector<8x32xf32>
    %34 = vector.broadcast %6 : vector<1x32xf32> to vector<8x32xf32>
    %35 = arith.addf %12, %34 : vector<8x32xf32>
    %36 = arith.mulf %21, %35 : vector<8x32xf32>
    %37 = arith.addf %33, %36 : vector<8x32xf32>
    %38 = math.tanh %37 : vector<8x32xf32>
    %39 = arith.subf %7, %38 : vector<8x32xf32>
    %40 = arith.mulf %30, %39 : vector<8x32xf32>
    %41 = arith.addf %38, %40 : vector<8x32xf32>
    %42 = arith.subf %41, %7 : vector<8x32xf32>
    %43 = vector.broadcast %8 : vector<8x1xf32> to vector<8x32xf32>
    %44 = arith.mulf %43, %42 : vector<8x32xf32>
    %45 = arith.addf %7, %44 : vector<8x32xf32>
    %c0_25 = arith.constant 0 : index
    %c0_26 = arith.constant 0 : index
    %c0_27 = arith.constant 0 : index
    %46 = vector.load %arg10[%c0_25, %c0_26, %c0_27] : memref<8x8x32xf32, #tpu.memory_space<vmem>>, vector<8x1x32xf32>
    %47 = vector.shape_cast %46 : vector<8x1x32xf32> to vector<8x32xf32>
    %48 = vector.shape_cast %45 : vector<8x32xf32> to vector<8x1x32xf32>
    tpu.vector_store %arg10[%c0_25, %c0_26, %c0_27], %48 {strides = array<i32>} : memref<8x8x32xf32, #tpu.memory_space<vmem>>, vector<8x1x32xf32>,
    %c0_28 = arith.constant 0 : index
    %c1 = arith.constant 1 : index
    %49 = vector.load %arg2[%c0_28, %c1] : memref<8x8xf32, #tpu.memory_space<vmem>>, vector<8x1xf32>
    %50 = arith.truncf %45 : vector<8x32xf32> to vector<8x32xbf16>
    %cst_29 = arith.constant dense<0.000000e+00> : vector<8x32xf32>
    %51 = tpu.matmul %50, %3, %cst_29 {dimension_numbers = #tpu.dot_dimension_numbers<[1], [0], [0], [1], [0, 0, 1, 1], [], []>} : vector<8x32xbf16>, vector<32x32xbf16>, vector<8x32xf32> -> vector<8x32xf32>
    %cst_30 = arith.constant dense<0.000000e+00> : vector<8x32xf32>
    %52 = tpu.matmul %50, %4, %cst_30 {dimension_numbers = #tpu.dot_dimension_numbers<[1], [0], [0], [1], [0, 0, 1, 1], [], []>} : vector<8x32xbf16>, vector<32x32xbf16>, vector<8x32xf32> -> vector<8x32xf32>
    %cst_31 = arith.constant dense<0.000000e+00> : vector<8x32xf32>
    %53 = tpu.matmul %50, %5, %cst_31 {dimension_numbers = #tpu.dot_dimension_numbers<[1], [0], [0], [1], [0, 0, 1, 1], [], []>} : vector<8x32xbf16>, vector<32x32xbf16>, vector<8x32xf32> -> vector<8x32xf32>
    %c0_32 = arith.constant 0 : index
    %c1_33 = arith.constant 1 : index
    %c0_34 = arith.constant 0 : index
    %54 = vector.load %arg3[%c0_32, %c1_33, %c0_34] : memref<8x8x32xbf16, #tpu.memory_space<vmem>>, vector<8x1x32xbf16>
    %55 = vector.shape_cast %54 : vector<8x1x32xbf16> to vector<8x32xbf16>
    %56 = arith.extf %55 : vector<8x32xbf16> to vector<8x32xf32>
    %57 = arith.addf %56, %51 : vector<8x32xf32>
    %58 = arith.negf %57 : vector<8x32xf32>
    %59 = math.exp %58 : vector<8x32xf32>
    %cst_35 = arith.constant 1.000000e+00 : f32
    %60 = vector.broadcast %cst_35 : f32 to vector<8x32xf32>
    %61 = arith.addf %60, %59 : vector<8x32xf32>
    %62 = arith.divf %60, %61 : vector<8x32xf32>
    %c0_36 = arith.constant 0 : index
    %c1_37 = arith.constant 1 : index
    %c0_38 = arith.constant 0 : index
    %63 = vector.load %arg4[%c0_36, %c1_37, %c0_38] : memref<8x8x32xbf16, #tpu.memory_space<vmem>>, vector<8x1x32xbf16>
    %64 = vector.shape_cast %63 : vector<8x1x32xbf16> to vector<8x32xbf16>
    %65 = arith.extf %64 : vector<8x32xbf16> to vector<8x32xf32>
    %66 = arith.addf %65, %52 : vector<8x32xf32>
    %67 = arith.negf %66 : vector<8x32xf32>
    %68 = math.exp %67 : vector<8x32xf32>
    %cst_39 = arith.constant 1.000000e+00 : f32
    %69 = vector.broadcast %cst_39 : f32 to vector<8x32xf32>
    %70 = arith.addf %69, %68 : vector<8x32xf32>
    %71 = arith.divf %69, %70 : vector<8x32xf32>
    %c0_40 = arith.constant 0 : index
    %c1_41 = arith.constant 1 : index
    %c0_42 = arith.constant 0 : index
    %72 = vector.load %arg5[%c0_40, %c1_41, %c0_42] : memref<8x8x32xbf16, #tpu.memory_space<vmem>>, vector<8x1x32xbf16>
    %73 = vector.shape_cast %72 : vector<8x1x32xbf16> to vector<8x32xbf16>
    %74 = arith.extf %73 : vector<8x32xbf16> to vector<8x32xf32>
    %75 = vector.broadcast %6 : vector<1x32xf32> to vector<8x32xf32>
    %76 = arith.addf %53, %75 : vector<8x32xf32>
    %77 = arith.mulf %62, %76 : vector<8x32xf32>
    %78 = arith.addf %74, %77 : vector<8x32xf32>
    %79 = math.tanh %78 : vector<8x32xf32>
    %80 = arith.subf %45, %79 : vector<8x32xf32>
    %81 = arith.mulf %71, %80 : vector<8x32xf32>
    %82 = arith.addf %79, %81 : vector<8x32xf32>
    %83 = arith.subf %82, %45 : vector<8x32xf32>
    %84 = vector.broadcast %49 : vector<8x1xf32> to vector<8x32xf32>
    %85 = arith.mulf %84, %83 : vector<8x32xf32>
    %86 = arith.addf %45, %85 : vector<8x32xf32>
    %c0_43 = arith.constant 0 : index
    %c1_44 = arith.constant 1 : index
    %c0_45 = arith.constant 0 : index
    %87 = vector.load %arg10[%c0_43, %c1_44, %c0_45] : memref<8x8x32xf32, #tpu.memory_space<vmem>>, vector<8x1x32xf32>
    %88 = vector.shape_cast %87 : vector<8x1x32xf32> to vector<8x32xf32>
    %89 = vector.shape_cast %86 : vector<8x32xf32> to vector<8x1x32xf32>
    tpu.vector_store %arg10[%c0_43, %c1_44, %c0_45], %89 {strides = array<i32>} : memref<8x8x32xf32, #tpu.memory_space<vmem>>, vector<8x1x32xf32>,
    %c0_46 = arith.constant 0 : index
    %c2 = arith.constant 2 : index
    %90 = vector.load %arg2[%c0_46, %c2] : memref<8x8xf32, #tpu.memory_space<vmem>>, vector<8x1xf32>
    %91 = arith.truncf %86 : vector<8x32xf32> to vector<8x32xbf16>
    %cst_47 = arith.constant dense<0.000000e+00> : vector<8x32xf32>
    %92 = tpu.matmul %91, %3, %cst_47 {dimension_numbers = #tpu.dot_dimension_numbers<[1], [0], [0], [1], [0, 0, 1, 1], [], []>} : vector<8x32xbf16>, vector<32x32xbf16>, vector<8x32xf32> -> vector<8x32xf32>
    %cst_48 = arith.constant dense<0.000000e+00> : vector<8x32xf32>
    %93 = tpu.matmul %91, %4, %cst_48 {dimension_numbers = #tpu.dot_dimension_numbers<[1], [0], [0], [1], [0, 0, 1, 1], [], []>} : vector<8x32xbf16>, vector<32x32xbf16>, vector<8x32xf32> -> vector<8x32xf32>
    %cst_49 = arith.constant dense<0.000000e+00> : vector<8x32xf32>
    %94 = tpu.matmul %91, %5, %cst_49 {dimension_numbers = #tpu.dot_dimension_numbers<[1], [0], [0], [1], [0, 0, 1, 1], [], []>} : vector<8x32xbf16>, vector<32x32xbf16>, vector<8x32xf32> -> vector<8x32xf32>
    %c0_50 = arith.constant 0 : index
    %c2_51 = arith.constant 2 : index
    %c0_52 = arith.constant 0 : index
    %95 = vector.load %arg3[%c0_50, %c2_51, %c0_52] : memref<8x8x32xbf16, #tpu.memory_space<vmem>>, vector<8x1x32xbf16>
    %96 = vector.shape_cast %95 : vector<8x1x32xbf16> to vector<8x32xbf16>
    %97 = arith.extf %96 : vector<8x32xbf16> to vector<8x32xf32>
    %98 = arith.addf %97, %92 : vector<8x32xf32>
    %99 = arith.negf %98 : vector<8x32xf32>
    %100 = math.exp %99 : vector<8x32xf32>
    %cst_53 = arith.constant 1.000000e+00 : f32
    %101 = vector.broadcast %cst_53 : f32 to vector<8x32xf32>
    %102 = arith.addf %101, %100 : vector<8x32xf32>
    %103 = arith.divf %101, %102 : vector<8x32xf32>
    %c0_54 = arith.constant 0 : index
    %c2_55 = arith.constant 2 : index
    %c0_56 = arith.constant 0 : index
    %104 = vector.load %arg4[%c0_54, %c2_55, %c0_56] : memref<8x8x32xbf16, #tpu.memory_space<vmem>>, vector<8x1x32xbf16>
    %105 = vector.shape_cast %104 : vector<8x1x32xbf16> to vector<8x32xbf16>
    %106 = arith.extf %105 : vector<8x32xbf16> to vector<8x32xf32>
    %107 = arith.addf %106, %93 : vector<8x32xf32>
    %108 = arith.negf %107 : vector<8x32xf32>
    %109 = math.exp %108 : vector<8x32xf32>
    %cst_57 = arith.constant 1.000000e+00 : f32
    %110 = vector.broadcast %cst_57 : f32 to vector<8x32xf32>
    %111 = arith.addf %110, %109 : vector<8x32xf32>
    %112 = arith.divf %110, %111 : vector<8x32xf32>
    %c0_58 = arith.constant 0 : index
    %c2_59 = arith.constant 2 : index
    %c0_60 = arith.constant 0 : index
    %113 = vector.load %arg5[%c0_58, %c2_59, %c0_60] : memref<8x8x32xbf16, #tpu.memory_space<vmem>>, vector<8x1x32xbf16>
    %114 = vector.shape_cast %113 : vector<8x1x32xbf16> to vector<8x32xbf16>
    %115 = arith.extf %114 : vector<8x32xbf16> to vector<8x32xf32>
    %116 = vector.broadcast %6 : vector<1x32xf32> to vector<8x32xf32>
    %117 = arith.addf %94, %116 : vector<8x32xf32>
    %118 = arith.mulf %103, %117 : vector<8x32xf32>
    %119 = arith.addf %115, %118 : vector<8x32xf32>
    %120 = math.tanh %119 : vector<8x32xf32>
    %121 = arith.subf %86, %120 : vector<8x32xf32>
    %122 = arith.mulf %112, %121 : vector<8x32xf32>
    %123 = arith.addf %120, %122 : vector<8x32xf32>
    %124 = arith.subf %123, %86 : vector<8x32xf32>
    %125 = vector.broadcast %90 : vector<8x1xf32> to vector<8x32xf32>
    %126 = arith.mulf %125, %124 : vector<8x32xf32>
    %127 = arith.addf %86, %126 : vector<8x32xf32>
    %c0_61 = arith.constant 0 : index
    %c2_62 = arith.constant 2 : index
    %c0_63 = arith.constant 0 : index
    %128 = vector.load %arg10[%c0_61, %c2_62, %c0_63] : memref<8x8x32xf32, #tpu.memory_space<vmem>>, vector<8x1x32xf32>
    %129 = vector.shape_cast %128 : vector<8x1x32xf32> to vector<8x32xf32>
    %130 = vector.shape_cast %127 : vector<8x32xf32> to vector<8x1x32xf32>
    tpu.vector_store %arg10[%c0_61, %c2_62, %c0_63], %130 {strides = array<i32>} : memref<8x8x32xf32, #tpu.memory_space<vmem>>, vector<8x1x32xf32>,
    %c0_64 = arith.constant 0 : index
    %c3 = arith.constant 3 : index
    %131 = vector.load %arg2[%c0_64, %c3] : memref<8x8xf32, #tpu.memory_space<vmem>>, vector<8x1xf32>
    %132 = arith.truncf %127 : vector<8x32xf32> to vector<8x32xbf16>
    %cst_65 = arith.constant dense<0.000000e+00> : vector<8x32xf32>
    %133 = tpu.matmul %132, %3, %cst_65 {dimension_numbers = #tpu.dot_dimension_numbers<[1], [0], [0], [1], [0, 0, 1, 1], [], []>} : vector<8x32xbf16>, vector<32x32xbf16>, vector<8x32xf32> -> vector<8x32xf32>
    %cst_66 = arith.constant dense<0.000000e+00> : vector<8x32xf32>
    %134 = tpu.matmul %132, %4, %cst_66 {dimension_numbers = #tpu.dot_dimension_numbers<[1], [0], [0], [1], [0, 0, 1, 1], [], []>} : vector<8x32xbf16>, vector<32x32xbf16>, vector<8x32xf32> -> vector<8x32xf32>
    %cst_67 = arith.constant dense<0.000000e+00> : vector<8x32xf32>
    %135 = tpu.matmul %132, %5, %cst_67 {dimension_numbers = #tpu.dot_dimension_numbers<[1], [0], [0], [1], [0, 0, 1, 1], [], []>} : vector<8x32xbf16>, vector<32x32xbf16>, vector<8x32xf32> -> vector<8x32xf32>
    %c0_68 = arith.constant 0 : index
    %c3_69 = arith.constant 3 : index
    %c0_70 = arith.constant 0 : index
    %136 = vector.load %arg3[%c0_68, %c3_69, %c0_70] : memref<8x8x32xbf16, #tpu.memory_space<vmem>>, vector<8x1x32xbf16>
    %137 = vector.shape_cast %136 : vector<8x1x32xbf16> to vector<8x32xbf16>
    %138 = arith.extf %137 : vector<8x32xbf16> to vector<8x32xf32>
    %139 = arith.addf %138, %133 : vector<8x32xf32>
    %140 = arith.negf %139 : vector<8x32xf32>
    %141 = math.exp %140 : vector<8x32xf32>
    %cst_71 = arith.constant 1.000000e+00 : f32
    %142 = vector.broadcast %cst_71 : f32 to vector<8x32xf32>
    %143 = arith.addf %142, %141 : vector<8x32xf32>
    %144 = arith.divf %142, %143 : vector<8x32xf32>
    %c0_72 = arith.constant 0 : index
    %c3_73 = arith.constant 3 : index
    %c0_74 = arith.constant 0 : index
    %145 = vector.load %arg4[%c0_72, %c3_73, %c0_74] : memref<8x8x32xbf16, #tpu.memory_space<vmem>>, vector<8x1x32xbf16>
    %146 = vector.shape_cast %145 : vector<8x1x32xbf16> to vector<8x32xbf16>
    %147 = arith.extf %146 : vector<8x32xbf16> to vector<8x32xf32>
    %148 = arith.addf %147, %134 : vector<8x32xf32>
    %149 = arith.negf %148 : vector<8x32xf32>
    %150 = math.exp %149 : vector<8x32xf32>
    %cst_75 = arith.constant 1.000000e+00 : f32
    %151 = vector.broadcast %cst_75 : f32 to vector<8x32xf32>
    %152 = arith.addf %151, %150 : vector<8x32xf32>
    %153 = arith.divf %151, %152 : vector<8x32xf32>
    %c0_76 = arith.constant 0 : index
    %c3_77 = arith.constant 3 : index
    %c0_78 = arith.constant 0 : index
    %154 = vector.load %arg5[%c0_76, %c3_77, %c0_78] : memref<8x8x32xbf16, #tpu.memory_space<vmem>>, vector<8x1x32xbf16>
    %155 = vector.shape_cast %154 : vector<8x1x32xbf16> to vector<8x32xbf16>
    %156 = arith.extf %155 : vector<8x32xbf16> to vector<8x32xf32>
    %157 = vector.broadcast %6 : vector<1x32xf32> to vector<8x32xf32>
    %158 = arith.addf %135, %157 : vector<8x32xf32>
    %159 = arith.mulf %144, %158 : vector<8x32xf32>
    %160 = arith.addf %156, %159 : vector<8x32xf32>
    %161 = math.tanh %160 : vector<8x32xf32>
    %162 = arith.subf %127, %161 : vector<8x32xf32>
    %163 = arith.mulf %153, %162 : vector<8x32xf32>
    %164 = arith.addf %161, %163 : vector<8x32xf32>
    %165 = arith.subf %164, %127 : vector<8x32xf32>
    %166 = vector.broadcast %131 : vector<8x1xf32> to vector<8x32xf32>
    %167 = arith.mulf %166, %165 : vector<8x32xf32>
    %168 = arith.addf %127, %167 : vector<8x32xf32>
    %c0_79 = arith.constant 0 : index
    %c3_80 = arith.constant 3 : index
    %c0_81 = arith.constant 0 : index
    %169 = vector.load %arg10[%c0_79, %c3_80, %c0_81] : memref<8x8x32xf32, #tpu.memory_space<vmem>>, vector<8x1x32xf32>
    %170 = vector.shape_cast %169 : vector<8x1x32xf32> to vector<8x32xf32>
    %171 = vector.shape_cast %168 : vector<8x32xf32> to vector<8x1x32xf32>
    tpu.vector_store %arg10[%c0_79, %c3_80, %c0_81], %171 {strides = array<i32>} : memref<8x8x32xf32, #tpu.memory_space<vmem>>, vector<8x1x32xf32>,
    %c0_82 = arith.constant 0 : index
    %c4 = arith.constant 4 : index
    %172 = vector.load %arg2[%c0_82, %c4] : memref<8x8xf32, #tpu.memory_space<vmem>>, vector<8x1xf32>
    %173 = arith.truncf %168 : vector<8x32xf32> to vector<8x32xbf16>
    %cst_83 = arith.constant dense<0.000000e+00> : vector<8x32xf32>
    %174 = tpu.matmul %173, %3, %cst_83 {dimension_numbers = #tpu.dot_dimension_numbers<[1], [0], [0], [1], [0, 0, 1, 1], [], []>} : vector<8x32xbf16>, vector<32x32xbf16>, vector<8x32xf32> -> vector<8x32xf32>
    %cst_84 = arith.constant dense<0.000000e+00> : vector<8x32xf32>
    %175 = tpu.matmul %173, %4, %cst_84 {dimension_numbers = #tpu.dot_dimension_numbers<[1], [0], [0], [1], [0, 0, 1, 1], [], []>} : vector<8x32xbf16>, vector<32x32xbf16>, vector<8x32xf32> -> vector<8x32xf32>
    %cst_85 = arith.constant dense<0.000000e+00> : vector<8x32xf32>
    %176 = tpu.matmul %173, %5, %cst_85 {dimension_numbers = #tpu.dot_dimension_numbers<[1], [0], [0], [1], [0, 0, 1, 1], [], []>} : vector<8x32xbf16>, vector<32x32xbf16>, vector<8x32xf32> -> vector<8x32xf32>
    %c0_86 = arith.constant 0 : index
    %c4_87 = arith.constant 4 : index
    %c0_88 = arith.constant 0 : index
    %177 = vector.load %arg3[%c0_86, %c4_87, %c0_88] : memref<8x8x32xbf16, #tpu.memory_space<vmem>>, vector<8x1x32xbf16>
    %178 = vector.shape_cast %177 : vector<8x1x32xbf16> to vector<8x32xbf16>
    %179 = arith.extf %178 : vector<8x32xbf16> to vector<8x32xf32>
    %180 = arith.addf %179, %174 : vector<8x32xf32>
    %181 = arith.negf %180 : vector<8x32xf32>
    %182 = math.exp %181 : vector<8x32xf32>
    %cst_89 = arith.constant 1.000000e+00 : f32
    %183 = vector.broadcast %cst_89 : f32 to vector<8x32xf32>
    %184 = arith.addf %183, %182 : vector<8x32xf32>
    %185 = arith.divf %183, %184 : vector<8x32xf32>
    %c0_90 = arith.constant 0 : index
    %c4_91 = arith.constant 4 : index
    %c0_92 = arith.constant 0 : index
    %186 = vector.load %arg4[%c0_90, %c4_91, %c0_92] : memref<8x8x32xbf16, #tpu.memory_space<vmem>>, vector<8x1x32xbf16>
    %187 = vector.shape_cast %186 : vector<8x1x32xbf16> to vector<8x32xbf16>
    %188 = arith.extf %187 : vector<8x32xbf16> to vector<8x32xf32>
    %189 = arith.addf %188, %175 : vector<8x32xf32>
    %190 = arith.negf %189 : vector<8x32xf32>
    %191 = math.exp %190 : vector<8x32xf32>
    %cst_93 = arith.constant 1.000000e+00 : f32
    %192 = vector.broadcast %cst_93 : f32 to vector<8x32xf32>
    %193 = arith.addf %192, %191 : vector<8x32xf32>
    %194 = arith.divf %192, %193 : vector<8x32xf32>
    %c0_94 = arith.constant 0 : index
    %c4_95 = arith.constant 4 : index
    %c0_96 = arith.constant 0 : index
    %195 = vector.load %arg5[%c0_94, %c4_95, %c0_96] : memref<8x8x32xbf16, #tpu.memory_space<vmem>>, vector<8x1x32xbf16>
    %196 = vector.shape_cast %195 : vector<8x1x32xbf16> to vector<8x32xbf16>
    %197 = arith.extf %196 : vector<8x32xbf16> to vector<8x32xf32>
    %198 = vector.broadcast %6 : vector<1x32xf32> to vector<8x32xf32>
    %199 = arith.addf %176, %198 : vector<8x32xf32>
    %200 = arith.mulf %185, %199 : vector<8x32xf32>
    %201 = arith.addf %197, %200 : vector<8x32xf32>
    %202 = math.tanh %201 : vector<8x32xf32>
    %203 = arith.subf %168, %202 : vector<8x32xf32>
    %204 = arith.mulf %194, %203 : vector<8x32xf32>
    %205 = arith.addf %202, %204 : vector<8x32xf32>
    %206 = arith.subf %205, %168 : vector<8x32xf32>
    %207 = vector.broadcast %172 : vector<8x1xf32> to vector<8x32xf32>
    %208 = arith.mulf %207, %206 : vector<8x32xf32>
    %209 = arith.addf %168, %208 : vector<8x32xf32>
    %c0_97 = arith.constant 0 : index
    %c4_98 = arith.constant 4 : index
    %c0_99 = arith.constant 0 : index
    %210 = vector.load %arg10[%c0_97, %c4_98, %c0_99] : memref<8x8x32xf32, #tpu.memory_space<vmem>>, vector<8x1x32xf32>
    %211 = vector.shape_cast %210 : vector<8x1x32xf32> to vector<8x32xf32>
    %212 = vector.shape_cast %209 : vector<8x32xf32> to vector<8x1x32xf32>
    tpu.vector_store %arg10[%c0_97, %c4_98, %c0_99], %212 {strides = array<i32>} : memref<8x8x32xf32, #tpu.memory_space<vmem>>, vector<8x1x32xf32>,
    %c0_100 = arith.constant 0 : index
    %c5 = arith.constant 5 : index
    %213 = vector.load %arg2[%c0_100, %c5] : memref<8x8xf32, #tpu.memory_space<vmem>>, vector<8x1xf32>
    %214 = arith.truncf %209 : vector<8x32xf32> to vector<8x32xbf16>
    %cst_101 = arith.constant dense<0.000000e+00> : vector<8x32xf32>
    %215 = tpu.matmul %214, %3, %cst_101 {dimension_numbers = #tpu.dot_dimension_numbers<[1], [0], [0], [1], [0, 0, 1, 1], [], []>} : vector<8x32xbf16>, vector<32x32xbf16>, vector<8x32xf32> -> vector<8x32xf32>
    %cst_102 = arith.constant dense<0.000000e+00> : vector<8x32xf32>
    %216 = tpu.matmul %214, %4, %cst_102 {dimension_numbers = #tpu.dot_dimension_numbers<[1], [0], [0], [1], [0, 0, 1, 1], [], []>} : vector<8x32xbf16>, vector<32x32xbf16>, vector<8x32xf32> -> vector<8x32xf32>
    %cst_103 = arith.constant dense<0.000000e+00> : vector<8x32xf32>
    %217 = tpu.matmul %214, %5, %cst_103 {dimension_numbers = #tpu.dot_dimension_numbers<[1], [0], [0], [1], [0, 0, 1, 1], [], []>} : vector<8x32xbf16>, vector<32x32xbf16>, vector<8x32xf32> -> vector<8x32xf32>
    %c0_104 = arith.constant 0 : index
    %c5_105 = arith.constant 5 : index
    %c0_106 = arith.constant 0 : index
    %218 = vector.load %arg3[%c0_104, %c5_105, %c0_106] : memref<8x8x32xbf16, #tpu.memory_space<vmem>>, vector<8x1x32xbf16>
    %219 = vector.shape_cast %218 : vector<8x1x32xbf16> to vector<8x32xbf16>
    %220 = arith.extf %219 : vector<8x32xbf16> to vector<8x32xf32>
    %221 = arith.addf %220, %215 : vector<8x32xf32>
    %222 = arith.negf %221 : vector<8x32xf32>
    %223 = math.exp %222 : vector<8x32xf32>
    %cst_107 = arith.constant 1.000000e+00 : f32
    %224 = vector.broadcast %cst_107 : f32 to vector<8x32xf32>
    %225 = arith.addf %224, %223 : vector<8x32xf32>
    %226 = arith.divf %224, %225 : vector<8x32xf32>
    %c0_108 = arith.constant 0 : index
    %c5_109 = arith.constant 5 : index
    %c0_110 = arith.constant 0 : index
    %227 = vector.load %arg4[%c0_108, %c5_109, %c0_110] : memref<8x8x32xbf16, #tpu.memory_space<vmem>>, vector<8x1x32xbf16>
    %228 = vector.shape_cast %227 : vector<8x1x32xbf16> to vector<8x32xbf16>
    %229 = arith.extf %228 : vector<8x32xbf16> to vector<8x32xf32>
    %230 = arith.addf %229, %216 : vector<8x32xf32>
    %231 = arith.negf %230 : vector<8x32xf32>
    %232 = math.exp %231 : vector<8x32xf32>
    %cst_111 = arith.constant 1.000000e+00 : f32
    %233 = vector.broadcast %cst_111 : f32 to vector<8x32xf32>
    %234 = arith.addf %233, %232 : vector<8x32xf32>
    %235 = arith.divf %233, %234 : vector<8x32xf32>
    %c0_112 = arith.constant 0 : index
    %c5_113 = arith.constant 5 : index
    %c0_114 = arith.constant 0 : index
    %236 = vector.load %arg5[%c0_112, %c5_113, %c0_114] : memref<8x8x32xbf16, #tpu.memory_space<vmem>>, vector<8x1x32xbf16>
    %237 = vector.shape_cast %236 : vector<8x1x32xbf16> to vector<8x32xbf16>
    %238 = arith.extf %237 : vector<8x32xbf16> to vector<8x32xf32>
    %239 = vector.broadcast %6 : vector<1x32xf32> to vector<8x32xf32>
    %240 = arith.addf %217, %239 : vector<8x32xf32>
    %241 = arith.mulf %226, %240 : vector<8x32xf32>
    %242 = arith.addf %238, %241 : vector<8x32xf32>
    %243 = math.tanh %242 : vector<8x32xf32>
    %244 = arith.subf %209, %243 : vector<8x32xf32>
    %245 = arith.mulf %235, %244 : vector<8x32xf32>
    %246 = arith.addf %243, %245 : vector<8x32xf32>
    %247 = arith.subf %246, %209 : vector<8x32xf32>
    %248 = vector.broadcast %213 : vector<8x1xf32> to vector<8x32xf32>
    %249 = arith.mulf %248, %247 : vector<8x32xf32>
    %250 = arith.addf %209, %249 : vector<8x32xf32>
    %c0_115 = arith.constant 0 : index
    %c5_116 = arith.constant 5 : index
    %c0_117 = arith.constant 0 : index
    %251 = vector.load %arg10[%c0_115, %c5_116, %c0_117] : memref<8x8x32xf32, #tpu.memory_space<vmem>>, vector<8x1x32xf32>
    %252 = vector.shape_cast %251 : vector<8x1x32xf32> to vector<8x32xf32>
    %253 = vector.shape_cast %250 : vector<8x32xf32> to vector<8x1x32xf32>
    tpu.vector_store %arg10[%c0_115, %c5_116, %c0_117], %253 {strides = array<i32>} : memref<8x8x32xf32, #tpu.memory_space<vmem>>, vector<8x1x32xf32>,
    %c0_118 = arith.constant 0 : index
    %c6 = arith.constant 6 : index
    %254 = vector.load %arg2[%c0_118, %c6] : memref<8x8xf32, #tpu.memory_space<vmem>>, vector<8x1xf32>
    %255 = arith.truncf %250 : vector<8x32xf32> to vector<8x32xbf16>
    %cst_119 = arith.constant dense<0.000000e+00> : vector<8x32xf32>
    %256 = tpu.matmul %255, %3, %cst_119 {dimension_numbers = #tpu.dot_dimension_numbers<[1], [0], [0], [1], [0, 0, 1, 1], [], []>} : vector<8x32xbf16>, vector<32x32xbf16>, vector<8x32xf32> -> vector<8x32xf32>
    %cst_120 = arith.constant dense<0.000000e+00> : vector<8x32xf32>
    %257 = tpu.matmul %255, %4, %cst_120 {dimension_numbers = #tpu.dot_dimension_numbers<[1], [0], [0], [1], [0, 0, 1, 1], [], []>} : vector<8x32xbf16>, vector<32x32xbf16>, vector<8x32xf32> -> vector<8x32xf32>
    %cst_121 = arith.constant dense<0.000000e+00> : vector<8x32xf32>
    %258 = tpu.matmul %255, %5, %cst_121 {dimension_numbers = #tpu.dot_dimension_numbers<[1], [0], [0], [1], [0, 0, 1, 1], [], []>} : vector<8x32xbf16>, vector<32x32xbf16>, vector<8x32xf32> -> vector<8x32xf32>
    %c0_122 = arith.constant 0 : index
    %c6_123 = arith.constant 6 : index
    %c0_124 = arith.constant 0 : index
    %259 = vector.load %arg3[%c0_122, %c6_123, %c0_124] : memref<8x8x32xbf16, #tpu.memory_space<vmem>>, vector<8x1x32xbf16>
    %260 = vector.shape_cast %259 : vector<8x1x32xbf16> to vector<8x32xbf16>
    %261 = arith.extf %260 : vector<8x32xbf16> to vector<8x32xf32>
    %262 = arith.addf %261, %256 : vector<8x32xf32>
    %263 = arith.negf %262 : vector<8x32xf32>
    %264 = math.exp %263 : vector<8x32xf32>
    %cst_125 = arith.constant 1.000000e+00 : f32
    %265 = vector.broadcast %cst_125 : f32 to vector<8x32xf32>
    %266 = arith.addf %265, %264 : vector<8x32xf32>
    %267 = arith.divf %265, %266 : vector<8x32xf32>
    %c0_126 = arith.constant 0 : index
    %c6_127 = arith.constant 6 : index
    %c0_128 = arith.constant 0 : index
    %268 = vector.load %arg4[%c0_126, %c6_127, %c0_128] : memref<8x8x32xbf16, #tpu.memory_space<vmem>>, vector<8x1x32xbf16>
    %269 = vector.shape_cast %268 : vector<8x1x32xbf16> to vector<8x32xbf16>
    %270 = arith.extf %269 : vector<8x32xbf16> to vector<8x32xf32>
    %271 = arith.addf %270, %257 : vector<8x32xf32>
    %272 = arith.negf %271 : vector<8x32xf32>
    %273 = math.exp %272 : vector<8x32xf32>
    %cst_129 = arith.constant 1.000000e+00 : f32
    %274 = vector.broadcast %cst_129 : f32 to vector<8x32xf32>
    %275 = arith.addf %274, %273 : vector<8x32xf32>
    %276 = arith.divf %274, %275 : vector<8x32xf32>
    %c0_130 = arith.constant 0 : index
    %c6_131 = arith.constant 6 : index
    %c0_132 = arith.constant 0 : index
    %277 = vector.load %arg5[%c0_130, %c6_131, %c0_132] : memref<8x8x32xbf16, #tpu.memory_space<vmem>>, vector<8x1x32xbf16>
    %278 = vector.shape_cast %277 : vector<8x1x32xbf16> to vector<8x32xbf16>
    %279 = arith.extf %278 : vector<8x32xbf16> to vector<8x32xf32>
    %280 = vector.broadcast %6 : vector<1x32xf32> to vector<8x32xf32>
    %281 = arith.addf %258, %280 : vector<8x32xf32>
    %282 = arith.mulf %267, %281 : vector<8x32xf32>
    %283 = arith.addf %279, %282 : vector<8x32xf32>
    %284 = math.tanh %283 : vector<8x32xf32>
    %285 = arith.subf %250, %284 : vector<8x32xf32>
    %286 = arith.mulf %276, %285 : vector<8x32xf32>
    %287 = arith.addf %284, %286 : vector<8x32xf32>
    %288 = arith.subf %287, %250 : vector<8x32xf32>
    %289 = vector.broadcast %254 : vector<8x1xf32> to vector<8x32xf32>
    %290 = arith.mulf %289, %288 : vector<8x32xf32>
    %291 = arith.addf %250, %290 : vector<8x32xf32>
    %c0_133 = arith.constant 0 : index
    %c6_134 = arith.constant 6 : index
    %c0_135 = arith.constant 0 : index
    %292 = vector.load %arg10[%c0_133, %c6_134, %c0_135] : memref<8x8x32xf32, #tpu.memory_space<vmem>>, vector<8x1x32xf32>
    %293 = vector.shape_cast %292 : vector<8x1x32xf32> to vector<8x32xf32>
    %294 = vector.shape_cast %291 : vector<8x32xf32> to vector<8x1x32xf32>
    tpu.vector_store %arg10[%c0_133, %c6_134, %c0_135], %294 {strides = array<i32>} : memref<8x8x32xf32, #tpu.memory_space<vmem>>, vector<8x1x32xf32>,
    %c0_136 = arith.constant 0 : index
    %c7 = arith.constant 7 : index
    %295 = vector.load %arg2[%c0_136, %c7] : memref<8x8xf32, #tpu.memory_space<vmem>>, vector<8x1xf32>
    %296 = arith.truncf %291 : vector<8x32xf32> to vector<8x32xbf16>
    %cst_137 = arith.constant dense<0.000000e+00> : vector<8x32xf32>
    %297 = tpu.matmul %296, %3, %cst_137 {dimension_numbers = #tpu.dot_dimension_numbers<[1], [0], [0], [1], [0, 0, 1, 1], [], []>} : vector<8x32xbf16>, vector<32x32xbf16>, vector<8x32xf32> -> vector<8x32xf32>
    %cst_138 = arith.constant dense<0.000000e+00> : vector<8x32xf32>
    %298 = tpu.matmul %296, %4, %cst_138 {dimension_numbers = #tpu.dot_dimension_numbers<[1], [0], [0], [1], [0, 0, 1, 1], [], []>} : vector<8x32xbf16>, vector<32x32xbf16>, vector<8x32xf32> -> vector<8x32xf32>
    %cst_139 = arith.constant dense<0.000000e+00> : vector<8x32xf32>
    %299 = tpu.matmul %296, %5, %cst_139 {dimension_numbers = #tpu.dot_dimension_numbers<[1], [0], [0], [1], [0, 0, 1, 1], [], []>} : vector<8x32xbf16>, vector<32x32xbf16>, vector<8x32xf32> -> vector<8x32xf32>
    %c0_140 = arith.constant 0 : index
    %c7_141 = arith.constant 7 : index
    %c0_142 = arith.constant 0 : index
    %300 = vector.load %arg3[%c0_140, %c7_141, %c0_142] : memref<8x8x32xbf16, #tpu.memory_space<vmem>>, vector<8x1x32xbf16>
    %301 = vector.shape_cast %300 : vector<8x1x32xbf16> to vector<8x32xbf16>
    %302 = arith.extf %301 : vector<8x32xbf16> to vector<8x32xf32>
    %303 = arith.addf %302, %297 : vector<8x32xf32>
    %304 = arith.negf %303 : vector<8x32xf32>
    %305 = math.exp %304 : vector<8x32xf32>
    %cst_143 = arith.constant 1.000000e+00 : f32
    %306 = vector.broadcast %cst_143 : f32 to vector<8x32xf32>
    %307 = arith.addf %306, %305 : vector<8x32xf32>
    %308 = arith.divf %306, %307 : vector<8x32xf32>
    %c0_144 = arith.constant 0 : index
    %c7_145 = arith.constant 7 : index
    %c0_146 = arith.constant 0 : index
    %309 = vector.load %arg4[%c0_144, %c7_145, %c0_146] : memref<8x8x32xbf16, #tpu.memory_space<vmem>>, vector<8x1x32xbf16>
    %310 = vector.shape_cast %309 : vector<8x1x32xbf16> to vector<8x32xbf16>
    %311 = arith.extf %310 : vector<8x32xbf16> to vector<8x32xf32>
    %312 = arith.addf %311, %298 : vector<8x32xf32>
    %313 = arith.negf %312 : vector<8x32xf32>
    %314 = math.exp %313 : vector<8x32xf32>
    %cst_147 = arith.constant 1.000000e+00 : f32
    %315 = vector.broadcast %cst_147 : f32 to vector<8x32xf32>
    %316 = arith.addf %315, %314 : vector<8x32xf32>
    %317 = arith.divf %315, %316 : vector<8x32xf32>
    %c0_148 = arith.constant 0 : index
    %c7_149 = arith.constant 7 : index
    %c0_150 = arith.constant 0 : index
    %318 = vector.load %arg5[%c0_148, %c7_149, %c0_150] : memref<8x8x32xbf16, #tpu.memory_space<vmem>>, vector<8x1x32xbf16>
    %319 = vector.shape_cast %318 : vector<8x1x32xbf16> to vector<8x32xbf16>
    %320 = arith.extf %319 : vector<8x32xbf16> to vector<8x32xf32>
    %321 = vector.broadcast %6 : vector<1x32xf32> to vector<8x32xf32>
    %322 = arith.addf %299, %321 : vector<8x32xf32>
    %323 = arith.mulf %308, %322 : vector<8x32xf32>
    %324 = arith.addf %320, %323 : vector<8x32xf32>
    %325 = math.tanh %324 : vector<8x32xf32>
    %326 = arith.subf %291, %325 : vector<8x32xf32>
    %327 = arith.mulf %317, %326 : vector<8x32xf32>
    %328 = arith.addf %325, %327 : vector<8x32xf32>
    %329 = arith.subf %328, %291 : vector<8x32xf32>
    %330 = vector.broadcast %295 : vector<8x1xf32> to vector<8x32xf32>
    %331 = arith.mulf %330, %329 : vector<8x32xf32>
    %332 = arith.addf %291, %331 : vector<8x32xf32>
    %c0_151 = arith.constant 0 : index
    %c7_152 = arith.constant 7 : index
    %c0_153 = arith.constant 0 : index
    %333 = vector.load %arg10[%c0_151, %c7_152, %c0_153] : memref<8x8x32xf32, #tpu.memory_space<vmem>>, vector<8x1x32xf32>
    %334 = vector.shape_cast %333 : vector<8x1x32xf32> to vector<8x32xf32>
    %335 = vector.shape_cast %332 : vector<8x32xf32> to vector<8x1x32xf32>
    tpu.vector_store %arg10[%c0_151, %c7_152, %c0_153], %335 {strides = array<i32>} : memref<8x8x32xf32, #tpu.memory_space<vmem>>, vector<8x1x32xf32>,
    %c0_154 = arith.constant 0 : index
    %c0_155 = arith.constant 0 : index
    %336 = vector.load %arg12[%c0_154, %c0_155] : memref<8x32xf32, #tpu.memory_space<vmem>>, vector<8x32xf32>
    tpu.vector_store %arg12[%c0_154, %c0_155], %332 {strides = array<i32>} : memref<8x32xf32, #tpu.memory_space<vmem>>, vector<8x32xf32>,
    %c0_156 = arith.constant 0 : index
    %c0_157 = arith.constant 0 : index
    %337 = vector.load %arg11[%c0_156, %c0_157] : memref<8x32xf32, #tpu.memory_space<vmem>>, vector<8x32xf32>
    tpu.vector_store %arg11[%c0_156, %c0_157], %332 {strides = array<i32>} : memref<8x32xf32, #tpu.memory_space<vmem>>, vector<8x32xf32>,
    return
  }
  func.func @transform_0(%arg0: i32, %arg1: i32) -> (i32, i32) {
    %c0_i32 = arith.constant 0 : i32
    return %arg0, %arg1 : i32, i32
  }
  func.func @transform_1(%arg0: i32, %arg1: i32) -> (i32, i32, i32) {
    %c0_i32 = arith.constant 0 : i32
    %c0_i32_0 = arith.constant 0 : i32
    return %arg0, %arg1, %c0_i32 : i32, i32, i32
  }
  func.func @transform_2(%arg0: i32, %arg1: i32) -> (i32, i32, i32) {
    %c0_i32 = arith.constant 0 : i32
    %c0_i32_0 = arith.constant 0 : i32
    return %arg0, %arg1, %c0_i32 : i32, i32, i32
  }
  func.func @transform_3(%arg0: i32, %arg1: i32) -> (i32, i32, i32) {
    %c0_i32 = arith.constant 0 : i32
    %c0_i32_0 = arith.constant 0 : i32
    return %arg0, %arg1, %c0_i32 : i32, i32, i32
  }
  func.func @transform_4(%arg0: i32, %arg1: i32) -> (i32, i32) {
    %c0_i32 = arith.constant 0 : i32
    %c0_i32_0 = arith.constant 0 : i32
    %c0_i32_1 = arith.constant 0 : i32
    return %c0_i32, %c0_i32_0 : i32, i32
  }
  func.func @transform_5(%arg0: i32, %arg1: i32) -> (i32, i32) {
    %c0_i32 = arith.constant 0 : i32
    %c0_i32_0 = arith.constant 0 : i32
    %c0_i32_1 = arith.constant 0 : i32
    return %c0_i32, %c0_i32_0 : i32, i32
  }
  func.func @transform_6(%arg0: i32, %arg1: i32) -> (i32, i32) {
    %c0_i32 = arith.constant 0 : i32
    %c0_i32_0 = arith.constant 0 : i32
    %c0_i32_1 = arith.constant 0 : i32
    return %c0_i32, %c0_i32_0 : i32, i32
  }
  func.func @transform_7(%arg0: i32, %arg1: i32) -> (i32, i32) {
    %c0_i32 = arith.constant 0 : i32
    %c0_i32_0 = arith.constant 0 : i32
    %c0_i32_1 = arith.constant 0 : i32
    return %c0_i32, %c0_i32_0 : i32, i32
  }
  func.func @transform_8(%arg0: i32, %arg1: i32) -> (i32, i32, i32) {
    %c0_i32 = arith.constant 0 : i32
    %c0_i32_0 = arith.constant 0 : i32
    return %arg0, %arg1, %c0_i32 : i32, i32, i32
  }
  func.func @transform_9(%arg0: i32, %arg1: i32) -> (i32, i32) {
    %c0_i32 = arith.constant 0 : i32
    %c0_i32_0 = arith.constant 0 : i32
    return %arg0, %c0_i32 : i32, i32
  }
}

</mosaic_0001>

<llo_original>
// kernel: tpu_custom_call.1
$region0: #{tpu_custom_call.1}
  #allocation0 [shape = 'u32[]', space=smem, size = 0x4, offset = 0x4, fixed_abs, tag = 'smem constant byte address 0x4 - core index']
  #allocation1 [shape = 'u32[72,128]{1,0:T(1,128)}', space=vmem, size = 0x9000, scoped, tag = 'internal scratch']
  #allocation2 [shape = 'f32[8,32]{1,0:T(8,128)}', space=vmem, size = 0x1000, scoped, tag = 'scratch operand']
  %s0 = inlined_call_operand.hbm [shape: f32[8,8], index: 0, kind: input, shape index: {}]
  %s1 = inlined_call_operand.hbm [shape: bf16[8,8,32], index: 1, kind: input, shape index: {}]
  %s2 = inlined_call_operand.hbm [shape: bf16[8,8,32], index: 2, kind: input, shape index: {}]
  %s3 = inlined_call_operand.hbm [shape: bf16[8,8,32], index: 3, kind: input, shape index: {}]
  %s4 = inlined_call_operand.hbm [shape: bf16[32,32], index: 4, kind: input, shape index: {}]
  %s5 = inlined_call_operand.hbm [shape: bf16[32,32], index: 5, kind: input, shape index: {}]
  %s6 = inlined_call_operand.hbm [shape: bf16[32,32], index: 6, kind: input, shape index: {}]
  %s7 = inlined_call_operand.vmem [shape: f32[1,32], index: 7, kind: input, shape index: {}]
  %s8 = inlined_call_operand.hbm [shape: f32[8,8,32], index: 8, kind: output, shape index: {0}]
  %s9 = inlined_call_operand.hbm [shape: f32[8,32], index: 9, kind: output, shape index: {1}]
  %10 = xla_tuple %s8, %s9
  %s11 = sld [smem:[#allocation0]]
  $region82: #{tpu_custom_call.1} parent=0
    _
  %s13 = ssub.s32 1, %s11
  %s14 = scalar_select 0, %s13, %s11
  $region1: #{tpu_custom_call.1} parent=0
    #allocation3 [shape = 'u8[4096]{0}', space=vmem, size = 0x1000, scoped, tag = 'input window, operand 0, single buffered']
    #allocation4 [shape = 's32[1]{0}', space=sflag, size = 0x4, scoped, tag = 'scoped memory for tpu_custom_call.1']
    #allocation5 [shape = 's32[1]{0}', space=sflag, size = 0x4, scoped, tag = 'scoped memory for tpu_custom_call.1']
    #allocation6 [shape = 'u8[16384]{0}', space=vmem, size = 0x4000, scoped, tag = 'input window, operand 1, single buffered']
    #allocation7 [shape = 's32[1]{0}', space=sflag, size = 0x4, scoped, tag = 'scoped memory for tpu_custom_call.1']
    #allocation8 [shape = 'u8[16384]{0}', space=vmem, size = 0x4000, scoped, tag = 'input window, operand 2, single buffered']
    #allocation9 [shape = 'u8[16384]{0}', space=vmem, size = 0x4000, scoped, tag = 'input window, operand 3, single buffered']
    #allocation10 [shape = 's32[1]{0}', space=sflag, size = 0x4, scoped, tag = 'scoped memory for tpu_custom_call.1']
    #allocation11 [shape = 'u8[8192]{0}', space=vmem, size = 0x2000, scoped, tag = 'input window, operand 4, single buffered']
    #allocation12 [shape = 'u8[8192]{0}', space=vmem, size = 0x2000, scoped, tag = 'input window, operand 5, single buffered']
    #allocation13 [shape = 's32[1]{0}', space=sflag, size = 0x4, scoped, tag = 'scoped memory for tpu_custom_call.1']
    #allocation14 [shape = 'u8[8192]{0}', space=vmem, size = 0x2000, scoped, tag = 'input window, operand 6, single buffered']
    #allocation15 [shape = 'u8[32768]{0}', space=vmem, size = 0x8000, scoped, tag = 'output window, operand 0, single buffered']
    #allocation16 [shape = 'u8[4096]{0}', space=vmem, size = 0x1000, scoped, tag = 'output window, operand 1, single buffered']
    #allocation17 [shape = 's32[1]{0}', space=sflag, size = 0x4, scoped, tag = 'scoped memory for tpu_custom_call.1']
    %15 = vsyncpa [#allocation4], 0
    %16 = vsyncpa [#allocation7], 0
    %17 = vsyncpa [#allocation10], 0
    %18 = vsyncpa [#allocation13], 0
    %19 = vsyncpa [#allocation5], 0
    %20 = vsyncpa [#allocation17], 0
    // Predicated region
    $region2: #{tpu_custom_call.1} parent=1 // pred_check
      _
    $region3: #{tpu_custom_call.1} parent=1 // pred_check_branch
      %22 = sbr.rel (0) target = $region5
    $region4: #{tpu_custom_call.1} parent=1 // pred_region
      %24 = vsyncadd [#allocation4], 0
      %s26 = sshll.u32 %s0, 4
      %s27 = int_to_ptr.hbm [resolvable:$true] %s26
      %s28 = sshll.u32 [#allocation3], 4
      %s29 = int_to_ptr.vmem [resolvable:$true] %s28
      %31 = dma.hbm_to_vmem [thread:$0]  %s27, 128, %s29, [#allocation4]
    $region5: #{tpu_custom_call.1} parent=1 // pred_fallthru
      _
    // Predicated region
    $region6: #{tpu_custom_call.1} parent=1 // pred_check
      _
    $region7: #{tpu_custom_call.1} parent=1 // pred_check_branch
      %33 = sbr.rel (0) target = $region9
    $region8: #{tpu_custom_call.1} parent=1 // pred_region
      %35 = vsyncadd [#allocation7], 0
      %s36 = sshll.u32 %s1, 4
      %s37 = int_to_ptr.hbm [resolvable:$true] %s36
      %s38 = sshll.u32 [#allocation6], 4
      %s39 = int_to_ptr.vmem [resolvable:$true] %s38
      %44 = dma.hbm_to_vmem [thread:$0]  %s37, 512, %s39, [#allocation7], 64, 64, 4
    $region9: #{tpu_custom_call.1} parent=1 // pred_fallthru
      _
    // Predicated region
    $region10: #{tpu_custom_call.1} parent=1 // pred_check
      _
    $region11: #{tpu_custom_call.1} parent=1 // pred_check_branch
      %46 = sbr.rel (0) target = $region13
    $region12: #{tpu_custom_call.1} parent=1 // pred_region
      %48 = vsyncadd [#allocation7], 0
      %s49 = sshll.u32 %s2, 4
      %s50 = int_to_ptr.hbm [resolvable:$true] %s49
      %s51 = sshll.u32 [#allocation8], 4
      %s52 = int_to_ptr.vmem [resolvable:$true] %s51
      %57 = dma.hbm_to_vmem [thread:$0]  %s50, 512, %s52, [#allocation7], 64, 64, 4
    $region13: #{tpu_custom_call.1} parent=1 // pred_fallthru
      _
    // Predicated region
    $region14: #{tpu_custom_call.1} parent=1 // pred_check
      _
    $region15: #{tpu_custom_call.1} parent=1 // pred_check_branch
      %59 = sbr.rel (0) target = $region17
    $region16: #{tpu_custom_call.1} parent=1 // pred_region
      %61 = vsyncadd [#allocation10], 0
      %s62 = sshll.u32 %s3, 4
      %s63 = int_to_ptr.hbm [resolvable:$true] %s62
      %s64 = sshll.u32 [#allocation9], 4
      %s65 = int_to_ptr.vmem [resolvable:$true] %s64
      %70 = dma.hbm_to_vmem [thread:$0]  %s63, 512, %s65, [#allocation10], 64, 64, 4
    $region17: #{tpu_custom_call.1} parent=1 // pred_fallthru
      _
    // Predicated region
    $region18: #{tpu_custom_call.1} parent=1 // pred_check
      _
    $region19: #{tpu_custom_call.1} parent=1 // pred_check_branch
      %72 = sbr.rel (0) target = $region21
    $region20: #{tpu_custom_call.1} parent=1 // pred_region
      %74 = vsyncadd [#allocation10], 0
      %s75 = sshll.u32 %s4, 4
      %s76 = int_to_ptr.hbm [resolvable:$true] %s75
      %s77 = sshll.u32 [#allocation11], 4
      %s78 = int_to_ptr.vmem [resolvable:$true] %s77
      %83 = dma.hbm_to_vmem [thread:$0]  %s76, 256, %s78, [#allocation10], 64, 64, 4
    $region21: #{tpu_custom_call.1} parent=1 // pred_fallthru
      _
    // Predicated region
    $region22: #{tpu_custom_call.1} parent=1 // pred_check
      _
    $region23: #{tpu_custom_call.1} parent=1 // pred_check_branch
      %85 = sbr.rel (0) target = $region25
    $region24: #{tpu_custom_call.1} parent=1 // pred_region
      %87 = vsyncadd [#allocation13], 0
      %s88 = sshll.u32 %s5, 4
      %s89 = int_to_ptr.hbm [resolvable:$true] %s88
      %s90 = sshll.u32 [#allocation12], 4
      %s91 = int_to_ptr.vmem [resolvable:$true] %s90
      %96 = dma.hbm_to_vmem [thread:$0]  %s89, 256, %s91, [#allocation13], 64, 64, 4
    $region25: #{tpu_custom_call.1} parent=1 // pred_fallthru
      _
    // Predicated region
    $region26: #{tpu_custom_call.1} parent=1 // pred_check
      _
    $region27: #{tpu_custom_call.1} parent=1 // pred_check_branch
      %98 = sbr.rel (0) target = $region29
    $region28: #{tpu_custom_call.1} parent=1 // pred_region
      %100 = vsyncadd [#allocation13], 0
      %s101 = sshll.u32 %s6, 4
      %s102 = int_to_ptr.hbm [resolvable:$true] %s101
      %s103 = sshll.u32 [#allocation14], 4
      %s104 = int_to_ptr.vmem [resolvable:$true] %s103
      %109 = dma.hbm_to_vmem [thread:$0]  %s102, 256, %s104, [#allocation13], 64, 64, 4
    $region29: #{tpu_custom_call.1} parent=1 // pred_fallthru
      _
    // Predicated region
    $region30: #{tpu_custom_call.1} parent=1 // pred_check
      _
    $region31: #{tpu_custom_call.1} parent=1 // pred_check_branch
      %111 = sbr.rel (0) target = $region33
    $region32: #{tpu_custom_call.1} parent=1 // pred_region
      _
    $region33: #{tpu_custom_call.1} parent=1 // pred_fallthru
      _
    // Predicated region
    $region34: #{tpu_custom_call.1} parent=1 // pred_check
      _
    $region35: #{tpu_custom_call.1} parent=1 // pred_check_branch
      %113 = sbr.rel (0) target = $region37
    $region36: #{tpu_custom_call.1} parent=1 // pred_region
      %115 = dma.done [#allocation4], 128
    $region37: #{tpu_custom_call.1} parent=1 // pred_fallthru
      _
    // Predicated region
    $region38: #{tpu_custom_call.1} parent=1 // pred_check
      _
    $region39: #{tpu_custom_call.1} parent=1 // pred_check_branch
      %117 = sbr.rel (0) target = $region41
    $region40: #{tpu_custom_call.1} parent=1 // pred_region
      %119 = dma.done [#allocation7], 512
    $region41: #{tpu_custom_call.1} parent=1 // pred_fallthru
      _
    // Predicated region
    $region42: #{tpu_custom_call.1} parent=1 // pred_check
      _
    $region43: #{tpu_custom_call.1} parent=1 // pred_check_branch
      %121 = sbr.rel (0) target = $region45
    $region44: #{tpu_custom_call.1} parent=1 // pred_region
      %123 = dma.done [#allocation7], 512
    $region45: #{tpu_custom_call.1} parent=1 // pred_fallthru
      _
    // Predicated region
    $region46: #{tpu_custom_call.1} parent=1 // pred_check
      _
    $region47: #{tpu_custom_call.1} parent=1 // pred_check_branch
      %125 = sbr.rel (0) target = $region49
    $region48: #{tpu_custom_call.1} parent=1 // pred_region
      %127 = dma.done [#allocation10], 512
    $region49: #{tpu_custom_call.1} parent=1 // pred_fallthru
      _
    // Predicated region
    $region50: #{tpu_custom_call.1} parent=1 // pred_check
      _
    $region51: #{tpu_custom_call.1} parent=1 // pred_check_branch
      %129 = sbr.rel (0) target = $region53
    $region52: #{tpu_custom_call.1} parent=1 // pred_region
      %131 = dma.done [#allocation10], 256
    $region53: #{tpu_custom_call.1} parent=1 // pred_fallthru
      _
    // Predicated region
    $region54: #{tpu_custom_call.1} parent=1 // pred_check
      _
    $region55: #{tpu_custom_call.1} parent=1 // pred_check_branch
      %133 = sbr.rel (0) target = $region57
    $region56: #{tpu_custom_call.1} parent=1 // pred_region
      %135 = dma.done [#allocation13], 256
    $region57: #{tpu_custom_call.1} parent=1 // pred_fallthru
      _
    // Predicated region
    $region58: #{tpu_custom_call.1} parent=1 // pred_check
      _
    $region59: #{tpu_custom_call.1} parent=1 // pred_check_branch
      %137 = sbr.rel (0) target = $region61
    $region60: #{tpu_custom_call.1} parent=1 // pred_region
      %139 = dma.done [#allocation13], 256
    $region61: #{tpu_custom_call.1} parent=1 // pred_fallthru
      _
    %p141 = scmp.eq.s32.totalorder 0, 0
    // Predicated region
    $region62: #{tpu_custom_call.1} parent=1 // pred_check
      %p142 = pneg %p141
    $region63: #{tpu_custom_call.1} parent=1 // pred_check_branch
      %144 = sbr.rel (%p142) target = $region65
    $region64: #{tpu_custom_call.1} parent=1 // pred_region
      %vm145 = vcmask 261120
      %146 = vst.msk [vmem:[#allocation2] sm:$0xff] %vm145, 0.0
    $region65: #{tpu_custom_call.1} parent=1 // pred_fallthru
      _
    %v147 = vld [vmem:[#allocation11] sm:$0xf]
    %v148 = vld [vmem:[#allocation11 + $0x4] sm:$0xf]
    %v149 = vld [vmem:[#allocation11 + $0x8] sm:$0xf]
    %v150 = vld [vmem:[#allocation11 + $0xc] sm:$0xf]
    %v151 = vld [vmem:[#allocation12] sm:$0xf]
    %v152 = vld [vmem:[#allocation12 + $0x4] sm:$0xf]
    %v153 = vld [vmem:[#allocation12 + $0x8] sm:$0xf]
    %v154 = vld [vmem:[#allocation12 + $0xc] sm:$0xf]
    %v155 = vld [vmem:[#allocation14] sm:$0xf]
    %v156 = vld [vmem:[#allocation14 + $0x4] sm:$0xf]
    %v157 = vld [vmem:[#allocation14 + $0x8] sm:$0xf]
    %v158 = vld [vmem:[#allocation14 + $0xc] sm:$0xf]
    %v159 = vld [vmem:[%s7] sm:$0x1]
    %v160 = vld [vmem:[#allocation2] sm:$0xff]
    %v161 = vld [vmem:[#allocation3] sm:$0xff]
    %v162 = vpack.c.bf16 %v160, %v160
    %v167 = vunpack.c.l.b16 %v147
    %v168 = vunpack.c.l.b16 %v148
    %v169 = vunpack.c.l.b16 %v149
    %v170 = vunpack.c.l.b16 %v150
    %v171 = vpack.c.b16 %v168, %v167
    %v172 = vpack.c.b16 %v170, %v169
    %vm175 = vcmask 261120
    %v177 = vsel %vm175, %v162, 0
    %179 = vmatpush.bf16.msra.mxu0 0
    %180 = vmatpush.bf16.msra.mxu0 0
    %181 = vmatpush.bf16.msra.mxu0 0
    %182 = vmatpush.bf16.msra.mxu0 0
    %183 = vmatpush.bf16.msra.mxu0 0
    %184 = vmatpush.bf16.msra.mxu0 0
    %185 = vmatpush.bf16.msra.mxu0 %v172
    %186 = vmatpush.bf16.msra.mxu0 %v171
    %187 = vmatmul.bf16.gmra.mxu0 %v177
    %v188 = vpop.f32.mrf.mxu0
    %v189 = vadd.f32 0.0, %v188
    %v190 = vpop.f32.mrf.mxu0
    %191 = vdwg.mxu0
    %v196 = vunpack.c.l.b16 %v151
    %v197 = vunpack.c.l.b16 %v152
    %v198 = vunpack.c.l.b16 %v153
    %v199 = vunpack.c.l.b16 %v154
    %v200 = vpack.c.b16 %v197, %v196
    %v201 = vpack.c.b16 %v199, %v198
    %204 = vmatpush.bf16.msra.mxu0 0
    %205 = vmatpush.bf16.msra.mxu0 0
    %206 = vmatpush.bf16.msra.mxu0 0
    %207 = vmatpush.bf16.msra.mxu0 0
    %208 = vmatpush.bf16.msra.mxu0 0
    %209 = vmatpush.bf16.msra.mxu0 0
    %210 = vmatpush.bf16.msra.mxu0 %v201
    %211 = vmatpush.bf16.msra.mxu0 %v200
    %212 = vmatmul.bf16.gmra.mxu0 %v177
    %v213 = vpop.f32.mrf.mxu0
    %v214 = vadd.f32 0.0, %v213
    %v215 = vpop.f32.mrf.mxu0
    %216 = vdwg.mxu0
    %v217 = vld [vmem:[#allocation6] sm:$0x1]
    %v218 = vld [vmem:[#allocation6 + $0x4] sm:$0x1]
    %v219 = vld [vmem:[#allocation6 + $0x8] sm:$0x1]
    %v220 = vld [vmem:[#allocation6 + $0xc] sm:$0x1]
    %v221 = vld [vmem:[#allocation6 + $0x10] sm:$0x1]
    %v222 = vld [vmem:[#allocation6 + $0x14] sm:$0x1]
    %v223 = vld [vmem:[#allocation6 + $0x18] sm:$0x1]
    %v224 = vld [vmem:[#allocation6 + $0x1c] sm:$0x1]
    %v225 = vunpack.c.l.bf16 %v217
    %v226 = vunpack.c.l.bf16 %v218
    %v227 = vunpack.c.l.bf16 %v219
    %v228 = vunpack.c.l.bf16 %v220
    %v229 = vunpack.c.l.bf16 %v221
    %v230 = vunpack.c.l.bf16 %v222
    %v231 = vunpack.c.l.bf16 %v223
    %v232 = vunpack.c.l.bf16 %v224
    %v234 = vrot.slane %v189, 1
    %v235 = vrot.slane %v189, 2
    %v236 = vrot.slane %v189, 3
    %v237 = vrot.slane %v189, 4
    %v238 = vrot.slane %v189, 5
    %v239 = vrot.slane %v189, 6
    %v240 = vrot.slane %v189, 7
    %v249 = vadd.f32 %v225, %v189
    %v250 = vadd.f32 %v226, %v234
    %v251 = vadd.f32 %v227, %v235
    %v252 = vadd.f32 %v228, %v236
    %v253 = vadd.f32 %v229, %v237
    %v254 = vadd.f32 %v230, %v238
    %v255 = vadd.f32 %v231, %v239
    %v256 = vadd.f32 %v232, %v240
    %v257 = vxor.u32 %v249, 2147483648
    %v258 = vxor.u32 %v250, 2147483648
    %v259 = vxor.u32 %v251, 2147483648
    %v260 = vxor.u32 %v252, 2147483648
    %v261 = vxor.u32 %v253, 2147483648
    %v262 = vxor.u32 %v254, 2147483648
    %v263 = vxor.u32 %v255, 2147483648
    %v264 = vxor.u32 %v256, 2147483648
    %v265 = vmul.f32 %v257, 1.442695
    %v266 = vpow.pop %v265
    %v267 = vmul.f32 %v258, 1.442695
    %v268 = vpow.pop %v267
    %v269 = vmul.f32 %v259, 1.442695
    %v270 = vpow.pop %v269
    %v271 = vmul.f32 %v260, 1.442695
    %v272 = vpow.pop %v271
    %v273 = vmul.f32 %v261, 1.442695
    %v274 = vpow.pop %v273
    %v275 = vmul.f32 %v262, 1.442695
    %v276 = vpow.pop %v275
    %v277 = vmul.f32 %v263, 1.442695
    %v278 = vpow.pop %v277
    %v279 = vmul.f32 %v264, 1.442695
    %v280 = vpow.pop %v279
    %v281 = vadd.f32 %v266, 1.0
    %v282 = vadd.f32 %v268, 1.0
    %v283 = vadd.f32 %v270, 1.0
    %v284 = vadd.f32 %v272, 1.0
    %v285 = vadd.f32 %v274, 1.0
    %v286 = vadd.f32 %v276, 1.0
    %v287 = vadd.f32 %v278, 1.0
    %v288 = vadd.f32 %v280, 1.0
    %v289 = vrcp.pop %v281
    %v290 = vmul.f32 %v281, %v289
    %v291 = vsub.f32 1.0, %v290
    %v292 = vmul.f32 %v289, %v291
    %v293 = vadd.f32 %v289, %v292
    %vm294 = vweird.f32 %v281
    %vm295 = vweird.f32 %v289
    %vm296 = vmor %vm294, %vm295
    %v297 = vsel %vm296, %v289, %v293
    %v298 = vand.u32 2147483647, %v281
    %vm299 = vcmp.eq.f32.partialorder %v298, 8.507059e+37
    %v300 = vand.u32 %v281, 2147483648
    %v301 = vor.u32 1.1754944e-38, %v300
    %v302 = vsel %vm299, %v301, %v297
    %v303 = vmul.f32 1.0, %v302
    %v304 = vrcp.pop %v282
    %v305 = vmul.f32 %v282, %v304
    %v306 = vsub.f32 1.0, %v305
    %v307 = vmul.f32 %v304, %v306
    %v308 = vadd.f32 %v304, %v307
    %vm309 = vweird.f32 %v282
    %vm310 = vweird.f32 %v304
    %vm311 = vmor %vm309, %vm310
    %v312 = vsel %vm311, %v304, %v308
    %v313 = vand.u32 2147483647, %v282
    %vm314 = vcmp.eq.f32.partialorder %v313, 8.507059e+37
    %v315 = vand.u32 %v282, 2147483648
    %v316 = vor.u32 1.1754944e-38, %v315
    %v317 = vsel %vm314, %v316, %v312
    %v318 = vmul.f32 1.0, %v317
    %v319 = vrcp.pop %v283
    %v320 = vmul.f32 %v283, %v319
    %v321 = vsub.f32 1.0, %v320
    %v322 = vmul.f32 %v319, %v321
    %v323 = vadd.f32 %v319, %v322
    %vm324 = vweird.f32 %v283
    %vm325 = vweird.f32 %v319
    %vm326 = vmor %vm324, %vm325
    %v327 = vsel %vm326, %v319, %v323
    %v328 = vand.u32 2147483647, %v283
    %vm329 = vcmp.eq.f32.partialorder %v328, 8.507059e+37
    %v330 = vand.u32 %v283, 2147483648
    %v331 = vor.u32 1.1754944e-38, %v330
    %v332 = vsel %vm329, %v331, %v327
    %v333 = vmul.f32 1.0, %v332
    %v334 = vrcp.pop %v284
    %v335 = vmul.f32 %v284, %v334
    %v336 = vsub.f32 1.0, %v335
    %v337 = vmul.f32 %v334, %v336
    %v338 = vadd.f32 %v334, %v337
    %vm339 = vweird.f32 %v284
    %vm340 = vweird.f32 %v334
    %vm341 = vmor %vm339, %vm340
    %v342 = vsel %vm341, %v334, %v338
    %v343 = vand.u32 2147483647, %v284
    %vm344 = vcmp.eq.f32.partialorder %v343, 8.507059e+37
    %v345 = vand.u32 %v284, 2147483648
    %v346 = vor.u32 1.1754944e-38, %v345
    %v347 = vsel %vm344, %v346, %v342
    %v348 = vmul.f32 1.0, %v347
    %v349 = vrcp.pop %v285
    %v350 = vmul.f32 %v285, %v349
    %v351 = vsub.f32 1.0, %v350
    %v352 = vmul.f32 %v349, %v351
    %v353 = vadd.f32 %v349, %v352
    %vm354 = vweird.f32 %v285
    %vm355 = vweird.f32 %v349
    %vm356 = vmor %vm354, %vm355
    %v357 = vsel %vm356, %v349, %v353
    %v358 = vand.u32 2147483647, %v285
    %vm359 = vcmp.eq.f32.partialorder %v358, 8.507059e+37
    %v360 = vand.u32 %v285, 2147483648
    %v361 = vor.u32 1.1754944e-38, %v360
    %v362 = vsel %vm359, %v361, %v357
    %v363 = vmul.f32 1.0, %v362
    %v364 = vrcp.pop %v286
    %v365 = vmul.f32 %v286, %v364
    %v366 = vsub.f32 1.0, %v365
    %v367 = vmul.f32 %v364, %v366
    %v368 = vadd.f32 %v364, %v367
    %vm369 = vweird.f32 %v286
    %vm370 = vweird.f32 %v364
    %vm371 = vmor %vm369, %vm370
    %v372 = vsel %vm371, %v364, %v368
    %v373 = vand.u32 2147483647, %v286
    %vm374 = vcmp.eq.f32.partialorder %v373, 8.507059e+37
    %v375 = vand.u32 %v286, 2147483648
    %v376 = vor.u32 1.1754944e-38, %v375
    %v377 = vsel %vm374, %v376, %v372
    %v378 = vmul.f32 1.0, %v377
    %v379 = vrcp.pop %v287
    %v380 = vmul.f32 %v287, %v379
    %v381 = vsub.f32 1.0, %v380
    %v382 = vmul.f32 %v379, %v381
    %v383 = vadd.f32 %v379, %v382
    %vm384 = vweird.f32 %v287
    %vm385 = vweird.f32 %v379
    %vm386 = vmor %vm384, %vm385
    %v387 = vsel %vm386, %v379, %v383
    %v388 = vand.u32 2147483647, %v287
    %vm389 = vcmp.eq.f32.partialorder %v388, 8.507059e+37
    %v390 = vand.u32 %v287, 2147483648
    %v391 = vor.u32 1.1754944e-38, %v390
    %v392 = vsel %vm389, %v391, %v387
    %v393 = vmul.f32 1.0, %v392
    %v394 = vrcp.pop %v288
    %v395 = vmul.f32 %v288, %v394
    %v396 = vsub.f32 1.0, %v395
    %v397 = vmul.f32 %v394, %v396
    %v398 = vadd.f32 %v394, %v397
    %vm399 = vweird.f32 %v288
    %vm400 = vweird.f32 %v394
    %vm401 = vmor %vm399, %vm400
    %v402 = vsel %vm401, %v394, %v398
    %v403 = vand.u32 2147483647, %v288
    %vm404 = vcmp.eq.f32.partialorder %v403, 8.507059e+37
    %v405 = vand.u32 %v288, 2147483648
    %v406 = vor.u32 1.1754944e-38, %v405
    %v407 = vsel %vm404, %v406, %v402
    %v408 = vmul.f32 1.0, %v407
    %v409 = vld [vmem:[#allocation8] sm:$0x1]
    %v410 = vld [vmem:[#allocation8 + $0x4] sm:$0x1]
    %v411 = vld [vmem:[#allocation8 + $0x8] sm:$0x1]
    %v412 = vld [vmem:[#allocation8 + $0xc] sm:$0x1]
    %v413 = vld [vmem:[#allocation8 + $0x10] sm:$0x1]
    %v414 = vld [vmem:[#allocation8 + $0x14] sm:$0x1]
    %v415 = vld [vmem:[#allocation8 + $0x18] sm:$0x1]
    %v416 = vld [vmem:[#allocation8 + $0x1c] sm:$0x1]
    %v417 = vunpack.c.l.bf16 %v409
    %v418 = vunpack.c.l.bf16 %v410
    %v419 = vunpack.c.l.bf16 %v411
    %v420 = vunpack.c.l.bf16 %v412
    %v421 = vunpack.c.l.bf16 %v413
    %v422 = vunpack.c.l.bf16 %v414
    %v423 = vunpack.c.l.bf16 %v415
    %v424 = vunpack.c.l.bf16 %v416
    %v426 = vrot.slane %v214, 1
    %v427 = vrot.slane %v214, 2
    %v428 = vrot.slane %v214, 3
    %v429 = vrot.slane %v214, 4
    %v430 = vrot.slane %v214, 5
    %v431 = vrot.slane %v214, 6
    %v432 = vrot.slane %v214, 7
    %v441 = vadd.f32 %v417, %v214
    %v442 = vadd.f32 %v418, %v426
    %v443 = vadd.f32 %v419, %v427
    %v444 = vadd.f32 %v420, %v428
    %v445 = vadd.f32 %v421, %v429
    %v446 = vadd.f32 %v422, %v430
    %v447 = vadd.f32 %v423, %v431
    %v448 = vadd.f32 %v424, %v432
    %v449 = vxor.u32 %v441, 2147483648
    %v450 = vxor.u32 %v442, 2147483648
    %v451 = vxor.u32 %v443, 2147483648
    %v452 = vxor.u32 %v444, 2147483648
    %v453 = vxor.u32 %v445, 2147483648
    %v454 = vxor.u32 %v446, 2147483648
    %v455 = vxor.u32 %v447, 2147483648
    %v456 = vxor.u32 %v448, 2147483648
    %v457 = vmul.f32 %v449, 1.442695
    %v458 = vpow.pop %v457
    %v459 = vmul.f32 %v450, 1.442695
    %v460 = vpow.pop %v459
    %v461 = vmul.f32 %v451, 1.442695
    %v462 = vpow.pop %v461
    %v463 = vmul.f32 %v452, 1.442695
    %v464 = vpow.pop %v463
    %v465 = vmul.f32 %v453, 1.442695
    %v466 = vpow.pop %v465
    %v467 = vmul.f32 %v454, 1.442695
    %v468 = vpow.pop %v467
    %v469 = vmul.f32 %v455, 1.442695
    %v470 = vpow.pop %v469
    %v471 = vmul.f32 %v456, 1.442695
    %v472 = vpow.pop %v471
    %v473 = vadd.f32 %v458, 1.0
    %v474 = vadd.f32 %v460, 1.0
    %v475 = vadd.f32 %v462, 1.0
    %v476 = vadd.f32 %v464, 1.0
    %v477 = vadd.f32 %v466, 1.0
    %v478 = vadd.f32 %v468, 1.0
    %v479 = vadd.f32 %v470, 1.0
    %v480 = vadd.f32 %v472, 1.0
    %v481 = vrcp.pop %v473
    %v482 = vmul.f32 %v473, %v481
    %v483 = vsub.f32 1.0, %v482
    %v484 = vmul.f32 %v481, %v483
    %v485 = vadd.f32 %v481, %v484
    %vm486 = vweird.f32 %v473
    %vm487 = vweird.f32 %v481
    %vm488 = vmor %vm486, %vm487
    %v489 = vsel %vm488, %v481, %v485
    %v490 = vand.u32 2147483647, %v473
    %vm491 = vcmp.eq.f32.partialorder %v490, 8.507059e+37
    %v492 = vand.u32 %v473, 2147483648
    %v493 = vor.u32 1.1754944e-38, %v492
    %v494 = vsel %vm491, %v493, %v489
    %v495 = vmul.f32 1.0, %v494
    %v496 = vrcp.pop %v474
    %v497 = vmul.f32 %v474, %v496
    %v498 = vsub.f32 1.0, %v497
    %v499 = vmul.f32 %v496, %v498
    %v500 = vadd.f32 %v496, %v499
    %vm501 = vweird.f32 %v474
    %vm502 = vweird.f32 %v496
    %vm503 = vmor %vm501, %vm502
    %v504 = vsel %vm503, %v496, %v500
    %v505 = vand.u32 2147483647, %v474
    %vm506 = vcmp.eq.f32.partialorder %v505, 8.507059e+37
    %v507 = vand.u32 %v474, 2147483648
    %v508 = vor.u32 1.1754944e-38, %v507
    %v509 = vsel %vm506, %v508, %v504
    %v510 = vmul.f32 1.0, %v509
    %v511 = vrcp.pop %v475
    %v512 = vmul.f32 %v475, %v511
    %v513 = vsub.f32 1.0, %v512
    %v514 = vmul.f32 %v511, %v513
    %v515 = vadd.f32 %v511, %v514
    %vm516 = vweird.f32 %v475
    %vm517 = vweird.f32 %v511
    %vm518 = vmor %vm516, %vm517
    %v519 = vsel %vm518, %v511, %v515
    %v520 = vand.u32 2147483647, %v475
    %vm521 = vcmp.eq.f32.partialorder %v520, 8.507059e+37
    %v522 = vand.u32 %v475, 2147483648
    %v523 = vor.u32 1.1754944e-38, %v522
    %v524 = vsel %vm521, %v523, %v519
    %v525 = vmul.f32 1.0, %v524
    %v526 = vrcp.pop %v476
    %v527 = vmul.f32 %v476, %v526
    %v528 = vsub.f32 1.0, %v527
    %v529 = vmul.f32 %v526, %v528
    %v530 = vadd.f32 %v526, %v529
    %vm531 = vweird.f32 %v476
    %vm532 = vweird.f32 %v526
    %vm533 = vmor %vm531, %vm532
    %v534 = vsel %vm533, %v526, %v530
    %v535 = vand.u32 2147483647, %v476
    %vm536 = vcmp.eq.f32.partialorder %v535, 8.507059e+37
    %v537 = vand.u32 %v476, 2147483648
    %v538 = vor.u32 1.1754944e-38, %v537
    %v539 = vsel %vm536, %v538, %v534
    %v540 = vmul.f32 1.0, %v539
    %v541 = vrcp.pop %v477
    %v542 = vmul.f32 %v477, %v541
    %v543 = vsub.f32 1.0, %v542
    %v544 = vmul.f32 %v541, %v543
    %v545 = vadd.f32 %v541, %v544
    %vm546 = vweird.f32 %v477
    %vm547 = vweird.f32 %v541
    %vm548 = vmor %vm546, %vm547
    %v549 = vsel %vm548, %v541, %v545
    %v550 = vand.u32 2147483647, %v477
    %vm551 = vcmp.eq.f32.partialorder %v550, 8.507059e+37
    %v552 = vand.u32 %v477, 2147483648
    %v553 = vor.u32 1.1754944e-38, %v552
    %v554 = vsel %vm551, %v553, %v549
    %v555 = vmul.f32 1.0, %v554
    %v556 = vrcp.pop %v478
    %v557 = vmul.f32 %v478, %v556
    %v558 = vsub.f32 1.0, %v557
    %v559 = vmul.f32 %v556, %v558
    %v560 = vadd.f32 %v556, %v559
    %vm561 = vweird.f32 %v478
    %vm562 = vweird.f32 %v556
    %vm563 = vmor %vm561, %vm562
    %v564 = vsel %vm563, %v556, %v560
    %v565 = vand.u32 2147483647, %v478
    %vm566 = vcmp.eq.f32.partialorder %v565, 8.507059e+37
    %v567 = vand.u32 %v478, 2147483648
    %v568 = vor.u32 1.1754944e-38, %v567
    %v569 = vsel %vm566, %v568, %v564
    %v570 = vmul.f32 1.0, %v569
    %v571 = vrcp.pop %v479
    %v572 = vmul.f32 %v479, %v571
    %v573 = vsub.f32 1.0, %v572
    %v574 = vmul.f32 %v571, %v573
    %v575 = vadd.f32 %v571, %v574
    %vm576 = vweird.f32 %v479
    %vm577 = vweird.f32 %v571
    %vm578 = vmor %vm576, %vm577
    %v579 = vsel %vm578, %v571, %v575
    %v580 = vand.u32 2147483647, %v479
    %vm581 = vcmp.eq.f32.partialorder %v580, 8.507059e+37
    %v582 = vand.u32 %v479, 2147483648
    %v583 = vor.u32 1.1754944e-38, %v582
    %v584 = vsel %vm581, %v583, %v579
    %v585 = vmul.f32 1.0, %v584
    %v586 = vrcp.pop %v480
    %v587 = vmul.f32 %v480, %v586
    %v588 = vsub.f32 1.0, %v587
    %v589 = vmul.f32 %v586, %v588
    %v590 = vadd.f32 %v586, %v589
    %vm591 = vweird.f32 %v480
    %vm592 = vweird.f32 %v586
    %vm593 = vmor %vm591, %vm592
    %v594 = vsel %vm593, %v586, %v590
    %v595 = vand.u32 2147483647, %v480
    %vm596 = vcmp.eq.f32.partialorder %v595, 8.507059e+37
    %v597 = vand.u32 %v480, 2147483648
    %v598 = vor.u32 1.1754944e-38, %v597
    %v599 = vsel %vm596, %v598, %v594
    %v600 = vmul.f32 1.0, %v599
    %v601 = vld [vmem:[#allocation9] sm:$0x1]
    %v602 = vld [vmem:[#allocation9 + $0x4] sm:$0x1]
    %v603 = vld [vmem:[#allocation9 + $0x8] sm:$0x1]
    %v604 = vld [vmem:[#allocation9 + $0xc] sm:$0x1]
    %v605 = vld [vmem:[#allocation9 + $0x10] sm:$0x1]
    %v606 = vld [vmem:[#allocation9 + $0x14] sm:$0x1]
    %v607 = vld [vmem:[#allocation9 + $0x18] sm:$0x1]
    %v608 = vld [vmem:[#allocation9 + $0x1c] sm:$0x1]
    %v609 = vunpack.c.l.bf16 %v601
    %v610 = vunpack.c.l.bf16 %v602
    %v611 = vunpack.c.l.bf16 %v603
    %v612 = vunpack.c.l.bf16 %v604
    %v613 = vunpack.c.l.bf16 %v605
    %v614 = vunpack.c.l.bf16 %v606
    %v615 = vunpack.c.l.bf16 %v607
    %v616 = vunpack.c.l.bf16 %v608
    %v618 = vperm.slane %v159, 0
    %v624 = vunpack.c.l.b16 %v155
    %v625 = vunpack.c.l.b16 %v156
    %v626 = vunpack.c.l.b16 %v157
    %v627 = vunpack.c.l.b16 %v158
    %v628 = vpack.c.b16 %v625, %v624
    %v629 = vpack.c.b16 %v627, %v626
    %632 = vmatpush.bf16.msra.mxu0 0
    %633 = vmatpush.bf16.msra.mxu0 0
    %634 = vmatpush.bf16.msra.mxu0 0
    %635 = vmatpush.bf16.msra.mxu0 0
    %636 = vmatpush.bf16.msra.mxu0 0
    %637 = vmatpush.bf16.msra.mxu0 0
    %638 = vmatpush.bf16.msra.mxu0 %v629
    %639 = vmatpush.bf16.msra.mxu0 %v628
    %640 = vmatmul.bf16.gmra.mxu0 %v177
    %v641 = vpop.f32.mrf.mxu0
    %v642 = vadd.f32 %v618, %v641
    %v643 = vpop.f32.mrf.mxu0
    %644 = vdwg.mxu0
    %v646 = vrot.slane %v642, 1
    %v647 = vrot.slane %v642, 2
    %v648 = vrot.slane %v642, 3
    %v649 = vrot.slane %v642, 4
    %v650 = vrot.slane %v642, 5
    %v651 = vrot.slane %v642, 6
    %v652 = vrot.slane %v642, 7
    %v661 = vmul.f32 %v303, %v642
    %v662 = vmul.f32 %v318, %v646
    %v663 = vmul.f32 %v333, %v647
    %v664 = vmul.f32 %v348, %v648
    %v665 = vmul.f32 %v363, %v649
    %v666 = vmul.f32 %v378, %v650
    %v667 = vmul.f32 %v393, %v651
    %v668 = vmul.f32 %v408, %v652
    %v669 = vadd.f32 %v609, %v661
    %v670 = vadd.f32 %v610, %v662
    %v671 = vadd.f32 %v611, %v663
    %v672 = vadd.f32 %v612, %v664
    %v673 = vadd.f32 %v613, %v665
    %v674 = vadd.f32 %v614, %v666
    %v675 = vadd.f32 %v615, %v667
    %v676 = vadd.f32 %v616, %v668
    %v677 = vtanh.pop %v669
    %v678 = vtanh.pop %v670
    %v679 = vtanh.pop %v671
    %v680 = vtanh.pop %v672
    %v681 = vtanh.pop %v673
    %v682 = vtanh.pop %v674
    %v683 = vtanh.pop %v675
    %v684 = vtanh.pop %v676
    %v693 = vrot.slane %v678, 7
    %vm694 = vcmask 1041409
    %v695 = vsel %vm694, %v693, %v677
    %v696 = vrot.slane %v679, 6
    %vm697 = vcmask 1042434
    %v698 = vsel %vm697, %v696, %v695
    %v699 = vrot.slane %v680, 5
    %vm700 = vcmask 1043459
    %v701 = vsel %vm700, %v699, %v698
    %v702 = vrot.slane %v681, 4
    %vm703 = vcmask 1044484
    %v704 = vsel %vm703, %v702, %v701
    %v705 = vrot.slane %v682, 3
    %vm706 = vcmask 1045509
    %v707 = vsel %vm706, %v705, %v704
    %v708 = vrot.slane %v683, 2
    %vm709 = vcmask 1046534
    %v710 = vsel %vm709, %v708, %v707
    %v711 = vrot.slane %v684, 1
    %vm712 = vcmask 1047559
    %v713 = vsel %vm712, %v711, %v710
    %v715 = vsub.f32 %v160, %v713
    %v717 = vrot.slane %v715, 1
    %v718 = vrot.slane %v715, 2
    %v719 = vrot.slane %v715, 3
    %v720 = vrot.slane %v715, 4
    %v721 = vrot.slane %v715, 5
    %v722 = vrot.slane %v715, 6
    %v723 = vrot.slane %v715, 7
    %v732 = vmul.f32 %v495, %v715
    %v733 = vmul.f32 %v510, %v717
    %v734 = vmul.f32 %v525, %v718
    %v735 = vmul.f32 %v540, %v719
    %v736 = vmul.f32 %v555, %v720
    %v737 = vmul.f32 %v570, %v721
    %v738 = vmul.f32 %v585, %v722
    %v739 = vmul.f32 %v600, %v723
    %v740 = vadd.f32 %v677, %v732
    %v741 = vadd.f32 %v678, %v733
    %v742 = vadd.f32 %v679, %v734
    %v743 = vadd.f32 %v680, %v735
    %v744 = vadd.f32 %v681, %v736
    %v745 = vadd.f32 %v682, %v737
    %v746 = vadd.f32 %v683, %v738
    %v747 = vadd.f32 %v684, %v739
    %v749 = vrot.slane %v160, 1
    %v750 = vrot.slane %v160, 2
    %v751 = vrot.slane %v160, 3
    %v752 = vrot.slane %v160, 4
    %v753 = vrot.slane %v160, 5
    %v754 = vrot.slane %v160, 6
    %v755 = vrot.slane %v160, 7
    %v764 = vsub.f32 %v740, %v160
    %v765 = vsub.f32 %v741, %v749
    %v766 = vsub.f32 %v742, %v750
    %v767 = vsub.f32 %v743, %v751
    %v768 = vsub.f32 %v744, %v752
    %v769 = vsub.f32 %v745, %v753
    %v770 = vsub.f32 %v746, %v754
    %v771 = vsub.f32 %v747, %v755
    %773 = vset.pattern.permute.xlu0 0
    %774 = vperm.xlu0 %773, %v161
    %v775 = vpop.permute.xlu0 %774
    %v785 = vrot.slane %v765, 7
    %v786 = vsel %vm694, %v785, %v764
    %v787 = vrot.slane %v766, 6
    %v788 = vsel %vm697, %v787, %v786
    %v789 = vrot.slane %v767, 5
    %v790 = vsel %vm700, %v789, %v788
    %v791 = vrot.slane %v768, 4
    %v792 = vsel %vm703, %v791, %v790
    %v793 = vrot.slane %v769, 3
    %v794 = vsel %vm706, %v793, %v792
    %v795 = vrot.slane %v770, 2
    %v796 = vsel %vm709, %v795, %v794
    %v797 = vrot.slane %v771, 1
    %v798 = vsel %vm712, %v797, %v796
    %v800 = vmul.f32 %v775, %v798
    %v801 = vadd.f32 %v160, %v800
    %v803 = vrot.slane %v801, 1
    %v804 = vrot.slane %v801, 2
    %v805 = vrot.slane %v801, 3
    %v806 = vrot.slane %v801, 4
    %v807 = vrot.slane %v801, 5
    %v808 = vrot.slane %v801, 6
    %v809 = vrot.slane %v801, 7
    %vm817 = vcmask 253952
    %818 = vst.msk [vmem:[#allocation15] sm:$0x1] %vm817, %v801
    %819 = vst.msk [vmem:[#allocation15 + $0x8] sm:$0x1] %vm817, %v803
    %820 = vst.msk [vmem:[#allocation15 + $0x10] sm:$0x1] %vm817, %v804
    %821 = vst.msk [vmem:[#allocation15 + $0x18] sm:$0x1] %vm817, %v805
    %822 = vst.msk [vmem:[#allocation15 + $0x20] sm:$0x1] %vm817, %v806
    %823 = vst.msk [vmem:[#allocation15 + $0x28] sm:$0x1] %vm817, %v807
    %824 = vst.msk [vmem:[#allocation15 + $0x30] sm:$0x1] %vm817, %v808
    %825 = vst.msk [vmem:[#allocation15 + $0x38] sm:$0x1] %vm817, %v809
    %v826 = vld [vmem:[#allocation3] sm:$0xff]
    %v827 = vpack.c.bf16 %v801, %v801
    %v829 = vsel %vm175, %v827, 0
    %831 = vmatpush.bf16.msra.mxu0 0
    %832 = vmatpush.bf16.msra.mxu0 0
    %833 = vmatpush.bf16.msra.mxu0 0
    %834 = vmatpush.bf16.msra.mxu0 0
    %835 = vmatpush.bf16.msra.mxu0 0
    %836 = vmatpush.bf16.msra.mxu0 0
    %837 = vmatpush.bf16.msra.mxu0 %v172
    %838 = vmatpush.bf16.msra.mxu0 %v171
    %839 = vmatmul.bf16.gmra.mxu0 %v829
    %v840 = vpop.f32.mrf.mxu0
    %v841 = vadd.f32 0.0, %v840
    %v842 = vpop.f32.mrf.mxu0
    %843 = vdwg.mxu0
    %844 = vmatpush.bf16.msra.mxu0 0
    %845 = vmatpush.bf16.msra.mxu0 0
    %846 = vmatpush.bf16.msra.mxu0 0
    %847 = vmatpush.bf16.msra.mxu0 0
    %848 = vmatpush.bf16.msra.mxu0 0
    %849 = vmatpush.bf16.msra.mxu0 0
    %850 = vmatpush.bf16.msra.mxu0 %v201
    %851 = vmatpush.bf16.msra.mxu0 %v200
    %852 = vmatmul.bf16.gmra.mxu0 %v829
    %v853 = vpop.f32.mrf.mxu0
    %v854 = vadd.f32 0.0, %v853
    %v855 = vpop.f32.mrf.mxu0
    %856 = vdwg.mxu0
    %v857 = vld [vmem:[#allocation6] sm:$0x1]
    %v858 = vld [vmem:[#allocation6 + $0x4] sm:$0x1]
    %v859 = vld [vmem:[#allocation6 + $0x8] sm:$0x1]
    %v860 = vld [vmem:[#allocation6 + $0xc] sm:$0x1]
    %v861 = vld [vmem:[#allocation6 + $0x10] sm:$0x1]
    %v862 = vld [vmem:[#allocation6 + $0x14] sm:$0x1]
    %v863 = vld [vmem:[#allocation6 + $0x18] sm:$0x1]
    %v864 = vld [vmem:[#allocation6 + $0x1c] sm:$0x1]
    %v865 = vunpack.c.l.bf16 %v857
    %v866 = vunpack.c.l.bf16 %v858
    %v867 = vunpack.c.l.bf16 %v859
    %v868 = vunpack.c.l.bf16 %v860
    %v869 = vunpack.c.l.bf16 %v861
    %v870 = vunpack.c.l.bf16 %v862
    %v871 = vunpack.c.l.bf16 %v863
    %v872 = vunpack.c.l.bf16 %v864
    %v874 = vrot.slane %v841, 7
    %v875 = vrot.slane %v841, 1
    %v876 = vrot.slane %v841, 2
    %v877 = vrot.slane %v841, 3
    %v878 = vrot.slane %v841, 4
    %v879 = vrot.slane %v841, 5
    %v880 = vrot.slane %v841, 6
    %v889 = vadd.f32 %v865, %v874
    %v890 = vadd.f32 %v866, %v841
    %v891 = vadd.f32 %v867, %v875
    %v892 = vadd.f32 %v868, %v876
    %v893 = vadd.f32 %v869, %v877
    %v894 = vadd.f32 %v870, %v878
    %v895 = vadd.f32 %v871, %v879
    %v896 = vadd.f32 %v872, %v880
    %v897 = vxor.u32 %v889, 2147483648
    %v898 = vxor.u32 %v890, 2147483648
    %v899 = vxor.u32 %v891, 2147483648
    %v900 = vxor.u32 %v892, 2147483648
    %v901 = vxor.u32 %v893, 2147483648
    %v902 = vxor.u32 %v894, 2147483648
    %v903 = vxor.u32 %v895, 2147483648
    %v904 = vxor.u32 %v896, 2147483648
    %v905 = vmul.f32 %v897, 1.442695
    %v906 = vpow.pop %v905
    %v907 = vmul.f32 %v898, 1.442695
    %v908 = vpow.pop %v907
    %v909 = vmul.f32 %v899, 1.442695
    %v910 = vpow.pop %v909
    %v911 = vmul.f32 %v900, 1.442695
    %v912 = vpow.pop %v911
    %v913 = vmul.f32 %v901, 1.442695
    %v914 = vpow.pop %v913
    %v915 = vmul.f32 %v902, 1.442695
    %v916 = vpow.pop %v915
    %v917 = vmul.f32 %v903, 1.442695
    %v918 = vpow.pop %v917
    %v919 = vmul.f32 %v904, 1.442695
    %v920 = vpow.pop %v919
    %v921 = vadd.f32 %v906, 1.0
    %v922 = vadd.f32 %v908, 1.0
    %v923 = vadd.f32 %v910, 1.0
    %v924 = vadd.f32 %v912, 1.0
    %v925 = vadd.f32 %v914, 1.0
    %v926 = vadd.f32 %v916, 1.0
    %v927 = vadd.f32 %v918, 1.0
    %v928 = vadd.f32 %v920, 1.0
    %v929 = vrcp.pop %v921
    %v930 = vmul.f32 %v921, %v929
    %v931 = vsub.f32 1.0, %v930
    %v932 = vmul.f32 %v929, %v931
    %v933 = vadd.f32 %v929, %v932
    %vm934 = vweird.f32 %v921
    %vm935 = vweird.f32 %v929
    %vm936 = vmor %vm934, %vm935
    %v937 = vsel %vm936, %v929, %v933
    %v938 = vand.u32 2147483647, %v921
    %vm939 = vcmp.eq.f32.partialorder %v938, 8.507059e+37
    %v940 = vand.u32 %v921, 2147483648
    %v941 = vor.u32 1.1754944e-38, %v940
    %v942 = vsel %vm939, %v941, %v937
    %v943 = vmul.f32 1.0, %v942
    %v944 = vrcp.pop %v922
    %v945 = vmul.f32 %v922, %v944
    %v946 = vsub.f32 1.0, %v945
    %v947 = vmul.f32 %v944, %v946
    %v948 = vadd.f32 %v944, %v947
    %vm949 = vweird.f32 %v922
    %vm950 = vweird.f32 %v944
    %vm951 = vmor %vm949, %vm950
    %v952 = vsel %vm951, %v944, %v948
    %v953 = vand.u32 2147483647, %v922
    %vm954 = vcmp.eq.f32.partialorder %v953, 8.507059e+37
    %v955 = vand.u32 %v922, 2147483648
    %v956 = vor.u32 1.1754944e-38, %v955
    %v957 = vsel %vm954, %v956, %v952
    %v958 = vmul.f32 1.0, %v957
    %v959 = vrcp.pop %v923
    %v960 = vmul.f32 %v923, %v959
    %v961 = vsub.f32 1.0, %v960
    %v962 = vmul.f32 %v959, %v961
    %v963 = vadd.f32 %v959, %v962
    %vm964 = vweird.f32 %v923
    %vm965 = vweird.f32 %v959
    %vm966 = vmor %vm964, %vm965
    %v967 = vsel %vm966, %v959, %v963
    %v968 = vand.u32 2147483647, %v923
    %vm969 = vcmp.eq.f32.partialorder %v968, 8.507059e+37
    %v970 = vand.u32 %v923, 2147483648
    %v971 = vor.u32 1.1754944e-38, %v970
    %v972 = vsel %vm969, %v971, %v967
    %v973 = vmul.f32 1.0, %v972
    %v974 = vrcp.pop %v924
    %v975 = vmul.f32 %v924, %v974
    %v976 = vsub.f32 1.0, %v975
    %v977 = vmul.f32 %v974, %v976
    %v978 = vadd.f32 %v974, %v977
    %vm979 = vweird.f32 %v924
    %vm980 = vweird.f32 %v974
    %vm981 = vmor %vm979, %vm980
    %v982 = vsel %vm981, %v974, %v978
    %v983 = vand.u32 2147483647, %v924
    %vm984 = vcmp.eq.f32.partialorder %v983, 8.507059e+37
    %v985 = vand.u32 %v924, 2147483648
    %v986 = vor.u32 1.1754944e-38, %v985
    %v987 = vsel %vm984, %v986, %v982
    %v988 = vmul.f32 1.0, %v987
    %v989 = vrcp.pop %v925
    %v990 = vmul.f32 %v925, %v989
    %v991 = vsub.f32 1.0, %v990
    %v992 = vmul.f32 %v989, %v991
    %v993 = vadd.f32 %v989, %v992
    %vm994 = vweird.f32 %v925
    %vm995 = vweird.f32 %v989
    %vm996 = vmor %vm994, %vm995
    %v997 = vsel %vm996, %v989, %v993
    %v998 = vand.u32 2147483647, %v925
    %vm999 = vcmp.eq.f32.partialorder %v998, 8.507059e+37
    %v1000 = vand.u32 %v925, 2147483648
    %v1001 = vor.u32 1.1754944e-38, %v1000
    %v1002 = vsel %vm999, %v1001, %v997
    %v1003 = vmul.f32 1.0, %v1002
    %v1004 = vrcp.pop %v926
    %v1005 = vmul.f32 %v926, %v1004
    %v1006 = vsub.f32 1.0, %v1005
    %v1007 = vmul.f32 %v1004, %v1006
    %v1008 = vadd.f32 %v1004, %v1007
    %vm1009 = vweird.f32 %v926
    %vm1010 = vweird.f32 %v1004
    %vm1011 = vmor %vm1009, %vm1010
    %v1012 = vsel %vm1011, %v1004, %v1008
    %v1013 = vand.u32 2147483647, %v926
    %vm1014 = vcmp.eq.f32.partialorder %v1013, 8.507059e+37
    %v1015 = vand.u32 %v926, 2147483648
    %v1016 = vor.u32 1.1754944e-38, %v1015
    %v1017 = vsel %vm1014, %v1016, %v1012
    %v1018 = vmul.f32 1.0, %v1017
    %v1019 = vrcp.pop %v927
    %v1020 = vmul.f32 %v927, %v1019
    %v1021 = vsub.f32 1.0, %v1020
    %v1022 = vmul.f32 %v1019, %v1021
    %v1023 = vadd.f32 %v1019, %v1022
    %vm1024 = vweird.f32 %v927
    %vm1025 = vweird.f32 %v1019
    %vm1026 = vmor %vm1024, %vm1025
    %v1027 = vsel %vm1026, %v1019, %v1023
    %v1028 = vand.u32 2147483647, %v927
    %vm1029 = vcmp.eq.f32.partialorder %v1028, 8.507059e+37
    %v1030 = vand.u32 %v927, 2147483648
    %v1031 = vor.u32 1.1754944e-38, %v1030
    %v1032 = vsel %vm1029, %v1031, %v1027
    %v1033 = vmul.f32 1.0, %v1032
    %v1034 = vrcp.pop %v928
    %v1035 = vmul.f32 %v928, %v1034
    %v1036 = vsub.f32 1.0, %v1035
    %v1037 = vmul.f32 %v1034, %v1036
    %v1038 = vadd.f32 %v1034, %v1037
    %vm1039 = vweird.f32 %v928
    %vm1040 = vweird.f32 %v1034
    %vm1041 = vmor %vm1039, %vm1040
    %v1042 = vsel %vm1041, %v1034, %v1038
    %v1043 = vand.u32 2147483647, %v928
    %vm1044 = vcmp.eq.f32.partialorder %v1043, 8.507059e+37
    %v1045 = vand.u32 %v928, 2147483648
    %v1046 = vor.u32 1.1754944e-38, %v1045
    %v1047 = vsel %vm1044, %v1046, %v1042
    %v1048 = vmul.f32 1.0, %v1047
    %v1049 = vld [vmem:[#allocation8] sm:$0x1]
    %v1050 = vld [vmem:[#allocation8 + $0x4] sm:$0x1]
    %v1051 = vld [vmem:[#allocation8 + $0x8] sm:$0x1]
    %v1052 = vld [vmem:[#allocation8 + $0xc] sm:$0x1]
    %v1053 = vld [vmem:[#allocation8 + $0x10] sm:$0x1]
    %v1054 = vld [vmem:[#allocation8 + $0x14] sm:$0x1]
    %v1055 = vld [vmem:[#allocation8 + $0x18] sm:$0x1]
    %v1056 = vld [vmem:[#allocation8 + $0x1c] sm:$0x1]
    %v1057 = vunpack.c.l.bf16 %v1049
    %v1058 = vunpack.c.l.bf16 %v1050
    %v1059 = vunpack.c.l.bf16 %v1051
    %v1060 = vunpack.c.l.bf16 %v1052
    %v1061 = vunpack.c.l.bf16 %v1053
    %v1062 = vunpack.c.l.bf16 %v1054
    %v1063 = vunpack.c.l.bf16 %v1055
    %v1064 = vunpack.c.l.bf16 %v1056
    %v1066 = vrot.slane %v854, 7
    %v1067 = vrot.slane %v854, 1
    %v1068 = vrot.slane %v854, 2
    %v1069 = vrot.slane %v854, 3
    %v1070 = vrot.slane %v854, 4
    %v1071 = vrot.slane %v854, 5
    %v1072 = vrot.slane %v854, 6
    %v1081 = vadd.f32 %v1057, %v1066
    %v1082 = vadd.f32 %v1058, %v854
    %v1083 = vadd.f32 %v1059, %v1067
    %v1084 = vadd.f32 %v1060, %v1068
    %v1085 = vadd.f32 %v1061, %v1069
    %v1086 = vadd.f32 %v1062, %v1070
    %v1087 = vadd.f32 %v1063, %v1071
    %v1088 = vadd.f32 %v1064, %v1072
    %v1089 = vxor.u32 %v1081, 2147483648
    %v1090 = vxor.u32 %v1082, 2147483648
    %v1091 = vxor.u32 %v1083, 2147483648
    %v1092 = vxor.u32 %v1084, 2147483648
    %v1093 = vxor.u32 %v1085, 2147483648
    %v1094 = vxor.u32 %v1086, 2147483648
    %v1095 = vxor.u32 %v1087, 2147483648
    %v1096 = vxor.u32 %v1088, 2147483648
    %v1097 = vmul.f32 %v1089, 1.442695
    %v1098 = vpow.pop %v1097
    %v1099 = vmul.f32 %v1090, 1.442695
    %v1100 = vpow.pop %v1099
    %v1101 = vmul.f32 %v1091, 1.442695
    %v1102 = vpow.pop %v1101
    %v1103 = vmul.f32 %v1092, 1.442695
    %v1104 = vpow.pop %v1103
    %v1105 = vmul.f32 %v1093, 1.442695
    %v1106 = vpow.pop %v1105
    %v1107 = vmul.f32 %v1094, 1.442695
    %v1108 = vpow.pop %v1107
    %v1109 = vmul.f32 %v1095, 1.442695
    %v1110 = vpow.pop %v1109
    %v1111 = vmul.f32 %v1096, 1.442695
    %v1112 = vpow.pop %v1111
    %v1113 = vadd.f32 %v1098, 1.0
    %v1114 = vadd.f32 %v1100, 1.0
    %v1115 = vadd.f32 %v1102, 1.0
    %v1116 = vadd.f32 %v1104, 1.0
    %v1117 = vadd.f32 %v1106, 1.0
    %v1118 = vadd.f32 %v1108, 1.0
    %v1119 = vadd.f32 %v1110, 1.0
    %v1120 = vadd.f32 %v1112, 1.0
    %v1121 = vrcp.pop %v1113
    %v1122 = vmul.f32 %v1113, %v1121
    %v1123 = vsub.f32 1.0, %v1122
    %v1124 = vmul.f32 %v1121, %v1123
    %v1125 = vadd.f32 %v1121, %v1124
    %vm1126 = vweird.f32 %v1113
    %vm1127 = vweird.f32 %v1121
    %vm1128 = vmor %vm1126, %vm1127
    %v1129 = vsel %vm1128, %v1121, %v1125
    %v1130 = vand.u32 2147483647, %v1113
    %vm1131 = vcmp.eq.f32.partialorder %v1130, 8.507059e+37
    %v1132 = vand.u32 %v1113, 2147483648
    %v1133 = vor.u32 1.1754944e-38, %v1132
    %v1134 = vsel %vm1131, %v1133, %v1129
    %v1135 = vmul.f32 1.0, %v1134
    %v1136 = vrcp.pop %v1114
    %v1137 = vmul.f32 %v1114, %v1136
    %v1138 = vsub.f32 1.0, %v1137
    %v1139 = vmul.f32 %v1136, %v1138
    %v1140 = vadd.f32 %v1136, %v1139
    %vm1141 = vweird.f32 %v1114
    %vm1142 = vweird.f32 %v1136
    %vm1143 = vmor %vm1141, %vm1142
    %v1144 = vsel %vm1143, %v1136, %v1140
    %v1145 = vand.u32 2147483647, %v1114
    %vm1146 = vcmp.eq.f32.partialorder %v1145, 8.507059e+37
    %v1147 = vand.u32 %v1114, 2147483648
    %v1148 = vor.u32 1.1754944e-38, %v1147
    %v1149 = vsel %vm1146, %v1148, %v1144
    %v1150 = vmul.f32 1.0, %v1149
    %v1151 = vrcp.pop %v1115
    %v1152 = vmul.f32 %v1115, %v1151
    %v1153 = vsub.f32 1.0, %v1152
    %v1154 = vmul.f32 %v1151, %v1153
    %v1155 = vadd.f32 %v1151, %v1154
    %vm1156 = vweird.f32 %v1115
    %vm1157 = vweird.f32 %v1151
    %vm1158 = vmor %vm1156, %vm1157
    %v1159 = vsel %vm1158, %v1151, %v1155
    %v1160 = vand.u32 2147483647, %v1115
    %vm1161 = vcmp.eq.f32.partialorder %v1160, 8.507059e+37
    %v1162 = vand.u32 %v1115, 2147483648
    %v1163 = vor.u32 1.1754944e-38, %v1162
    %v1164 = vsel %vm1161, %v1163, %v1159
    %v1165 = vmul.f32 1.0, %v1164
    %v1166 = vrcp.pop %v1116
    %v1167 = vmul.f32 %v1116, %v1166
    %v1168 = vsub.f32 1.0, %v1167
    %v1169 = vmul.f32 %v1166, %v1168
    %v1170 = vadd.f32 %v1166, %v1169
    %vm1171 = vweird.f32 %v1116
    %vm1172 = vweird.f32 %v1166
    %vm1173 = vmor %vm1171, %vm1172
    %v1174 = vsel %vm1173, %v1166, %v1170
    %v1175 = vand.u32 2147483647, %v1116
    %vm1176 = vcmp.eq.f32.partialorder %v1175, 8.507059e+37
    %v1177 = vand.u32 %v1116, 2147483648
    %v1178 = vor.u32 1.1754944e-38, %v1177
    %v1179 = vsel %vm1176, %v1178, %v1174
    %v1180 = vmul.f32 1.0, %v1179
    %v1181 = vrcp.pop %v1117
    %v1182 = vmul.f32 %v1117, %v1181
    %v1183 = vsub.f32 1.0, %v1182
    %v1184 = vmul.f32 %v1181, %v1183
    %v1185 = vadd.f32 %v1181, %v1184
    %vm1186 = vweird.f32 %v1117
    %vm1187 = vweird.f32 %v1181
    %vm1188 = vmor %vm1186, %vm1187
    %v1189 = vsel %vm1188, %v1181, %v1185
    %v1190 = vand.u32 2147483647, %v1117
    %vm1191 = vcmp.eq.f32.partialorder %v1190, 8.507059e+37
    %v1192 = vand.u32 %v1117, 2147483648
    %v1193 = vor.u32 1.1754944e-38, %v1192
    %v1194 = vsel %vm1191, %v1193, %v1189
    %v1195 = vmul.f32 1.0, %v1194
    %v1196 = vrcp.pop %v1118
    %v1197 = vmul.f32 %v1118, %v1196
    %v1198 = vsub.f32 1.0, %v1197
    %v1199 = vmul.f32 %v1196, %v1198
    %v1200 = vadd.f32 %v1196, %v1199
    %vm1201 = vweird.f32 %v1118
    %vm1202 = vweird.f32 %v1196
    %vm1203 = vmor %vm1201, %vm1202
    %v1204 = vsel %vm1203, %v1196, %v1200
    %v1205 = vand.u32 2147483647, %v1118
    %vm1206 = vcmp.eq.f32.partialorder %v1205, 8.507059e+37
    %v1207 = vand.u32 %v1118, 2147483648
    %v1208 = vor.u32 1.1754944e-38, %v1207
    %v1209 = vsel %vm1206, %v1208, %v1204
    %v1210 = vmul.f32 1.0, %v1209
    %v1211 = vrcp.pop %v1119
    %v1212 = vmul.f32 %v1119, %v1211
    %v1213 = vsub.f32 1.0, %v1212
    %v1214 = vmul.f32 %v1211, %v1213
    %v1215 = vadd.f32 %v1211, %v1214
    %vm1216 = vweird.f32 %v1119
    %vm1217 = vweird.f32 %v1211
    %vm1218 = vmor %vm1216, %vm1217
    %v1219 = vsel %vm1218, %v1211, %v1215
    %v1220 = vand.u32 2147483647, %v1119
    %vm1221 = vcmp.eq.f32.partialorder %v1220, 8.507059e+37
    %v1222 = vand.u32 %v1119, 2147483648
    %v1223 = vor.u32 1.1754944e-38, %v1222
    %v1224 = vsel %vm1221, %v1223, %v1219
    %v1225 = vmul.f32 1.0, %v1224
    %v1226 = vrcp.pop %v1120
    %v1227 = vmul.f32 %v1120, %v1226
    %v1228 = vsub.f32 1.0, %v1227
    %v1229 = vmul.f32 %v1226, %v1228
    %v1230 = vadd.f32 %v1226, %v1229
    %vm1231 = vweird.f32 %v1120
    %vm1232 = vweird.f32 %v1226
    %vm1233 = vmor %vm1231, %vm1232
    %v1234 = vsel %vm1233, %v1226, %v1230
    %v1235 = vand.u32 2147483647, %v1120
    %vm1236 = vcmp.eq.f32.partialorder %v1235, 8.507059e+37
    %v1237 = vand.u32 %v1120, 2147483648
    %v1238 = vor.u32 1.1754944e-38, %v1237
    %v1239 = vsel %vm1236, %v1238, %v1234
    %v1240 = vmul.f32 1.0, %v1239
    %v1241 = vld [vmem:[#allocation9] sm:$0x1]
    %v1242 = vld [vmem:[#allocation9 + $0x4] sm:$0x1]
    %v1243 = vld [vmem:[#allocation9 + $0x8] sm:$0x1]
    %v1244 = vld [vmem:[#allocation9 + $0xc] sm:$0x1]
    %v1245 = vld [vmem:[#allocation9 + $0x10] sm:$0x1]
    %v1246 = vld [vmem:[#allocation9 + $0x14] sm:$0x1]
    %v1247 = vld [vmem:[#allocation9 + $0x18] sm:$0x1]
    %v1248 = vld [vmem:[#allocation9 + $0x1c] sm:$0x1]
    %v1249 = vunpack.c.l.bf16 %v1241
    %v1250 = vunpack.c.l.bf16 %v1242
    %v1251 = vunpack.c.l.bf16 %v1243
    %v1252 = vunpack.c.l.bf16 %v1244
    %v1253 = vunpack.c.l.bf16 %v1245
    %v1254 = vunpack.c.l.bf16 %v1246
    %v1255 = vunpack.c.l.bf16 %v1247
    %v1256 = vunpack.c.l.bf16 %v1248
    %1257 = vmatpush.bf16.msra.mxu0 0
    %1258 = vmatpush.bf16.msra.mxu0 0
    %1259 = vmatpush.bf16.msra.mxu0 0
    %1260 = vmatpush.bf16.msra.mxu0 0
    %1261 = vmatpush.bf16.msra.mxu0 0
    %1262 = vmatpush.bf16.msra.mxu0 0
    %1263 = vmatpush.bf16.msra.mxu0 %v629
    %1264 = vmatpush.bf16.msra.mxu0 %v628
    %1265 = vmatmul.bf16.gmra.mxu0 %v829
    %v1266 = vpop.f32.mrf.mxu0
    %v1267 = vadd.f32 %v618, %v1266
    %v1268 = vpop.f32.mrf.mxu0
    %1269 = vdwg.mxu0
    %v1271 = vrot.slane %v1267, 7
    %v1272 = vrot.slane %v1267, 1
    %v1273 = vrot.slane %v1267, 2
    %v1274 = vrot.slane %v1267, 3
    %v1275 = vrot.slane %v1267, 4
    %v1276 = vrot.slane %v1267, 5
    %v1277 = vrot.slane %v1267, 6
    %v1286 = vmul.f32 %v943, %v1271
    %v1287 = vmul.f32 %v958, %v1267
    %v1288 = vmul.f32 %v973, %v1272
    %v1289 = vmul.f32 %v988, %v1273
    %v1290 = vmul.f32 %v1003, %v1274
    %v1291 = vmul.f32 %v1018, %v1275
    %v1292 = vmul.f32 %v1033, %v1276
    %v1293 = vmul.f32 %v1048, %v1277
    %v1294 = vadd.f32 %v1249, %v1286
    %v1295 = vadd.f32 %v1250, %v1287
    %v1296 = vadd.f32 %v1251, %v1288
    %v1297 = vadd.f32 %v1252, %v1289
    %v1298 = vadd.f32 %v1253, %v1290
    %v1299 = vadd.f32 %v1254, %v1291
    %v1300 = vadd.f32 %v1255, %v1292
    %v1301 = vadd.f32 %v1256, %v1293
    %v1302 = vtanh.pop %v1294
    %v1303 = vtanh.pop %v1295
    %v1304 = vtanh.pop %v1296
    %v1305 = vtanh.pop %v1297
    %v1306 = vtanh.pop %v1298
    %v1307 = vtanh.pop %v1299
    %v1308 = vtanh.pop %v1300
    %v1309 = vtanh.pop %v1301
    %v1318 = vrot.slane %v1302, 1
    %v1319 = vsel %vm694, %v1303, %v1318
    %v1320 = vrot.slane %v1304, 7
    %v1321 = vsel %vm697, %v1320, %v1319
    %v1322 = vrot.slane %v1305, 6
    %v1323 = vsel %vm700, %v1322, %v1321
    %v1324 = vrot.slane %v1306, 5
    %v1325 = vsel %vm703, %v1324, %v1323
    %v1326 = vrot.slane %v1307, 4
    %v1327 = vsel %vm706, %v1326, %v1325
    %v1328 = vrot.slane %v1308, 3
    %v1329 = vsel %vm709, %v1328, %v1327
    %v1330 = vrot.slane %v1309, 2
    %v1331 = vsel %vm712, %v1330, %v1329
    %v1333 = vsub.f32 %v801, %v1331
    %v1335 = vrot.slane %v1333, 7
    %v1336 = vrot.slane %v1333, 1
    %v1337 = vrot.slane %v1333, 2
    %v1338 = vrot.slane %v1333, 3
    %v1339 = vrot.slane %v1333, 4
    %v1340 = vrot.slane %v1333, 5
    %v1341 = vrot.slane %v1333, 6
    %v1350 = vmul.f32 %v1135, %v1335
    %v1351 = vmul.f32 %v1150, %v1333
    %v1352 = vmul.f32 %v1165, %v1336
    %v1353 = vmul.f32 %v1180, %v1337
    %v1354 = vmul.f32 %v1195, %v1338
    %v1355 = vmul.f32 %v1210, %v1339
    %v1356 = vmul.f32 %v1225, %v1340
    %v1357 = vmul.f32 %v1240, %v1341
    %v1358 = vadd.f32 %v1302, %v1350
    %v1359 = vadd.f32 %v1303, %v1351
    %v1360 = vadd.f32 %v1304, %v1352
    %v1361 = vadd.f32 %v1305, %v1353
    %v1362 = vadd.f32 %v1306, %v1354
    %v1363 = vadd.f32 %v1307, %v1355
    %v1364 = vadd.f32 %v1308, %v1356
    %v1365 = vadd.f32 %v1309, %v1357
    %v1367 = vsub.f32 %v1358, %v809
    %v1368 = vsub.f32 %v1359, %v801
    %v1369 = vsub.f32 %v1360, %v803
    %v1370 = vsub.f32 %v1361, %v804
    %v1371 = vsub.f32 %v1362, %v805
    %v1372 = vsub.f32 %v1363, %v806
    %v1373 = vsub.f32 %v1364, %v807
    %v1374 = vsub.f32 %v1365, %v808
    %1376 = vset.pattern.permute.xlu0 1
    %1377 = vperm.xlu0 %1376, %v826
    %v1378 = vpop.permute.xlu0 %1377
    %v1388 = vrot.slane %v1367, 1
    %v1389 = vsel %vm694, %v1368, %v1388
    %v1390 = vrot.slane %v1369, 7
    %v1391 = vsel %vm697, %v1390, %v1389
    %v1392 = vrot.slane %v1370, 6
    %v1393 = vsel %vm700, %v1392, %v1391
    %v1394 = vrot.slane %v1371, 5
    %v1395 = vsel %vm703, %v1394, %v1393
    %v1396 = vrot.slane %v1372, 4
    %v1397 = vsel %vm706, %v1396, %v1395
    %v1398 = vrot.slane %v1373, 3
    %v1399 = vsel %vm709, %v1398, %v1397
    %v1400 = vrot.slane %v1374, 2
    %v1401 = vsel %vm712, %v1400, %v1399
    %v1403 = vmul.f32 %v1378, %v1401
    %v1404 = vadd.f32 %v801, %v1403
    %v1406 = vrot.slane %v1404, 1
    %v1407 = vrot.slane %v1404, 2
    %v1408 = vrot.slane %v1404, 3
    %v1409 = vrot.slane %v1404, 4
    %v1410 = vrot.slane %v1404, 5
    %v1411 = vrot.slane %v1404, 6
    %v1412 = vrot.slane %v1404, 7
    %1420 = vst.msk [vmem:[#allocation15 + $0x1] sm:$0x1] %vm817, %v1404
    %1421 = vst.msk [vmem:[#allocation15 + $0x9] sm:$0x1] %vm817, %v1406
    %1422 = vst.msk [vmem:[#allocation15 + $0x11] sm:$0x1] %vm817, %v1407
    %1423 = vst.msk [vmem:[#allocation15 + $0x19] sm:$0x1] %vm817, %v1408
    %1424 = vst.msk [vmem:[#allocation15 + $0x21] sm:$0x1] %vm817, %v1409
    %1425 = vst.msk [vmem:[#allocation15 + $0x29] sm:$0x1] %vm817, %v1410
    %1426 = vst.msk [vmem:[#allocation15 + $0x31] sm:$0x1] %vm817, %v1411
    %1427 = vst.msk [vmem:[#allocation15 + $0x39] sm:$0x1] %vm817, %v1412
    %v1428 = vld [vmem:[#allocation3] sm:$0xff]
    %v1429 = vpack.c.bf16 %v1404, %v1404
    %v1431 = vsel %vm175, %v1429, 0
    %1433 = vmatpush.bf16.msra.mxu0 0
    %1434 = vmatpush.bf16.msra.mxu0 0
    %1435 = vmatpush.bf16.msra.mxu0 0
    %1436 = vmatpush.bf16.msra.mxu0 0
    %1437 = vmatpush.bf16.msra.mxu0 0
    %1438 = vmatpush.bf16.msra.mxu0 0
    %1439 = vmatpush.bf16.msra.mxu0 %v172
    %1440 = vmatpush.bf16.msra.mxu0 %v171
    %1441 = vmatmul.bf16.gmra.mxu0 %v1431
    %v1442 = vpop.f32.mrf.mxu0
    %v1443 = vadd.f32 0.0, %v1442
    %v1444 = vpop.f32.mrf.mxu0
    %1445 = vdwg.mxu0
    %1446 = vmatpush.bf16.msra.mxu0 0
    %1447 = vmatpush.bf16.msra.mxu0 0
    %1448 = vmatpush.bf16.msra.mxu0 0
    %1449 = vmatpush.bf16.msra.mxu0 0
    %1450 = vmatpush.bf16.msra.mxu0 0
    %1451 = vmatpush.bf16.msra.mxu0 0
    %1452 = vmatpush.bf16.msra.mxu0 %v201
    %1453 = vmatpush.bf16.msra.mxu0 %v200
    %1454 = vmatmul.bf16.gmra.mxu0 %v1431
    %v1455 = vpop.f32.mrf.mxu0
    %v1456 = vadd.f32 0.0, %v1455
    %v1457 = vpop.f32.mrf.mxu0
    %1458 = vdwg.mxu0
    %v1459 = vld [vmem:[#allocation6] sm:$0x2]
    %v1460 = vld [vmem:[#allocation6 + $0x4] sm:$0x2]
    %v1461 = vld [vmem:[#allocation6 + $0x8] sm:$0x2]
    %v1462 = vld [vmem:[#allocation6 + $0xc] sm:$0x2]
    %v1463 = vld [vmem:[#allocation6 + $0x10] sm:$0x2]
    %v1464 = vld [vmem:[#allocation6 + $0x14] sm:$0x2]
    %v1465 = vld [vmem:[#allocation6 + $0x18] sm:$0x2]
    %v1466 = vld [vmem:[#allocation6 + $0x1c] sm:$0x2]
    %v1467 = vunpack.c.l.bf16 %v1459
    %v1468 = vunpack.c.l.bf16 %v1460
    %v1469 = vunpack.c.l.bf16 %v1461
    %v1470 = vunpack.c.l.bf16 %v1462
    %v1471 = vunpack.c.l.bf16 %v1463
    %v1472 = vunpack.c.l.bf16 %v1464
    %v1473 = vunpack.c.l.bf16 %v1465
    %v1474 = vunpack.c.l.bf16 %v1466
    %v1476 = vrot.slane %v1443, 6
    %v1477 = vrot.slane %v1443, 7
    %v1478 = vrot.slane %v1443, 1
    %v1479 = vrot.slane %v1443, 2
    %v1480 = vrot.slane %v1443, 3
    %v1481 = vrot.slane %v1443, 4
    %v1482 = vrot.slane %v1443, 5
    %v1491 = vadd.f32 %v1467, %v1476
    %v1492 = vadd.f32 %v1468, %v1477
    %v1493 = vadd.f32 %v1469, %v1443
    %v1494 = vadd.f32 %v1470, %v1478
    %v1495 = vadd.f32 %v1471, %v1479
    %v1496 = vadd.f32 %v1472, %v1480
    %v1497 = vadd.f32 %v1473, %v1481
    %v1498 = vadd.f32 %v1474, %v1482
    %v1499 = vxor.u32 %v1491, 2147483648
    %v1500 = vxor.u32 %v1492, 2147483648
    %v1501 = vxor.u32 %v1493, 2147483648
    %v1502 = vxor.u32 %v1494, 2147483648
    %v1503 = vxor.u32 %v1495, 2147483648
    %v1504 = vxor.u32 %v1496, 2147483648
    %v1505 = vxor.u32 %v1497, 2147483648
    %v1506 = vxor.u32 %v1498, 2147483648
    %v1507 = vmul.f32 %v1499, 1.442695
    %v1508 = vpow.pop %v1507
    %v1509 = vmul.f32 %v1500, 1.442695
    %v1510 = vpow.pop %v1509
    %v1511 = vmul.f32 %v1501, 1.442695
    %v1512 = vpow.pop %v1511
    %v1513 = vmul.f32 %v1502, 1.442695
    %v1514 = vpow.pop %v1513
    %v1515 = vmul.f32 %v1503, 1.442695
    %v1516 = vpow.pop %v1515
    %v1517 = vmul.f32 %v1504, 1.442695
    %v1518 = vpow.pop %v1517
    %v1519 = vmul.f32 %v1505, 1.442695
    %v1520 = vpow.pop %v1519
    %v1521 = vmul.f32 %v1506, 1.442695
    %v1522 = vpow.pop %v1521
    %v1523 = vadd.f32 %v1508, 1.0
    %v1524 = vadd.f32 %v1510, 1.0
    %v1525 = vadd.f32 %v1512, 1.0
    %v1526 = vadd.f32 %v1514, 1.0
    %v1527 = vadd.f32 %v1516, 1.0
    %v1528 = vadd.f32 %v1518, 1.0
    %v1529 = vadd.f32 %v1520, 1.0
    %v1530 = vadd.f32 %v1522, 1.0
    %v1531 = vrcp.pop %v1523
    %v1532 = vmul.f32 %v1523, %v1531
    %v1533 = vsub.f32 1.0, %v1532
    %v1534 = vmul.f32 %v1531, %v1533
    %v1535 = vadd.f32 %v1531, %v1534
    %vm1536 = vweird.f32 %v1523
    %vm1537 = vweird.f32 %v1531
    %vm1538 = vmor %vm1536, %vm1537
    %v1539 = vsel %vm1538, %v1531, %v1535
    %v1540 = vand.u32 2147483647, %v1523
    %vm1541 = vcmp.eq.f32.partialorder %v1540, 8.507059e+37
    %v1542 = vand.u32 %v1523, 2147483648
    %v1543 = vor.u32 1.1754944e-38, %v1542
    %v1544 = vsel %vm1541, %v1543, %v1539
    %v1545 = vmul.f32 1.0, %v1544
    %v1546 = vrcp.pop %v1524
    %v1547 = vmul.f32 %v1524, %v1546
    %v1548 = vsub.f32 1.0, %v1547
    %v1549 = vmul.f32 %v1546, %v1548
    %v1550 = vadd.f32 %v1546, %v1549
    %vm1551 = vweird.f32 %v1524
    %vm1552 = vweird.f32 %v1546
    %vm1553 = vmor %vm1551, %vm1552
    %v1554 = vsel %vm1553, %v1546, %v1550
    %v1555 = vand.u32 2147483647, %v1524
    %vm1556 = vcmp.eq.f32.partialorder %v1555, 8.507059e+37
    %v1557 = vand.u32 %v1524, 2147483648
    %v1558 = vor.u32 1.1754944e-38, %v1557
    %v1559 = vsel %vm1556, %v1558, %v1554
    %v1560 = vmul.f32 1.0, %v1559
    %v1561 = vrcp.pop %v1525
    %v1562 = vmul.f32 %v1525, %v1561
    %v1563 = vsub.f32 1.0, %v1562
    %v1564 = vmul.f32 %v1561, %v1563
    %v1565 = vadd.f32 %v1561, %v1564
    %vm1566 = vweird.f32 %v1525
    %vm1567 = vweird.f32 %v1561
    %vm1568 = vmor %vm1566, %vm1567
    %v1569 = vsel %vm1568, %v1561, %v1565
    %v1570 = vand.u32 2147483647, %v1525
    %vm1571 = vcmp.eq.f32.partialorder %v1570, 8.507059e+37
    %v1572 = vand.u32 %v1525, 2147483648
    %v1573 = vor.u32 1.1754944e-38, %v1572
    %v1574 = vsel %vm1571, %v1573, %v1569
    %v1575 = vmul.f32 1.0, %v1574
    %v1576 = vrcp.pop %v1526
    %v1577 = vmul.f32 %v1526, %v1576
    %v1578 = vsub.f32 1.0, %v1577
    %v1579 = vmul.f32 %v1576, %v1578
    %v1580 = vadd.f32 %v1576, %v1579
    %vm1581 = vweird.f32 %v1526
    %vm1582 = vweird.f32 %v1576
    %vm1583 = vmor %vm1581, %vm1582
    %v1584 = vsel %vm1583, %v1576, %v1580
    %v1585 = vand.u32 2147483647, %v1526
    %vm1586 = vcmp.eq.f32.partialorder %v1585, 8.507059e+37
    %v1587 = vand.u32 %v1526, 2147483648
    %v1588 = vor.u32 1.1754944e-38, %v1587
    %v1589 = vsel %vm1586, %v1588, %v1584
    %v1590 = vmul.f32 1.0, %v1589
    %v1591 = vrcp.pop %v1527
    %v1592 = vmul.f32 %v1527, %v1591
    %v1593 = vsub.f32 1.0, %v1592
    %v1594 = vmul.f32 %v1591, %v1593
    %v1595 = vadd.f32 %v1591, %v1594
    %vm1596 = vweird.f32 %v1527
    %vm1597 = vweird.f32 %v1591
    %vm1598 = vmor %vm1596, %vm1597
    %v1599 = vsel %vm1598, %v1591, %v1595
    %v1600 = vand.u32 2147483647, %v1527
    %vm1601 = vcmp.eq.f32.partialorder %v1600, 8.507059e+37
    %v1602 = vand.u32 %v1527, 2147483648
    %v1603 = vor.u32 1.1754944e-38, %v1602
    %v1604 = vsel %vm1601, %v1603, %v1599
    %v1605 = vmul.f32 1.0, %v1604
    %v1606 = vrcp.pop %v1528
    %v1607 = vmul.f32 %v1528, %v1606
    %v1608 = vsub.f32 1.0, %v1607
    %v1609 = vmul.f32 %v1606, %v1608
    %v1610 = vadd.f32 %v1606, %v1609
    %vm1611 = vweird.f32 %v1528
    %vm1612 = vweird.f32 %v1606
    %vm1613 = vmor %vm1611, %vm1612
    %v1614 = vsel %vm1613, %v1606, %v1610
    %v1615 = vand.u32 2147483647, %v1528
    %vm1616 = vcmp.eq.f32.partialorder %v1615, 8.507059e+37
    %v1617 = vand.u32 %v1528, 2147483648
    %v1618 = vor.u32 1.1754944e-38, %v1617
    %v1619 = vsel %vm1616, %v1618, %v1614
    %v1620 = vmul.f32 1.0, %v1619
    %v1621 = vrcp.pop %v1529
    %v1622 = vmul.f32 %v1529, %v1621
    %v1623 = vsub.f32 1.0, %v1622
    %v1624 = vmul.f32 %v1621, %v1623
    %v1625 = vadd.f32 %v1621, %v1624
    %vm1626 = vweird.f32 %v1529
    %vm1627 = vweird.f32 %v1621
    %vm1628 = vmor %vm1626, %vm1627
    %v1629 = vsel %vm1628, %v1621, %v1625
    %v1630 = vand.u32 2147483647, %v1529
    %vm1631 = vcmp.eq.f32.partialorder %v1630, 8.507059e+37
    %v1632 = vand.u32 %v1529, 2147483648
    %v1633 = vor.u32 1.1754944e-38, %v1632
    %v1634 = vsel %vm1631, %v1633, %v1629
    %v1635 = vmul.f32 1.0, %v1634
    %v1636 = vrcp.pop %v1530
    %v1637 = vmul.f32 %v1530, %v1636
    %v1638 = vsub.f32 1.0, %v1637
    %v1639 = vmul.f32 %v1636, %v1638
    %v1640 = vadd.f32 %v1636, %v1639
    %vm1641 = vweird.f32 %v1530
    %vm1642 = vweird.f32 %v1636
    %vm1643 = vmor %vm1641, %vm1642
    %v1644 = vsel %vm1643, %v1636, %v1640
    %v1645 = vand.u32 2147483647, %v1530
    %vm1646 = vcmp.eq.f32.partialorder %v1645, 8.507059e+37
    %v1647 = vand.u32 %v1530, 2147483648
    %v1648 = vor.u32 1.1754944e-38, %v1647
    %v1649 = vsel %vm1646, %v1648, %v1644
    %v1650 = vmul.f32 1.0, %v1649
    %v1651 = vld [vmem:[#allocation8] sm:$0x2]
    %v1652 = vld [vmem:[#allocation8 + $0x4] sm:$0x2]
    %v1653 = vld [vmem:[#allocation8 + $0x8] sm:$0x2]
    %v1654 = vld [vmem:[#allocation8 + $0xc] sm:$0x2]
    %v1655 = vld [vmem:[#allocation8 + $0x10] sm:$0x2]
    %v1656 = vld [vmem:[#allocation8 + $0x14] sm:$0x2]
    %v1657 = vld [vmem:[#allocation8 + $0x18] sm:$0x2]
    %v1658 = vld [vmem:[#allocation8 + $0x1c] sm:$0x2]
    %v1659 = vunpack.c.l.bf16 %v1651
    %v1660 = vunpack.c.l.bf16 %v1652
    %v1661 = vunpack.c.l.bf16 %v1653
    %v1662 = vunpack.c.l.bf16 %v1654
    %v1663 = vunpack.c.l.bf16 %v1655
    %v1664 = vunpack.c.l.bf16 %v1656
    %v1665 = vunpack.c.l.bf16 %v1657
    %v1666 = vunpack.c.l.bf16 %v1658
    %v1668 = vrot.slane %v1456, 6
    %v1669 = vrot.slane %v1456, 7
    %v1670 = vrot.slane %v1456, 1
    %v1671 = vrot.slane %v1456, 2
    %v1672 = vrot.slane %v1456, 3
    %v1673 = vrot.slane %v1456, 4
    %v1674 = vrot.slane %v1456, 5
    %v1683 = vadd.f32 %v1659, %v1668
    %v1684 = vadd.f32 %v1660, %v1669
    %v1685 = vadd.f32 %v1661, %v1456
    %v1686 = vadd.f32 %v1662, %v1670
    %v1687 = vadd.f32 %v1663, %v1671
    %v1688 = vadd.f32 %v1664, %v1672
    %v1689 = vadd.f32 %v1665, %v1673
    %v1690 = vadd.f32 %v1666, %v1674
    %v1691 = vxor.u32 %v1683, 2147483648
    %v1692 = vxor.u32 %v1684, 2147483648
    %v1693 = vxor.u32 %v1685, 2147483648
    %v1694 = vxor.u32 %v1686, 2147483648
    %v1695 = vxor.u32 %v1687, 2147483648
    %v1696 = vxor.u32 %v1688, 2147483648
    %v1697 = vxor.u32 %v1689, 2147483648
    %v1698 = vxor.u32 %v1690, 2147483648
    %v1699 = vmul.f32 %v1691, 1.442695
    %v1700 = vpow.pop %v1699
    %v1701 = vmul.f32 %v1692, 1.442695
    %v1702 = vpow.pop %v1701
    %v1703 = vmul.f32 %v1693, 1.442695
    %v1704 = vpow.pop %v1703
    %v1705 = vmul.f32 %v1694, 1.442695
    %v1706 = vpow.pop %v1705
    %v1707 = vmul.f32 %v1695, 1.442695
    %v1708 = vpow.pop %v1707
    %v1709 = vmul.f32 %v1696, 1.442695
    %v1710 = vpow.pop %v1709
    %v1711 = vmul.f32 %v1697, 1.442695
    %v1712 = vpow.pop %v1711
    %v1713 = vmul.f32 %v1698, 1.442695
    %v1714 = vpow.pop %v1713
    %v1715 = vadd.f32 %v1700, 1.0
    %v1716 = vadd.f32 %v1702, 1.0
    %v1717 = vadd.f32 %v1704, 1.0
    %v1718 = vadd.f32 %v1706, 1.0
    %v1719 = vadd.f32 %v1708, 1.0
    %v1720 = vadd.f32 %v1710, 1.0
    %v1721 = vadd.f32 %v1712, 1.0
    %v1722 = vadd.f32 %v1714, 1.0
    %v1723 = vrcp.pop %v1715
    %v1724 = vmul.f32 %v1715, %v1723
    %v1725 = vsub.f32 1.0, %v1724
    %v1726 = vmul.f32 %v1723, %v1725
    %v1727 = vadd.f32 %v1723, %v1726
    %vm1728 = vweird.f32 %v1715
    %vm1729 = vweird.f32 %v1723
    %vm1730 = vmor %vm1728, %vm1729
    %v1731 = vsel %vm1730, %v1723, %v1727
    %v1732 = vand.u32 2147483647, %v1715
    %vm1733 = vcmp.eq.f32.partialorder %v1732, 8.507059e+37
    %v1734 = vand.u32 %v1715, 2147483648
    %v1735 = vor.u32 1.1754944e-38, %v1734
    %v1736 = vsel %vm1733, %v1735, %v1731
    %v1737 = vmul.f32 1.0, %v1736
    %v1738 = vrcp.pop %v1716
    %v1739 = vmul.f32 %v1716, %v1738
    %v1740 = vsub.f32 1.0, %v1739
    %v1741 = vmul.f32 %v1738, %v1740
    %v1742 = vadd.f32 %v1738, %v1741
    %vm1743 = vweird.f32 %v1716
    %vm1744 = vweird.f32 %v1738
    %vm1745 = vmor %vm1743, %vm1744
    %v1746 = vsel %vm1745, %v1738, %v1742
    %v1747 = vand.u32 2147483647, %v1716
    %vm1748 = vcmp.eq.f32.partialorder %v1747, 8.507059e+37
    %v1749 = vand.u32 %v1716, 2147483648
    %v1750 = vor.u32 1.1754944e-38, %v1749
    %v1751 = vsel %vm1748, %v1750, %v1746
    %v1752 = vmul.f32 1.0, %v1751
    %v1753 = vrcp.pop %v1717
    %v1754 = vmul.f32 %v1717, %v1753
    %v1755 = vsub.f32 1.0, %v1754
    %v1756 = vmul.f32 %v1753, %v1755
    %v1757 = vadd.f32 %v1753, %v1756
    %vm1758 = vweird.f32 %v1717
    %vm1759 = vweird.f32 %v1753
    %vm1760 = vmor %vm1758, %vm1759
    %v1761 = vsel %vm1760, %v1753, %v1757
    %v1762 = vand.u32 2147483647, %v1717
    %vm1763 = vcmp.eq.f32.partialorder %v1762, 8.507059e+37
    %v1764 = vand.u32 %v1717, 2147483648
    %v1765 = vor.u32 1.1754944e-38, %v1764
    %v1766 = vsel %vm1763, %v1765, %v1761
    %v1767 = vmul.f32 1.0, %v1766
    %v1768 = vrcp.pop %v1718
    %v1769 = vmul.f32 %v1718, %v1768
    %v1770 = vsub.f32 1.0, %v1769
    %v1771 = vmul.f32 %v1768, %v1770
    %v1772 = vadd.f32 %v1768, %v1771
    %vm1773 = vweird.f32 %v1718
    %vm1774 = vweird.f32 %v1768
    %vm1775 = vmor %vm1773, %vm1774
    %v1776 = vsel %vm1775, %v1768, %v1772
    %v1777 = vand.u32 2147483647, %v1718
    %vm1778 = vcmp.eq.f32.partialorder %v1777, 8.507059e+37
    %v1779 = vand.u32 %v1718, 2147483648
    %v1780 = vor.u32 1.1754944e-38, %v1779
    %v1781 = vsel %vm1778, %v1780, %v1776
    %v1782 = vmul.f32 1.0, %v1781
    %v1783 = vrcp.pop %v1719
    %v1784 = vmul.f32 %v1719, %v1783
    %v1785 = vsub.f32 1.0, %v1784
    %v1786 = vmul.f32 %v1783, %v1785
    %v1787 = vadd.f32 %v1783, %v1786
    %vm1788 = vweird.f32 %v1719
    %vm1789 = vweird.f32 %v1783
    %vm1790 = vmor %vm1788, %vm1789
    %v1791 = vsel %vm1790, %v1783, %v1787
    %v1792 = vand.u32 2147483647, %v1719
    %vm1793 = vcmp.eq.f32.partialorder %v1792, 8.507059e+37
    %v1794 = vand.u32 %v1719, 2147483648
    %v1795 = vor.u32 1.1754944e-38, %v1794
    %v1796 = vsel %vm1793, %v1795, %v1791
    %v1797 = vmul.f32 1.0, %v1796
    %v1798 = vrcp.pop %v1720
    %v1799 = vmul.f32 %v1720, %v1798
    %v1800 = vsub.f32 1.0, %v1799
    %v1801 = vmul.f32 %v1798, %v1800
    %v1802 = vadd.f32 %v1798, %v1801
    %vm1803 = vweird.f32 %v1720
    %vm1804 = vweird.f32 %v1798
    %vm1805 = vmor %vm1803, %vm1804
    %v1806 = vsel %vm1805, %v1798, %v1802
    %v1807 = vand.u32 2147483647, %v1720
    %vm1808 = vcmp.eq.f32.partialorder %v1807, 8.507059e+37
    %v1809 = vand.u32 %v1720, 2147483648
    %v1810 = vor.u32 1.1754944e-38, %v1809
    %v1811 = vsel %vm1808, %v1810, %v1806
    %v1812 = vmul.f32 1.0, %v1811
    %v1813 = vrcp.pop %v1721
    %v1814 = vmul.f32 %v1721, %v1813
    %v1815 = vsub.f32 1.0, %v1814
    %v1816 = vmul.f32 %v1813, %v1815
    %v1817 = vadd.f32 %v1813, %v1816
    %vm1818 = vweird.f32 %v1721
    %vm1819 = vweird.f32 %v1813
    %vm1820 = vmor %vm1818, %vm1819
    %v1821 = vsel %vm1820, %v1813, %v1817
    %v1822 = vand.u32 2147483647, %v1721
    %vm1823 = vcmp.eq.f32.partialorder %v1822, 8.507059e+37
    %v1824 = vand.u32 %v1721, 2147483648
    %v1825 = vor.u32 1.1754944e-38, %v1824
    %v1826 = vsel %vm1823, %v1825, %v1821
    %v1827 = vmul.f32 1.0, %v1826
    %v1828 = vrcp.pop %v1722
    %v1829 = vmul.f32 %v1722, %v1828
    %v1830 = vsub.f32 1.0, %v1829
    %v1831 = vmul.f32 %v1828, %v1830
    %v1832 = vadd.f32 %v1828, %v1831
    %vm1833 = vweird.f32 %v1722
    %vm1834 = vweird.f32 %v1828
    %vm1835 = vmor %vm1833, %vm1834
    %v1836 = vsel %vm1835, %v1828, %v1832
    %v1837 = vand.u32 2147483647, %v1722
    %vm1838 = vcmp.eq.f32.partialorder %v1837, 8.507059e+37
    %v1839 = vand.u32 %v1722, 2147483648
    %v1840 = vor.u32 1.1754944e-38, %v1839
    %v1841 = vsel %vm1838, %v1840, %v1836
    %v1842 = vmul.f32 1.0, %v1841
    %v1843 = vld [vmem:[#allocation9] sm:$0x2]
    %v1844 = vld [vmem:[#allocation9 + $0x4] sm:$0x2]
    %v1845 = vld [vmem:[#allocation9 + $0x8] sm:$0x2]
    %v1846 = vld [vmem:[#allocation9 + $0xc] sm:$0x2]
    %v1847 = vld [vmem:[#allocation9 + $0x10] sm:$0x2]
    %v1848 = vld [vmem:[#allocation9 + $0x14] sm:$0x2]
    %v1849 = vld [vmem:[#allocation9 + $0x18] sm:$0x2]
    %v1850 = vld [vmem:[#allocation9 + $0x1c] sm:$0x2]
    %v1851 = vunpack.c.l.bf16 %v1843
    %v1852 = vunpack.c.l.bf16 %v1844
    %v1853 = vunpack.c.l.bf16 %v1845
    %v1854 = vunpack.c.l.bf16 %v1846
    %v1855 = vunpack.c.l.bf16 %v1847
    %v1856 = vunpack.c.l.bf16 %v1848
    %v1857 = vunpack.c.l.bf16 %v1849
    %v1858 = vunpack.c.l.bf16 %v1850
    %1859 = vmatpush.bf16.msra.mxu0 0
    %1860 = vmatpush.bf16.msra.mxu0 0
    %1861 = vmatpush.bf16.msra.mxu0 0
    %1862 = vmatpush.bf16.msra.mxu0 0
    %1863 = vmatpush.bf16.msra.mxu0 0
    %1864 = vmatpush.bf16.msra.mxu0 0
    %1865 = vmatpush.bf16.msra.mxu0 %v629
    %1866 = vmatpush.bf16.msra.mxu0 %v628
    %1867 = vmatmul.bf16.gmra.mxu0 %v1431
    %v1868 = vpop.f32.mrf.mxu0
    %v1869 = vadd.f32 %v618, %v1868
    %v1870 = vpop.f32.mrf.mxu0
    %1871 = vdwg.mxu0
    %v1873 = vrot.slane %v1869, 6
    %v1874 = vrot.slane %v1869, 7
    %v1875 = vrot.slane %v1869, 1
    %v1876 = vrot.slane %v1869, 2
    %v1877 = vrot.slane %v1869, 3
    %v1878 = vrot.slane %v1869, 4
    %v1879 = vrot.slane %v1869, 5
    %v1888 = vmul.f32 %v1545, %v1873
    %v1889 = vmul.f32 %v1560, %v1874
    %v1890 = vmul.f32 %v1575, %v1869
    %v1891 = vmul.f32 %v1590, %v1875
    %v1892 = vmul.f32 %v1605, %v1876
    %v1893 = vmul.f32 %v1620, %v1877
    %v1894 = vmul.f32 %v1635, %v1878
    %v1895 = vmul.f32 %v1650, %v1879
    %v1896 = vadd.f32 %v1851, %v1888
    %v1897 = vadd.f32 %v1852, %v1889
    %v1898 = vadd.f32 %v1853, %v1890
    %v1899 = vadd.f32 %v1854, %v1891
    %v1900 = vadd.f32 %v1855, %v1892
    %v1901 = vadd.f32 %v1856, %v1893
    %v1902 = vadd.f32 %v1857, %v1894
    %v1903 = vadd.f32 %v1858, %v1895
    %v1904 = vtanh.pop %v1896
    %v1905 = vtanh.pop %v1897
    %v1906 = vtanh.pop %v1898
    %v1907 = vtanh.pop %v1899
    %v1908 = vtanh.pop %v1900
    %v1909 = vtanh.pop %v1901
    %v1910 = vtanh.pop %v1902
    %v1911 = vtanh.pop %v1903
    %v1920 = vrot.slane %v1904, 2
    %v1921 = vrot.slane %v1905, 1
    %v1922 = vsel %vm694, %v1921, %v1920
    %v1923 = vsel %vm697, %v1906, %v1922
    %v1924 = vrot.slane %v1907, 7
    %v1925 = vsel %vm700, %v1924, %v1923
    %v1926 = vrot.slane %v1908, 6
    %v1927 = vsel %vm703, %v1926, %v1925
    %v1928 = vrot.slane %v1909, 5
    %v1929 = vsel %vm706, %v1928, %v1927
    %v1930 = vrot.slane %v1910, 4
    %v1931 = vsel %vm709, %v1930, %v1929
    %v1932 = vrot.slane %v1911, 3
    %v1933 = vsel %vm712, %v1932, %v1931
    %v1935 = vsub.f32 %v1404, %v1933
    %v1937 = vrot.slane %v1935, 6
    %v1938 = vrot.slane %v1935, 7
    %v1939 = vrot.slane %v1935, 1
    %v1940 = vrot.slane %v1935, 2
    %v1941 = vrot.slane %v1935, 3
    %v1942 = vrot.slane %v1935, 4
    %v1943 = vrot.slane %v1935, 5
    %v1952 = vmul.f32 %v1737, %v1937
    %v1953 = vmul.f32 %v1752, %v1938
    %v1954 = vmul.f32 %v1767, %v1935
    %v1955 = vmul.f32 %v1782, %v1939
    %v1956 = vmul.f32 %v1797, %v1940
    %v1957 = vmul.f32 %v1812, %v1941
    %v1958 = vmul.f32 %v1827, %v1942
    %v1959 = vmul.f32 %v1842, %v1943
    %v1960 = vadd.f32 %v1904, %v1952
    %v1961 = vadd.f32 %v1905, %v1953
    %v1962 = vadd.f32 %v1906, %v1954
    %v1963 = vadd.f32 %v1907, %v1955
    %v1964 = vadd.f32 %v1908, %v1956
    %v1965 = vadd.f32 %v1909, %v1957
    %v1966 = vadd.f32 %v1910, %v1958
    %v1967 = vadd.f32 %v1911, %v1959
    %v1969 = vsub.f32 %v1960, %v1411
    %v1970 = vsub.f32 %v1961, %v1412
    %v1971 = vsub.f32 %v1962, %v1404
    %v1972 = vsub.f32 %v1963, %v1406
    %v1973 = vsub.f32 %v1964, %v1407
    %v1974 = vsub.f32 %v1965, %v1408
    %v1975 = vsub.f32 %v1966, %v1409
    %v1976 = vsub.f32 %v1967, %v1410
    %1978 = vset.pattern.permute.xlu0 2
    %1979 = vperm.xlu0 %1978, %v1428
    %v1980 = vpop.permute.xlu0 %1979
    %v1990 = vrot.slane %v1969, 2
    %v1991 = vrot.slane %v1970, 1
    %v1992 = vsel %vm694, %v1991, %v1990
    %v1993 = vsel %vm697, %v1971, %v1992
    %v1994 = vrot.slane %v1972, 7
    %v1995 = vsel %vm700, %v1994, %v1993
    %v1996 = vrot.slane %v1973, 6
    %v1997 = vsel %vm703, %v1996, %v1995
    %v1998 = vrot.slane %v1974, 5
    %v1999 = vsel %vm706, %v1998, %v1997
    %v2000 = vrot.slane %v1975, 4
    %v2001 = vsel %vm709, %v2000, %v1999
    %v2002 = vrot.slane %v1976, 3
    %v2003 = vsel %vm712, %v2002, %v2001
    %v2005 = vmul.f32 %v1980, %v2003
    %v2006 = vadd.f32 %v1404, %v2005
    %v2008 = vrot.slane %v2006, 1
    %v2009 = vrot.slane %v2006, 2
    %v2010 = vrot.slane %v2006, 3
    %v2011 = vrot.slane %v2006, 4
    %v2012 = vrot.slane %v2006, 5
    %v2013 = vrot.slane %v2006, 6
    %v2014 = vrot.slane %v2006, 7
    %2022 = vst.msk [vmem:[#allocation15 + $0x2] sm:$0x1] %vm817, %v2006
    %2023 = vst.msk [vmem:[#allocation15 + $0xa] sm:$0x1] %vm817, %v2008
    %2024 = vst.msk [vmem:[#allocation15 + $0x12] sm:$0x1] %vm817, %v2009
    %2025 = vst.msk [vmem:[#allocation15 + $0x1a] sm:$0x1] %vm817, %v2010
    %2026 = vst.msk [vmem:[#allocation15 + $0x22] sm:$0x1] %vm817, %v2011
    %2027 = vst.msk [vmem:[#allocation15 + $0x2a] sm:$0x1] %vm817, %v2012
    %2028 = vst.msk [vmem:[#allocation15 + $0x32] sm:$0x1] %vm817, %v2013
    %2029 = vst.msk [vmem:[#allocation15 + $0x3a] sm:$0x1] %vm817, %v2014
    %v2030 = vld [vmem:[#allocation3] sm:$0xff]
    %v2031 = vpack.c.bf16 %v2006, %v2006
    %v2033 = vsel %vm175, %v2031, 0
    %2035 = vmatpush.bf16.msra.mxu0 0
    %2036 = vmatpush.bf16.msra.mxu0 0
    %2037 = vmatpush.bf16.msra.mxu0 0
    %2038 = vmatpush.bf16.msra.mxu0 0
    %2039 = vmatpush.bf16.msra.mxu0 0
    %2040 = vmatpush.bf16.msra.mxu0 0
    %2041 = vmatpush.bf16.msra.mxu0 %v172
    %2042 = vmatpush.bf16.msra.mxu0 %v171
    %2043 = vmatmul.bf16.gmra.mxu0 %v2033
    %v2044 = vpop.f32.mrf.mxu0
    %v2045 = vadd.f32 0.0, %v2044
    %v2046 = vpop.f32.mrf.mxu0
    %2047 = vdwg.mxu0
    %2048 = vmatpush.bf16.msra.mxu0 0
    %2049 = vmatpush.bf16.msra.mxu0 0
    %2050 = vmatpush.bf16.msra.mxu0 0
    %2051 = vmatpush.bf16.msra.mxu0 0
    %2052 = vmatpush.bf16.msra.mxu0 0
    %2053 = vmatpush.bf16.msra.mxu0 0
    %2054 = vmatpush.bf16.msra.mxu0 %v201
    %2055 = vmatpush.bf16.msra.mxu0 %v200
    %2056 = vmatmul.bf16.gmra.mxu0 %v2033
    %v2057 = vpop.f32.mrf.mxu0
    %v2058 = vadd.f32 0.0, %v2057
    %v2059 = vpop.f32.mrf.mxu0
    %2060 = vdwg.mxu0
    %v2061 = vld [vmem:[#allocation6] sm:$0x2]
    %v2062 = vld [vmem:[#allocation6 + $0x4] sm:$0x2]
    %v2063 = vld [vmem:[#allocation6 + $0x8] sm:$0x2]
    %v2064 = vld [vmem:[#allocation6 + $0xc] sm:$0x2]
    %v2065 = vld [vmem:[#allocation6 + $0x10] sm:$0x2]
    %v2066 = vld [vmem:[#allocation6 + $0x14] sm:$0x2]
    %v2067 = vld [vmem:[#allocation6 + $0x18] sm:$0x2]
    %v2068 = vld [vmem:[#allocation6 + $0x1c] sm:$0x2]
    %v2069 = vunpack.c.l.bf16 %v2061
    %v2070 = vunpack.c.l.bf16 %v2062
    %v2071 = vunpack.c.l.bf16 %v2063
    %v2072 = vunpack.c.l.bf16 %v2064
    %v2073 = vunpack.c.l.bf16 %v2065
    %v2074 = vunpack.c.l.bf16 %v2066
    %v2075 = vunpack.c.l.bf16 %v2067
    %v2076 = vunpack.c.l.bf16 %v2068
    %v2078 = vrot.slane %v2045, 5
    %v2079 = vrot.slane %v2045, 6
    %v2080 = vrot.slane %v2045, 7
    %v2081 = vrot.slane %v2045, 1
    %v2082 = vrot.slane %v2045, 2
    %v2083 = vrot.slane %v2045, 3
    %v2084 = vrot.slane %v2045, 4
    %v2093 = vadd.f32 %v2069, %v2078
    %v2094 = vadd.f32 %v2070, %v2079
    %v2095 = vadd.f32 %v2071, %v2080
    %v2096 = vadd.f32 %v2072, %v2045
    %v2097 = vadd.f32 %v2073, %v2081
    %v2098 = vadd.f32 %v2074, %v2082
    %v2099 = vadd.f32 %v2075, %v2083
    %v2100 = vadd.f32 %v2076, %v2084
    %v2101 = vxor.u32 %v2093, 2147483648
    %v2102 = vxor.u32 %v2094, 2147483648
    %v2103 = vxor.u32 %v2095, 2147483648
    %v2104 = vxor.u32 %v2096, 2147483648
    %v2105 = vxor.u32 %v2097, 2147483648
    %v2106 = vxor.u32 %v2098, 2147483648
    %v2107 = vxor.u32 %v2099, 2147483648
    %v2108 = vxor.u32 %v2100, 2147483648
    %v2109 = vmul.f32 %v2101, 1.442695
    %v2110 = vpow.pop %v2109
    %v2111 = vmul.f32 %v2102, 1.442695
    %v2112 = vpow.pop %v2111
    %v2113 = vmul.f32 %v2103, 1.442695
    %v2114 = vpow.pop %v2113
    %v2115 = vmul.f32 %v2104, 1.442695
    %v2116 = vpow.pop %v2115
    %v2117 = vmul.f32 %v2105, 1.442695
    %v2118 = vpow.pop %v2117
    %v2119 = vmul.f32 %v2106, 1.442695
    %v2120 = vpow.pop %v2119
    %v2121 = vmul.f32 %v2107, 1.442695
    %v2122 = vpow.pop %v2121
    %v2123 = vmul.f32 %v2108, 1.442695
    %v2124 = vpow.pop %v2123
    %v2125 = vadd.f32 %v2110, 1.0
    %v2126 = vadd.f32 %v2112, 1.0
    %v2127 = vadd.f32 %v2114, 1.0
    %v2128 = vadd.f32 %v2116, 1.0
    %v2129 = vadd.f32 %v2118, 1.0
    %v2130 = vadd.f32 %v2120, 1.0
    %v2131 = vadd.f32 %v2122, 1.0
    %v2132 = vadd.f32 %v2124, 1.0
    %v2133 = vrcp.pop %v2125
    %v2134 = vmul.f32 %v2125, %v2133
    %v2135 = vsub.f32 1.0, %v2134
    %v2136 = vmul.f32 %v2133, %v2135
    %v2137 = vadd.f32 %v2133, %v2136
    %vm2138 = vweird.f32 %v2125
    %vm2139 = vweird.f32 %v2133
    %vm2140 = vmor %vm2138, %vm2139
    %v2141 = vsel %vm2140, %v2133, %v2137
    %v2142 = vand.u32 2147483647, %v2125
    %vm2143 = vcmp.eq.f32.partialorder %v2142, 8.507059e+37
    %v2144 = vand.u32 %v2125, 2147483648
    %v2145 = vor.u32 1.1754944e-38, %v2144
    %v2146 = vsel %vm2143, %v2145, %v2141
    %v2147 = vmul.f32 1.0, %v2146
    %v2148 = vrcp.pop %v2126
    %v2149 = vmul.f32 %v2126, %v2148
    %v2150 = vsub.f32 1.0, %v2149
    %v2151 = vmul.f32 %v2148, %v2150
    %v2152 = vadd.f32 %v2148, %v2151
    %vm2153 = vweird.f32 %v2126
    %vm2154 = vweird.f32 %v2148
    %vm2155 = vmor %vm2153, %vm2154
    %v2156 = vsel %vm2155, %v2148, %v2152
    %v2157 = vand.u32 2147483647, %v2126
    %vm2158 = vcmp.eq.f32.partialorder %v2157, 8.507059e+37
    %v2159 = vand.u32 %v2126, 2147483648
    %v2160 = vor.u32 1.1754944e-38, %v2159
    %v2161 = vsel %vm2158, %v2160, %v2156
    %v2162 = vmul.f32 1.0, %v2161
    %v2163 = vrcp.pop %v2127
    %v2164 = vmul.f32 %v2127, %v2163
    %v2165 = vsub.f32 1.0, %v2164
    %v2166 = vmul.f32 %v2163, %v2165
    %v2167 = vadd.f32 %v2163, %v2166
    %vm2168 = vweird.f32 %v2127
    %vm2169 = vweird.f32 %v2163
    %vm2170 = vmor %vm2168, %vm2169
    %v2171 = vsel %vm2170, %v2163, %v2167
    %v2172 = vand.u32 2147483647, %v2127
    %vm2173 = vcmp.eq.f32.partialorder %v2172, 8.507059e+37
    %v2174 = vand.u32 %v2127, 2147483648
    %v2175 = vor.u32 1.1754944e-38, %v2174
    %v2176 = vsel %vm2173, %v2175, %v2171
    %v2177 = vmul.f32 1.0, %v2176
    %v2178 = vrcp.pop %v2128
    %v2179 = vmul.f32 %v2128, %v2178
    %v2180 = vsub.f32 1.0, %v2179
    %v2181 = vmul.f32 %v2178, %v2180
    %v2182 = vadd.f32 %v2178, %v2181
    %vm2183 = vweird.f32 %v2128
    %vm2184 = vweird.f32 %v2178
    %vm2185 = vmor %vm2183, %vm2184
    %v2186 = vsel %vm2185, %v2178, %v2182
    %v2187 = vand.u32 2147483647, %v2128
    %vm2188 = vcmp.eq.f32.partialorder %v2187, 8.507059e+37
    %v2189 = vand.u32 %v2128, 2147483648
    %v2190 = vor.u32 1.1754944e-38, %v2189
    %v2191 = vsel %vm2188, %v2190, %v2186
    %v2192 = vmul.f32 1.0, %v2191
    %v2193 = vrcp.pop %v2129
    %v2194 = vmul.f32 %v2129, %v2193
    %v2195 = vsub.f32 1.0, %v2194
    %v2196 = vmul.f32 %v2193, %v2195
    %v2197 = vadd.f32 %v2193, %v2196
    %vm2198 = vweird.f32 %v2129
    %vm2199 = vweird.f32 %v2193
    %vm2200 = vmor %vm2198, %vm2199
    %v2201 = vsel %vm2200, %v2193, %v2197
    %v2202 = vand.u32 2147483647, %v2129
    %vm2203 = vcmp.eq.f32.partialorder %v2202, 8.507059e+37
    %v2204 = vand.u32 %v2129, 2147483648
    %v2205 = vor.u32 1.1754944e-38, %v2204
    %v2206 = vsel %vm2203, %v2205, %v2201
    %v2207 = vmul.f32 1.0, %v2206
    %v2208 = vrcp.pop %v2130
    %v2209 = vmul.f32 %v2130, %v2208
    %v2210 = vsub.f32 1.0, %v2209
    %v2211 = vmul.f32 %v2208, %v2210
    %v2212 = vadd.f32 %v2208, %v2211
    %vm2213 = vweird.f32 %v2130
    %vm2214 = vweird.f32 %v2208
    %vm2215 = vmor %vm2213, %vm2214
    %v2216 = vsel %vm2215, %v2208, %v2212
    %v2217 = vand.u32 2147483647, %v2130
    %vm2218 = vcmp.eq.f32.partialorder %v2217, 8.507059e+37
    %v2219 = vand.u32 %v2130, 2147483648
    %v2220 = vor.u32 1.1754944e-38, %v2219
    %v2221 = vsel %vm2218, %v2220, %v2216
    %v2222 = vmul.f32 1.0, %v2221
    %v2223 = vrcp.pop %v2131
    %v2224 = vmul.f32 %v2131, %v2223
    %v2225 = vsub.f32 1.0, %v2224
    %v2226 = vmul.f32 %v2223, %v2225
    %v2227 = vadd.f32 %v2223, %v2226
    %vm2228 = vweird.f32 %v2131
    %vm2229 = vweird.f32 %v2223
    %vm2230 = vmor %vm2228, %vm2229
    %v2231 = vsel %vm2230, %v2223, %v2227
    %v2232 = vand.u32 2147483647, %v2131
    %vm2233 = vcmp.eq.f32.partialorder %v2232, 8.507059e+37
    %v2234 = vand.u32 %v2131, 2147483648
    %v2235 = vor.u32 1.1754944e-38, %v2234
    %v2236 = vsel %vm2233, %v2235, %v2231
    %v2237 = vmul.f32 1.0, %v2236
    %v2238 = vrcp.pop %v2132
    %v2239 = vmul.f32 %v2132, %v2238
    %v2240 = vsub.f32 1.0, %v2239
    %v2241 = vmul.f32 %v2238, %v2240
    %v2242 = vadd.f32 %v2238, %v2241
    %vm2243 = vweird.f32 %v2132
    %vm2244 = vweird.f32 %v2238
    %vm2245 = vmor %vm2243, %vm2244
    %v2246 = vsel %vm2245, %v2238, %v2242
    %v2247 = vand.u32 2147483647, %v2132
    %vm2248 = vcmp.eq.f32.partialorder %v2247, 8.507059e+37
    %v2249 = vand.u32 %v2132, 2147483648
    %v2250 = vor.u32 1.1754944e-38, %v2249
    %v2251 = vsel %vm2248, %v2250, %v2246
    %v2252 = vmul.f32 1.0, %v2251
    %v2253 = vld [vmem:[#allocation8] sm:$0x2]
    %v2254 = vld [vmem:[#allocation8 + $0x4] sm:$0x2]
    %v2255 = vld [vmem:[#allocation8 + $0x8] sm:$0x2]
    %v2256 = vld [vmem:[#allocation8 + $0xc] sm:$0x2]
    %v2257 = vld [vmem:[#allocation8 + $0x10] sm:$0x2]
    %v2258 = vld [vmem:[#allocation8 + $0x14] sm:$0x2]
    %v2259 = vld [vmem:[#allocation8 + $0x18] sm:$0x2]
    %v2260 = vld [vmem:[#allocation8 + $0x1c] sm:$0x2]
    %v2261 = vunpack.c.l.bf16 %v2253
    %v2262 = vunpack.c.l.bf16 %v2254
    %v2263 = vunpack.c.l.bf16 %v2255
    %v2264 = vunpack.c.l.bf16 %v2256
    %v2265 = vunpack.c.l.bf16 %v2257
    %v2266 = vunpack.c.l.bf16 %v2258
    %v2267 = vunpack.c.l.bf16 %v2259
    %v2268 = vunpack.c.l.bf16 %v2260
    %v2270 = vrot.slane %v2058, 5
    %v2271 = vrot.slane %v2058, 6
    %v2272 = vrot.slane %v2058, 7
    %v2273 = vrot.slane %v2058, 1
    %v2274 = vrot.slane %v2058, 2
    %v2275 = vrot.slane %v2058, 3
    %v2276 = vrot.slane %v2058, 4
    %v2285 = vadd.f32 %v2261, %v2270
    %v2286 = vadd.f32 %v2262, %v2271
    %v2287 = vadd.f32 %v2263, %v2272
    %v2288 = vadd.f32 %v2264, %v2058
    %v2289 = vadd.f32 %v2265, %v2273
    %v2290 = vadd.f32 %v2266, %v2274
    %v2291 = vadd.f32 %v2267, %v2275
    %v2292 = vadd.f32 %v2268, %v2276
    %v2293 = vxor.u32 %v2285, 2147483648
    %v2294 = vxor.u32 %v2286, 2147483648
    %v2295 = vxor.u32 %v2287, 2147483648
    %v2296 = vxor.u32 %v2288, 2147483648
    %v2297 = vxor.u32 %v2289, 2147483648
    %v2298 = vxor.u32 %v2290, 2147483648
    %v2299 = vxor.u32 %v2291, 2147483648
    %v2300 = vxor.u32 %v2292, 2147483648
    %v2301 = vmul.f32 %v2293, 1.442695
    %v2302 = vpow.pop %v2301
    %v2303 = vmul.f32 %v2294, 1.442695
    %v2304 = vpow.pop %v2303
    %v2305 = vmul.f32 %v2295, 1.442695
    %v2306 = vpow.pop %v2305
    %v2307 = vmul.f32 %v2296, 1.442695
    %v2308 = vpow.pop %v2307
    %v2309 = vmul.f32 %v2297, 1.442695
    %v2310 = vpow.pop %v2309
    %v2311 = vmul.f32 %v2298, 1.442695
    %v2312 = vpow.pop %v2311
    %v2313 = vmul.f32 %v2299, 1.442695
    %v2314 = vpow.pop %v2313
    %v2315 = vmul.f32 %v2300, 1.442695
    %v2316 = vpow.pop %v2315
    %v2317 = vadd.f32 %v2302, 1.0
    %v2318 = vadd.f32 %v2304, 1.0
    %v2319 = vadd.f32 %v2306, 1.0
    %v2320 = vadd.f32 %v2308, 1.0
    %v2321 = vadd.f32 %v2310, 1.0
    %v2322 = vadd.f32 %v2312, 1.0
    %v2323 = vadd.f32 %v2314, 1.0
    %v2324 = vadd.f32 %v2316, 1.0
    %v2325 = vrcp.pop %v2317
    %v2326 = vmul.f32 %v2317, %v2325
    %v2327 = vsub.f32 1.0, %v2326
    %v2328 = vmul.f32 %v2325, %v2327
    %v2329 = vadd.f32 %v2325, %v2328
    %vm2330 = vweird.f32 %v2317
    %vm2331 = vweird.f32 %v2325
    %vm2332 = vmor %vm2330, %vm2331
    %v2333 = vsel %vm2332, %v2325, %v2329
    %v2334 = vand.u32 2147483647, %v2317
    %vm2335 = vcmp.eq.f32.partialorder %v2334, 8.507059e+37
    %v2336 = vand.u32 %v2317, 2147483648
    %v2337 = vor.u32 1.1754944e-38, %v2336
    %v2338 = vsel %vm2335, %v2337, %v2333
    %v2339 = vmul.f32 1.0, %v2338
    %v2340 = vrcp.pop %v2318
    %v2341 = vmul.f32 %v2318, %v2340
    %v2342 = vsub.f32 1.0, %v2341
    %v2343 = vmul.f32 %v2340, %v2342
    %v2344 = vadd.f32 %v2340, %v2343
    %vm2345 = vweird.f32 %v2318
    %vm2346 = vweird.f32 %v2340
    %vm2347 = vmor %vm2345, %vm2346
    %v2348 = vsel %vm2347, %v2340, %v2344
    %v2349 = vand.u32 2147483647, %v2318
    %vm2350 = vcmp.eq.f32.partialorder %v2349, 8.507059e+37
    %v2351 = vand.u32 %v2318, 2147483648
    %v2352 = vor.u32 1.1754944e-38, %v2351
    %v2353 = vsel %vm2350, %v2352, %v2348
    %v2354 = vmul.f32 1.0, %v2353
    %v2355 = vrcp.pop %v2319
    %v2356 = vmul.f32 %v2319, %v2355
    %v2357 = vsub.f32 1.0, %v2356
    %v2358 = vmul.f32 %v2355, %v2357
    %v2359 = vadd.f32 %v2355, %v2358
    %vm2360 = vweird.f32 %v2319
    %vm2361 = vweird.f32 %v2355
    %vm2362 = vmor %vm2360, %vm2361
    %v2363 = vsel %vm2362, %v2355, %v2359
    %v2364 = vand.u32 2147483647, %v2319
    %vm2365 = vcmp.eq.f32.partialorder %v2364, 8.507059e+37
    %v2366 = vand.u32 %v2319, 2147483648
    %v2367 = vor.u32 1.1754944e-38, %v2366
    %v2368 = vsel %vm2365, %v2367, %v2363
    %v2369 = vmul.f32 1.0, %v2368
    %v2370 = vrcp.pop %v2320
    %v2371 = vmul.f32 %v2320, %v2370
    %v2372 = vsub.f32 1.0, %v2371
    %v2373 = vmul.f32 %v2370, %v2372
    %v2374 = vadd.f32 %v2370, %v2373
    %vm2375 = vweird.f32 %v2320
    %vm2376 = vweird.f32 %v2370
    %vm2377 = vmor %vm2375, %vm2376
    %v2378 = vsel %vm2377, %v2370, %v2374
    %v2379 = vand.u32 2147483647, %v2320
    %vm2380 = vcmp.eq.f32.partialorder %v2379, 8.507059e+37
    %v2381 = vand.u32 %v2320, 2147483648
    %v2382 = vor.u32 1.1754944e-38, %v2381
    %v2383 = vsel %vm2380, %v2382, %v2378
    %v2384 = vmul.f32 1.0, %v2383
    %v2385 = vrcp.pop %v2321
    %v2386 = vmul.f32 %v2321, %v2385
    %v2387 = vsub.f32 1.0, %v2386
    %v2388 = vmul.f32 %v2385, %v2387
    %v2389 = vadd.f32 %v2385, %v2388
    %vm2390 = vweird.f32 %v2321
    %vm2391 = vweird.f32 %v2385
    %vm2392 = vmor %vm2390, %vm2391
    %v2393 = vsel %vm2392, %v2385, %v2389
    %v2394 = vand.u32 2147483647, %v2321
    %vm2395 = vcmp.eq.f32.partialorder %v2394, 8.507059e+37
    %v2396 = vand.u32 %v2321, 2147483648
    %v2397 = vor.u32 1.1754944e-38, %v2396
    %v2398 = vsel %vm2395, %v2397, %v2393
    %v2399 = vmul.f32 1.0, %v2398
    %v2400 = vrcp.pop %v2322
    %v2401 = vmul.f32 %v2322, %v2400
    %v2402 = vsub.f32 1.0, %v2401
    %v2403 = vmul.f32 %v2400, %v2402
    %v2404 = vadd.f32 %v2400, %v2403
    %vm2405 = vweird.f32 %v2322
    %vm2406 = vweird.f32 %v2400
    %vm2407 = vmor %vm2405, %vm2406
    %v2408 = vsel %vm2407, %v2400, %v2404
    %v2409 = vand.u32 2147483647, %v2322
    %vm2410 = vcmp.eq.f32.partialorder %v2409, 8.507059e+37
    %v2411 = vand.u32 %v2322, 2147483648
    %v2412 = vor.u32 1.1754944e-38, %v2411
    %v2413 = vsel %vm2410, %v2412, %v2408
    %v2414 = vmul.f32 1.0, %v2413
    %v2415 = vrcp.pop %v2323
    %v2416 = vmul.f32 %v2323, %v2415
    %v2417 = vsub.f32 1.0, %v2416
    %v2418 = vmul.f32 %v2415, %v2417
    %v2419 = vadd.f32 %v2415, %v2418
    %vm2420 = vweird.f32 %v2323
    %vm2421 = vweird.f32 %v2415
    %vm2422 = vmor %vm2420, %vm2421
    %v2423 = vsel %vm2422, %v2415, %v2419
    %v2424 = vand.u32 2147483647, %v2323
    %vm2425 = vcmp.eq.f32.partialorder %v2424, 8.507059e+37
    %v2426 = vand.u32 %v2323, 2147483648
    %v2427 = vor.u32 1.1754944e-38, %v2426
    %v2428 = vsel %vm2425, %v2427, %v2423
    %v2429 = vmul.f32 1.0, %v2428
    %v2430 = vrcp.pop %v2324
    %v2431 = vmul.f32 %v2324, %v2430
    %v2432 = vsub.f32 1.0, %v2431
    %v2433 = vmul.f32 %v2430, %v2432
    %v2434 = vadd.f32 %v2430, %v2433
    %vm2435 = vweird.f32 %v2324
    %vm2436 = vweird.f32 %v2430
    %vm2437 = vmor %vm2435, %vm2436
    %v2438 = vsel %vm2437, %v2430, %v2434
    %v2439 = vand.u32 2147483647, %v2324
    %vm2440 = vcmp.eq.f32.partialorder %v2439, 8.507059e+37
    %v2441 = vand.u32 %v2324, 2147483648
    %v2442 = vor.u32 1.1754944e-38, %v2441
    %v2443 = vsel %vm2440, %v2442, %v2438
    %v2444 = vmul.f32 1.0, %v2443
    %v2445 = vld [vmem:[#allocation9] sm:$0x2]
    %v2446 = vld [vmem:[#allocation9 + $0x4] sm:$0x2]
    %v2447 = vld [vmem:[#allocation9 + $0x8] sm:$0x2]
    %v2448 = vld [vmem:[#allocation9 + $0xc] sm:$0x2]
    %v2449 = vld [vmem:[#allocation9 + $0x10] sm:$0x2]
    %v2450 = vld [vmem:[#allocation9 + $0x14] sm:$0x2]
    %v2451 = vld [vmem:[#allocation9 + $0x18] sm:$0x2]
    %v2452 = vld [vmem:[#allocation9 + $0x1c] sm:$0x2]
    %v2453 = vunpack.c.l.bf16 %v2445
    %v2454 = vunpack.c.l.bf16 %v2446
    %v2455 = vunpack.c.l.bf16 %v2447
    %v2456 = vunpack.c.l.bf16 %v2448
    %v2457 = vunpack.c.l.bf16 %v2449
    %v2458 = vunpack.c.l.bf16 %v2450
    %v2459 = vunpack.c.l.bf16 %v2451
    %v2460 = vunpack.c.l.bf16 %v2452
    %2461 = vmatpush.bf16.msra.mxu0 0
    %2462 = vmatpush.bf16.msra.mxu0 0
    %2463 = vmatpush.bf16.msra.mxu0 0
    %2464 = vmatpush.bf16.msra.mxu0 0
    %2465 = vmatpush.bf16.msra.mxu0 0
    %2466 = vmatpush.bf16.msra.mxu0 0
    %2467 = vmatpush.bf16.msra.mxu0 %v629
    %2468 = vmatpush.bf16.msra.mxu0 %v628
    %2469 = vmatmul.bf16.gmra.mxu0 %v2033
    %v2470 = vpop.f32.mrf.mxu0
    %v2471 = vadd.f32 %v618, %v2470
    %v2472 = vpop.f32.mrf.mxu0
    %2473 = vdwg.mxu0
    %v2475 = vrot.slane %v2471, 5
    %v2476 = vrot.slane %v2471, 6
    %v2477 = vrot.slane %v2471, 7
    %v2478 = vrot.slane %v2471, 1
    %v2479 = vrot.slane %v2471, 2
    %v2480 = vrot.slane %v2471, 3
    %v2481 = vrot.slane %v2471, 4
    %v2490 = vmul.f32 %v2147, %v2475
    %v2491 = vmul.f32 %v2162, %v2476
    %v2492 = vmul.f32 %v2177, %v2477
    %v2493 = vmul.f32 %v2192, %v2471
    %v2494 = vmul.f32 %v2207, %v2478
    %v2495 = vmul.f32 %v2222, %v2479
    %v2496 = vmul.f32 %v2237, %v2480
    %v2497 = vmul.f32 %v2252, %v2481
    %v2498 = vadd.f32 %v2453, %v2490
    %v2499 = vadd.f32 %v2454, %v2491
    %v2500 = vadd.f32 %v2455, %v2492
    %v2501 = vadd.f32 %v2456, %v2493
    %v2502 = vadd.f32 %v2457, %v2494
    %v2503 = vadd.f32 %v2458, %v2495
    %v2504 = vadd.f32 %v2459, %v2496
    %v2505 = vadd.f32 %v2460, %v2497
    %v2506 = vtanh.pop %v2498
    %v2507 = vtanh.pop %v2499
    %v2508 = vtanh.pop %v2500
    %v2509 = vtanh.pop %v2501
    %v2510 = vtanh.pop %v2502
    %v2511 = vtanh.pop %v2503
    %v2512 = vtanh.pop %v2504
    %v2513 = vtanh.pop %v2505
    %v2522 = vrot.slane %v2506, 3
    %v2523 = vrot.slane %v2507, 2
    %v2524 = vsel %vm694, %v2523, %v2522
    %v2525 = vrot.slane %v2508, 1
    %v2526 = vsel %vm697, %v2525, %v2524
    %v2527 = vsel %vm700, %v2509, %v2526
    %v2528 = vrot.slane %v2510, 7
    %v2529 = vsel %vm703, %v2528, %v2527
    %v2530 = vrot.slane %v2511, 6
    %v2531 = vsel %vm706, %v2530, %v2529
    %v2532 = vrot.slane %v2512, 5
    %v2533 = vsel %vm709, %v2532, %v2531
    %v2534 = vrot.slane %v2513, 4
    %v2535 = vsel %vm712, %v2534, %v2533
    %v2537 = vsub.f32 %v2006, %v2535
    %v2539 = vrot.slane %v2537, 5
    %v2540 = vrot.slane %v2537, 6
    %v2541 = vrot.slane %v2537, 7
    %v2542 = vrot.slane %v2537, 1
    %v2543 = vrot.slane %v2537, 2
    %v2544 = vrot.slane %v2537, 3
    %v2545 = vrot.slane %v2537, 4
    %v2554 = vmul.f32 %v2339, %v2539
    %v2555 = vmul.f32 %v2354, %v2540
    %v2556 = vmul.f32 %v2369, %v2541
    %v2557 = vmul.f32 %v2384, %v2537
    %v2558 = vmul.f32 %v2399, %v2542
    %v2559 = vmul.f32 %v2414, %v2543
    %v2560 = vmul.f32 %v2429, %v2544
    %v2561 = vmul.f32 %v2444, %v2545
    %v2562 = vadd.f32 %v2506, %v2554
    %v2563 = vadd.f32 %v2507, %v2555
    %v2564 = vadd.f32 %v2508, %v2556
    %v2565 = vadd.f32 %v2509, %v2557
    %v2566 = vadd.f32 %v2510, %v2558
    %v2567 = vadd.f32 %v2511, %v2559
    %v2568 = vadd.f32 %v2512, %v2560
    %v2569 = vadd.f32 %v2513, %v2561
    %v2571 = vsub.f32 %v2562, %v2012
    %v2572 = vsub.f32 %v2563, %v2013
    %v2573 = vsub.f32 %v2564, %v2014
    %v2574 = vsub.f32 %v2565, %v2006
    %v2575 = vsub.f32 %v2566, %v2008
    %v2576 = vsub.f32 %v2567, %v2009
    %v2577 = vsub.f32 %v2568, %v2010
    %v2578 = vsub.f32 %v2569, %v2011
    %2580 = vset.pattern.permute.xlu0 3
    %2581 = vperm.xlu0 %2580, %v2030
    %v2582 = vpop.permute.xlu0 %2581
    %v2592 = vrot.slane %v2571, 3
    %v2593 = vrot.slane %v2572, 2
    %v2594 = vsel %vm694, %v2593, %v2592
    %v2595 = vrot.slane %v2573, 1
    %v2596 = vsel %vm697, %v2595, %v2594
    %v2597 = vsel %vm700, %v2574, %v2596
    %v2598 = vrot.slane %v2575, 7
    %v2599 = vsel %vm703, %v2598, %v2597
    %v2600 = vrot.slane %v2576, 6
    %v2601 = vsel %vm706, %v2600, %v2599
    %v2602 = vrot.slane %v2577, 5
    %v2603 = vsel %vm709, %v2602, %v2601
    %v2604 = vrot.slane %v2578, 4
    %v2605 = vsel %vm712, %v2604, %v2603
    %v2607 = vmul.f32 %v2582, %v2605
    %v2608 = vadd.f32 %v2006, %v2607
    %v2610 = vrot.slane %v2608, 1
    %v2611 = vrot.slane %v2608, 2
    %v2612 = vrot.slane %v2608, 3
    %v2613 = vrot.slane %v2608, 4
    %v2614 = vrot.slane %v2608, 5
    %v2615 = vrot.slane %v2608, 6
    %v2616 = vrot.slane %v2608, 7
    %2624 = vst.msk [vmem:[#allocation15 + $0x3] sm:$0x1] %vm817, %v2608
    %2625 = vst.msk [vmem:[#allocation15 + $0xb] sm:$0x1] %vm817, %v2610
    %2626 = vst.msk [vmem:[#allocation15 + $0x13] sm:$0x1] %vm817, %v2611
    %2627 = vst.msk [vmem:[#allocation15 + $0x1b] sm:$0x1] %vm817, %v2612
    %2628 = vst.msk [vmem:[#allocation15 + $0x23] sm:$0x1] %vm817, %v2613
    %2629 = vst.msk [vmem:[#allocation15 + $0x2b] sm:$0x1] %vm817, %v2614
    %2630 = vst.msk [vmem:[#allocation15 + $0x33] sm:$0x1] %vm817, %v2615
    %2631 = vst.msk [vmem:[#allocation15 + $0x3b] sm:$0x1] %vm817, %v2616
    %v2632 = vld [vmem:[#allocation3] sm:$0xff]
    %v2633 = vpack.c.bf16 %v2608, %v2608
    %v2635 = vsel %vm175, %v2633, 0
    %2637 = vmatpush.bf16.msra.mxu0 0
    %2638 = vmatpush.bf16.msra.mxu0 0
    %2639 = vmatpush.bf16.msra.mxu0 0
    %2640 = vmatpush.bf16.msra.mxu0 0
    %2641 = vmatpush.bf16.msra.mxu0 0
    %2642 = vmatpush.bf16.msra.mxu0 0
    %2643 = vmatpush.bf16.msra.mxu0 %v172
    %2644 = vmatpush.bf16.msra.mxu0 %v171
    %2645 = vmatmul.bf16.gmra.mxu0 %v2635
    %v2646 = vpop.f32.mrf.mxu0
    %v2647 = vadd.f32 0.0, %v2646
    %v2648 = vpop.f32.mrf.mxu0
    %2649 = vdwg.mxu0
    %2650 = vmatpush.bf16.msra.mxu0 0
    %2651 = vmatpush.bf16.msra.mxu0 0
    %2652 = vmatpush.bf16.msra.mxu0 0
    %2653 = vmatpush.bf16.msra.mxu0 0
    %2654 = vmatpush.bf16.msra.mxu0 0
    %2655 = vmatpush.bf16.msra.mxu0 0
    %2656 = vmatpush.bf16.msra.mxu0 %v201
    %2657 = vmatpush.bf16.msra.mxu0 %v200
    %2658 = vmatmul.bf16.gmra.mxu0 %v2635
    %v2659 = vpop.f32.mrf.mxu0
    %v2660 = vadd.f32 0.0, %v2659
    %v2661 = vpop.f32.mrf.mxu0
    %2662 = vdwg.mxu0
    %v2663 = vld [vmem:[#allocation6] sm:$0x4]
    %v2664 = vld [vmem:[#allocation6 + $0x4] sm:$0x4]
    %v2665 = vld [vmem:[#allocation6 + $0x8] sm:$0x4]
    %v2666 = vld [vmem:[#allocation6 + $0xc] sm:$0x4]
    %v2667 = vld [vmem:[#allocation6 + $0x10] sm:$0x4]
    %v2668 = vld [vmem:[#allocation6 + $0x14] sm:$0x4]
    %v2669 = vld [vmem:[#allocation6 + $0x18] sm:$0x4]
    %v2670 = vld [vmem:[#allocation6 + $0x1c] sm:$0x4]
    %v2671 = vunpack.c.l.bf16 %v2663
    %v2672 = vunpack.c.l.bf16 %v2664
    %v2673 = vunpack.c.l.bf16 %v2665
    %v2674 = vunpack.c.l.bf16 %v2666
    %v2675 = vunpack.c.l.bf16 %v2667
    %v2676 = vunpack.c.l.bf16 %v2668
    %v2677 = vunpack.c.l.bf16 %v2669
    %v2678 = vunpack.c.l.bf16 %v2670
    %v2680 = vrot.slane %v2647, 4
    %v2681 = vrot.slane %v2647, 5
    %v2682 = vrot.slane %v2647, 6
    %v2683 = vrot.slane %v2647, 7
    %v2684 = vrot.slane %v2647, 1
    %v2685 = vrot.slane %v2647, 2
    %v2686 = vrot.slane %v2647, 3
    %v2695 = vadd.f32 %v2671, %v2680
    %v2696 = vadd.f32 %v2672, %v2681
    %v2697 = vadd.f32 %v2673, %v2682
    %v2698 = vadd.f32 %v2674, %v2683
    %v2699 = vadd.f32 %v2675, %v2647
    %v2700 = vadd.f32 %v2676, %v2684
    %v2701 = vadd.f32 %v2677, %v2685
    %v2702 = vadd.f32 %v2678, %v2686
    %v2703 = vxor.u32 %v2695, 2147483648
    %v2704 = vxor.u32 %v2696, 2147483648
    %v2705 = vxor.u32 %v2697, 2147483648
    %v2706 = vxor.u32 %v2698, 2147483648
    %v2707 = vxor.u32 %v2699, 2147483648
    %v2708 = vxor.u32 %v2700, 2147483648
    %v2709 = vxor.u32 %v2701, 2147483648
    %v2710 = vxor.u32 %v2702, 2147483648
    %v2711 = vmul.f32 %v2703, 1.442695
    %v2712 = vpow.pop %v2711
    %v2713 = vmul.f32 %v2704, 1.442695
    %v2714 = vpow.pop %v2713
    %v2715 = vmul.f32 %v2705, 1.442695
    %v2716 = vpow.pop %v2715
    %v2717 = vmul.f32 %v2706, 1.442695
    %v2718 = vpow.pop %v2717
    %v2719 = vmul.f32 %v2707, 1.442695
    %v2720 = vpow.pop %v2719
    %v2721 = vmul.f32 %v2708, 1.442695
    %v2722 = vpow.pop %v2721
    %v2723 = vmul.f32 %v2709, 1.442695
    %v2724 = vpow.pop %v2723
    %v2725 = vmul.f32 %v2710, 1.442695
    %v2726 = vpow.pop %v2725
    %v2727 = vadd.f32 %v2712, 1.0
    %v2728 = vadd.f32 %v2714, 1.0
    %v2729 = vadd.f32 %v2716, 1.0
    %v2730 = vadd.f32 %v2718, 1.0
    %v2731 = vadd.f32 %v2720, 1.0
    %v2732 = vadd.f32 %v2722, 1.0
    %v2733 = vadd.f32 %v2724, 1.0
    %v2734 = vadd.f32 %v2726, 1.0
    %v2735 = vrcp.pop %v2727
    %v2736 = vmul.f32 %v2727, %v2735
    %v2737 = vsub.f32 1.0, %v2736
    %v2738 = vmul.f32 %v2735, %v2737
    %v2739 = vadd.f32 %v2735, %v2738
    %vm2740 = vweird.f32 %v2727
    %vm2741 = vweird.f32 %v2735
    %vm2742 = vmor %vm2740, %vm2741
    %v2743 = vsel %vm2742, %v2735, %v2739
    %v2744 = vand.u32 2147483647, %v2727
    %vm2745 = vcmp.eq.f32.partialorder %v2744, 8.507059e+37
    %v2746 = vand.u32 %v2727, 2147483648
    %v2747 = vor.u32 1.1754944e-38, %v2746
    %v2748 = vsel %vm2745, %v2747, %v2743
    %v2749 = vmul.f32 1.0, %v2748
    %v2750 = vrcp.pop %v2728
    %v2751 = vmul.f32 %v2728, %v2750
    %v2752 = vsub.f32 1.0, %v2751
    %v2753 = vmul.f32 %v2750, %v2752
    %v2754 = vadd.f32 %v2750, %v2753
    %vm2755 = vweird.f32 %v2728
    %vm2756 = vweird.f32 %v2750
    %vm2757 = vmor %vm2755, %vm2756
    %v2758 = vsel %vm2757, %v2750, %v2754
    %v2759 = vand.u32 2147483647, %v2728
    %vm2760 = vcmp.eq.f32.partialorder %v2759, 8.507059e+37
    %v2761 = vand.u32 %v2728, 2147483648
    %v2762 = vor.u32 1.1754944e-38, %v2761
    %v2763 = vsel %vm2760, %v2762, %v2758
    %v2764 = vmul.f32 1.0, %v2763
    %v2765 = vrcp.pop %v2729
    %v2766 = vmul.f32 %v2729, %v2765
    %v2767 = vsub.f32 1.0, %v2766
    %v2768 = vmul.f32 %v2765, %v2767
    %v2769 = vadd.f32 %v2765, %v2768
    %vm2770 = vweird.f32 %v2729
    %vm2771 = vweird.f32 %v2765
    %vm2772 = vmor %vm2770, %vm2771
    %v2773 = vsel %vm2772, %v2765, %v2769
    %v2774 = vand.u32 2147483647, %v2729
    %vm2775 = vcmp.eq.f32.partialorder %v2774, 8.507059e+37
    %v2776 = vand.u32 %v2729, 2147483648
    %v2777 = vor.u32 1.1754944e-38, %v2776
    %v2778 = vsel %vm2775, %v2777, %v2773
    %v2779 = vmul.f32 1.0, %v2778
    %v2780 = vrcp.pop %v2730
    %v2781 = vmul.f32 %v2730, %v2780
    %v2782 = vsub.f32 1.0, %v2781
    %v2783 = vmul.f32 %v2780, %v2782
    %v2784 = vadd.f32 %v2780, %v2783
    %vm2785 = vweird.f32 %v2730
    %vm2786 = vweird.f32 %v2780
    %vm2787 = vmor %vm2785, %vm2786
    %v2788 = vsel %vm2787, %v2780, %v2784
    %v2789 = vand.u32 2147483647, %v2730
    %vm2790 = vcmp.eq.f32.partialorder %v2789, 8.507059e+37
    %v2791 = vand.u32 %v2730, 2147483648
    %v2792 = vor.u32 1.1754944e-38, %v2791
    %v2793 = vsel %vm2790, %v2792, %v2788
    %v2794 = vmul.f32 1.0, %v2793
    %v2795 = vrcp.pop %v2731
    %v2796 = vmul.f32 %v2731, %v2795
    %v2797 = vsub.f32 1.0, %v2796
    %v2798 = vmul.f32 %v2795, %v2797
    %v2799 = vadd.f32 %v2795, %v2798
    %vm2800 = vweird.f32 %v2731
    %vm2801 = vweird.f32 %v2795
    %vm2802 = vmor %vm2800, %vm2801
    %v2803 = vsel %vm2802, %v2795, %v2799
    %v2804 = vand.u32 2147483647, %v2731
    %vm2805 = vcmp.eq.f32.partialorder %v2804, 8.507059e+37
    %v2806 = vand.u32 %v2731, 2147483648
    %v2807 = vor.u32 1.1754944e-38, %v2806
    %v2808 = vsel %vm2805, %v2807, %v2803
    %v2809 = vmul.f32 1.0, %v2808
    %v2810 = vrcp.pop %v2732
    %v2811 = vmul.f32 %v2732, %v2810
    %v2812 = vsub.f32 1.0, %v2811
    %v2813 = vmul.f32 %v2810, %v2812
    %v2814 = vadd.f32 %v2810, %v2813
    %vm2815 = vweird.f32 %v2732
    %vm2816 = vweird.f32 %v2810
    %vm2817 = vmor %vm2815, %vm2816
    %v2818 = vsel %vm2817, %v2810, %v2814
    %v2819 = vand.u32 2147483647, %v2732
    %vm2820 = vcmp.eq.f32.partialorder %v2819, 8.507059e+37
    %v2821 = vand.u32 %v2732, 2147483648
    %v2822 = vor.u32 1.1754944e-38, %v2821
    %v2823 = vsel %vm2820, %v2822, %v2818
    %v2824 = vmul.f32 1.0, %v2823
    %v2825 = vrcp.pop %v2733
    %v2826 = vmul.f32 %v2733, %v2825
    %v2827 = vsub.f32 1.0, %v2826
    %v2828 = vmul.f32 %v2825, %v2827
    %v2829 = vadd.f32 %v2825, %v2828
    %vm2830 = vweird.f32 %v2733
    %vm2831 = vweird.f32 %v2825
    %vm2832 = vmor %vm2830, %vm2831
    %v2833 = vsel %vm2832, %v2825, %v2829
    %v2834 = vand.u32 2147483647, %v2733
    %vm2835 = vcmp.eq.f32.partialorder %v2834, 8.507059e+37
    %v2836 = vand.u32 %v2733, 2147483648
    %v2837 = vor.u32 1.1754944e-38, %v2836
    %v2838 = vsel %vm2835, %v2837, %v2833
    %v2839 = vmul.f32 1.0, %v2838
    %v2840 = vrcp.pop %v2734
    %v2841 = vmul.f32 %v2734, %v2840
    %v2842 = vsub.f32 1.0, %v2841
    %v2843 = vmul.f32 %v2840, %v2842
    %v2844 = vadd.f32 %v2840, %v2843
    %vm2845 = vweird.f32 %v2734
    %vm2846 = vweird.f32 %v2840
    %vm2847 = vmor %vm2845, %vm2846
    %v2848 = vsel %vm2847, %v2840, %v2844
    %v2849 = vand.u32 2147483647, %v2734
    %vm2850 = vcmp.eq.f32.partialorder %v2849, 8.507059e+37
    %v2851 = vand.u32 %v2734, 2147483648
    %v2852 = vor.u32 1.1754944e-38, %v2851
    %v2853 = vsel %vm2850, %v2852, %v2848
    %v2854 = vmul.f32 1.0, %v2853
    %v2855 = vld [vmem:[#allocation8] sm:$0x4]
    %v2856 = vld [vmem:[#allocation8 + $0x4] sm:$0x4]
    %v2857 = vld [vmem:[#allocation8 + $0x8] sm:$0x4]
    %v2858 = vld [vmem:[#allocation8 + $0xc] sm:$0x4]
    %v2859 = vld [vmem:[#allocation8 + $0x10] sm:$0x4]
    %v2860 = vld [vmem:[#allocation8 + $0x14] sm:$0x4]
    %v2861 = vld [vmem:[#allocation8 + $0x18] sm:$0x4]
    %v2862 = vld [vmem:[#allocation8 + $0x1c] sm:$0x4]
    %v2863 = vunpack.c.l.bf16 %v2855
    %v2864 = vunpack.c.l.bf16 %v2856
    %v2865 = vunpack.c.l.bf16 %v2857
    %v2866 = vunpack.c.l.bf16 %v2858
    %v2867 = vunpack.c.l.bf16 %v2859
    %v2868 = vunpack.c.l.bf16 %v2860
    %v2869 = vunpack.c.l.bf16 %v2861
    %v2870 = vunpack.c.l.bf16 %v2862
    %v2872 = vrot.slane %v2660, 4
    %v2873 = vrot.slane %v2660, 5
    %v2874 = vrot.slane %v2660, 6
    %v2875 = vrot.slane %v2660, 7
    %v2876 = vrot.slane %v2660, 1
    %v2877 = vrot.slane %v2660, 2
    %v2878 = vrot.slane %v2660, 3
    %v2887 = vadd.f32 %v2863, %v2872
    %v2888 = vadd.f32 %v2864, %v2873
    %v2889 = vadd.f32 %v2865, %v2874
    %v2890 = vadd.f32 %v2866, %v2875
    %v2891 = vadd.f32 %v2867, %v2660
    %v2892 = vadd.f32 %v2868, %v2876
    %v2893 = vadd.f32 %v2869, %v2877
    %v2894 = vadd.f32 %v2870, %v2878
    %v2895 = vxor.u32 %v2887, 2147483648
    %v2896 = vxor.u32 %v2888, 2147483648
    %v2897 = vxor.u32 %v2889, 2147483648
    %v2898 = vxor.u32 %v2890, 2147483648
    %v2899 = vxor.u32 %v2891, 2147483648
    %v2900 = vxor.u32 %v2892, 2147483648
    %v2901 = vxor.u32 %v2893, 2147483648
    %v2902 = vxor.u32 %v2894, 2147483648
    %v2903 = vmul.f32 %v2895, 1.442695
    %v2904 = vpow.pop %v2903
    %v2905 = vmul.f32 %v2896, 1.442695
    %v2906 = vpow.pop %v2905
    %v2907 = vmul.f32 %v2897, 1.442695
    %v2908 = vpow.pop %v2907
    %v2909 = vmul.f32 %v2898, 1.442695
    %v2910 = vpow.pop %v2909
    %v2911 = vmul.f32 %v2899, 1.442695
    %v2912 = vpow.pop %v2911
    %v2913 = vmul.f32 %v2900, 1.442695
    %v2914 = vpow.pop %v2913
    %v2915 = vmul.f32 %v2901, 1.442695
    %v2916 = vpow.pop %v2915
    %v2917 = vmul.f32 %v2902, 1.442695
    %v2918 = vpow.pop %v2917
    %v2919 = vadd.f32 %v2904, 1.0
    %v2920 = vadd.f32 %v2906, 1.0
    %v2921 = vadd.f32 %v2908, 1.0
    %v2922 = vadd.f32 %v2910, 1.0
    %v2923 = vadd.f32 %v2912, 1.0
    %v2924 = vadd.f32 %v2914, 1.0
    %v2925 = vadd.f32 %v2916, 1.0
    %v2926 = vadd.f32 %v2918, 1.0
    %v2927 = vrcp.pop %v2919
    %v2928 = vmul.f32 %v2919, %v2927
    %v2929 = vsub.f32 1.0, %v2928
    %v2930 = vmul.f32 %v2927, %v2929
    %v2931 = vadd.f32 %v2927, %v2930
    %vm2932 = vweird.f32 %v2919
    %vm2933 = vweird.f32 %v2927
    %vm2934 = vmor %vm2932, %vm2933
    %v2935 = vsel %vm2934, %v2927, %v2931
    %v2936 = vand.u32 2147483647, %v2919
    %vm2937 = vcmp.eq.f32.partialorder %v2936, 8.507059e+37
    %v2938 = vand.u32 %v2919, 2147483648
    %v2939 = vor.u32 1.1754944e-38, %v2938
    %v2940 = vsel %vm2937, %v2939, %v2935
    %v2941 = vmul.f32 1.0, %v2940
    %v2942 = vrcp.pop %v2920
    %v2943 = vmul.f32 %v2920, %v2942
    %v2944 = vsub.f32 1.0, %v2943
    %v2945 = vmul.f32 %v2942, %v2944
    %v2946 = vadd.f32 %v2942, %v2945
    %vm2947 = vweird.f32 %v2920
    %vm2948 = vweird.f32 %v2942
    %vm2949 = vmor %vm2947, %vm2948
    %v2950 = vsel %vm2949, %v2942, %v2946
    %v2951 = vand.u32 2147483647, %v2920
    %vm2952 = vcmp.eq.f32.partialorder %v2951, 8.507059e+37
    %v2953 = vand.u32 %v2920, 2147483648
    %v2954 = vor.u32 1.1754944e-38, %v2953
    %v2955 = vsel %vm2952, %v2954, %v2950
    %v2956 = vmul.f32 1.0, %v2955
    %v2957 = vrcp.pop %v2921
    %v2958 = vmul.f32 %v2921, %v2957
    %v2959 = vsub.f32 1.0, %v2958
    %v2960 = vmul.f32 %v2957, %v2959
    %v2961 = vadd.f32 %v2957, %v2960
    %vm2962 = vweird.f32 %v2921
    %vm2963 = vweird.f32 %v2957
    %vm2964 = vmor %vm2962, %vm2963
    %v2965 = vsel %vm2964, %v2957, %v2961
    %v2966 = vand.u32 2147483647, %v2921
    %vm2967 = vcmp.eq.f32.partialorder %v2966, 8.507059e+37
    %v2968 = vand.u32 %v2921, 2147483648
    %v2969 = vor.u32 1.1754944e-38, %v2968
    %v2970 = vsel %vm2967, %v2969, %v2965
    %v2971 = vmul.f32 1.0, %v2970
    %v2972 = vrcp.pop %v2922
    %v2973 = vmul.f32 %v2922, %v2972
    %v2974 = vsub.f32 1.0, %v2973
    %v2975 = vmul.f32 %v2972, %v2974
    %v2976 = vadd.f32 %v2972, %v2975
    %vm2977 = vweird.f32 %v2922
    %vm2978 = vweird.f32 %v2972
    %vm2979 = vmor %vm2977, %vm2978
    %v2980 = vsel %vm2979, %v2972, %v2976
    %v2981 = vand.u32 2147483647, %v2922
    %vm2982 = vcmp.eq.f32.partialorder %v2981, 8.507059e+37
    %v2983 = vand.u32 %v2922, 2147483648
    %v2984 = vor.u32 1.1754944e-38, %v2983
    %v2985 = vsel %vm2982, %v2984, %v2980
    %v2986 = vmul.f32 1.0, %v2985
    %v2987 = vrcp.pop %v2923
    %v2988 = vmul.f32 %v2923, %v2987
    %v2989 = vsub.f32 1.0, %v2988
    %v2990 = vmul.f32 %v2987, %v2989
    %v2991 = vadd.f32 %v2987, %v2990
    %vm2992 = vweird.f32 %v2923
    %vm2993 = vweird.f32 %v2987
    %vm2994 = vmor %vm2992, %vm2993
    %v2995 = vsel %vm2994, %v2987, %v2991
    %v2996 = vand.u32 2147483647, %v2923
    %vm2997 = vcmp.eq.f32.partialorder %v2996, 8.507059e+37
    %v2998 = vand.u32 %v2923, 2147483648
    %v2999 = vor.u32 1.1754944e-38, %v2998
    %v3000 = vsel %vm2997, %v2999, %v2995
    %v3001 = vmul.f32 1.0, %v3000
    %v3002 = vrcp.pop %v2924
    %v3003 = vmul.f32 %v2924, %v3002
    %v3004 = vsub.f32 1.0, %v3003
    %v3005 = vmul.f32 %v3002, %v3004
    %v3006 = vadd.f32 %v3002, %v3005
    %vm3007 = vweird.f32 %v2924
    %vm3008 = vweird.f32 %v3002
    %vm3009 = vmor %vm3007, %vm3008
    %v3010 = vsel %vm3009, %v3002, %v3006
    %v3011 = vand.u32 2147483647, %v2924
    %vm3012 = vcmp.eq.f32.partialorder %v3011, 8.507059e+37
    %v3013 = vand.u32 %v2924, 2147483648
    %v3014 = vor.u32 1.1754944e-38, %v3013
    %v3015 = vsel %vm3012, %v3014, %v3010
    %v3016 = vmul.f32 1.0, %v3015
    %v3017 = vrcp.pop %v2925
    %v3018 = vmul.f32 %v2925, %v3017
    %v3019 = vsub.f32 1.0, %v3018
    %v3020 = vmul.f32 %v3017, %v3019
    %v3021 = vadd.f32 %v3017, %v3020
    %vm3022 = vweird.f32 %v2925
    %vm3023 = vweird.f32 %v3017
    %vm3024 = vmor %vm3022, %vm3023
    %v3025 = vsel %vm3024, %v3017, %v3021
    %v3026 = vand.u32 2147483647, %v2925
    %vm3027 = vcmp.eq.f32.partialorder %v3026, 8.507059e+37
    %v3028 = vand.u32 %v2925, 2147483648
    %v3029 = vor.u32 1.1754944e-38, %v3028
    %v3030 = vsel %vm3027, %v3029, %v3025
    %v3031 = vmul.f32 1.0, %v3030
    %v3032 = vrcp.pop %v2926
    %v3033 = vmul.f32 %v2926, %v3032
    %v3034 = vsub.f32 1.0, %v3033
    %v3035 = vmul.f32 %v3032, %v3034
    %v3036 = vadd.f32 %v3032, %v3035
    %vm3037 = vweird.f32 %v2926
    %vm3038 = vweird.f32 %v3032
    %vm3039 = vmor %vm3037, %vm3038
    %v3040 = vsel %vm3039, %v3032, %v3036
    %v3041 = vand.u32 2147483647, %v2926
    %vm3042 = vcmp.eq.f32.partialorder %v3041, 8.507059e+37
    %v3043 = vand.u32 %v2926, 2147483648
    %v3044 = vor.u32 1.1754944e-38, %v3043
    %v3045 = vsel %vm3042, %v3044, %v3040
    %v3046 = vmul.f32 1.0, %v3045
    %v3047 = vld [vmem:[#allocation9] sm:$0x4]
    %v3048 = vld [vmem:[#allocation9 + $0x4] sm:$0x4]
    %v3049 = vld [vmem:[#allocation9 + $0x8] sm:$0x4]
    %v3050 = vld [vmem:[#allocation9 + $0xc] sm:$0x4]
    %v3051 = vld [vmem:[#allocation9 + $0x10] sm:$0x4]
    %v3052 = vld [vmem:[#allocation9 + $0x14] sm:$0x4]
    %v3053 = vld [vmem:[#allocation9 + $0x18] sm:$0x4]
    %v3054 = vld [vmem:[#allocation9 + $0x1c] sm:$0x4]
    %v3055 = vunpack.c.l.bf16 %v3047
    %v3056 = vunpack.c.l.bf16 %v3048
    %v3057 = vunpack.c.l.bf16 %v3049
    %v3058 = vunpack.c.l.bf16 %v3050
    %v3059 = vunpack.c.l.bf16 %v3051
    %v3060 = vunpack.c.l.bf16 %v3052
    %v3061 = vunpack.c.l.bf16 %v3053
    %v3062 = vunpack.c.l.bf16 %v3054
    %3063 = vmatpush.bf16.msra.mxu0 0
    %3064 = vmatpush.bf16.msra.mxu0 0
    %3065 = vmatpush.bf16.msra.mxu0 0
    %3066 = vmatpush.bf16.msra.mxu0 0
    %3067 = vmatpush.bf16.msra.mxu0 0
    %3068 = vmatpush.bf16.msra.mxu0 0
    %3069 = vmatpush.bf16.msra.mxu0 %v629
    %3070 = vmatpush.bf16.msra.mxu0 %v628
    %3071 = vmatmul.bf16.gmra.mxu0 %v2635
    %v3072 = vpop.f32.mrf.mxu0
    %v3073 = vadd.f32 %v618, %v3072
    %v3074 = vpop.f32.mrf.mxu0
    %3075 = vdwg.mxu0
    %v3077 = vrot.slane %v3073, 4
    %v3078 = vrot.slane %v3073, 5
    %v3079 = vrot.slane %v3073, 6
    %v3080 = vrot.slane %v3073, 7
    %v3081 = vrot.slane %v3073, 1
    %v3082 = vrot.slane %v3073, 2
    %v3083 = vrot.slane %v3073, 3
    %v3092 = vmul.f32 %v2749, %v3077
    %v3093 = vmul.f32 %v2764, %v3078
    %v3094 = vmul.f32 %v2779, %v3079
    %v3095 = vmul.f32 %v2794, %v3080
    %v3096 = vmul.f32 %v2809, %v3073
    %v3097 = vmul.f32 %v2824, %v3081
    %v3098 = vmul.f32 %v2839, %v3082
    %v3099 = vmul.f32 %v2854, %v3083
    %v3100 = vadd.f32 %v3055, %v3092
    %v3101 = vadd.f32 %v3056, %v3093
    %v3102 = vadd.f32 %v3057, %v3094
    %v3103 = vadd.f32 %v3058, %v3095
    %v3104 = vadd.f32 %v3059, %v3096
    %v3105 = vadd.f32 %v3060, %v3097
    %v3106 = vadd.f32 %v3061, %v3098
    %v3107 = vadd.f32 %v3062, %v3099
    %v3108 = vtanh.pop %v3100
    %v3109 = vtanh.pop %v3101
    %v3110 = vtanh.pop %v3102
    %v3111 = vtanh.pop %v3103
    %v3112 = vtanh.pop %v3104
    %v3113 = vtanh.pop %v3105
    %v3114 = vtanh.pop %v3106
    %v3115 = vtanh.pop %v3107
    %v3124 = vrot.slane %v3108, 4
    %v3125 = vrot.slane %v3109, 3
    %v3126 = vsel %vm694, %v3125, %v3124
    %v3127 = vrot.slane %v3110, 2
    %v3128 = vsel %vm697, %v3127, %v3126
    %v3129 = vrot.slane %v3111, 1
    %v3130 = vsel %vm700, %v3129, %v3128
    %v3131 = vsel %vm703, %v3112, %v3130
    %v3132 = vrot.slane %v3113, 7
    %v3133 = vsel %vm706, %v3132, %v3131
    %v3134 = vrot.slane %v3114, 6
    %v3135 = vsel %vm709, %v3134, %v3133
    %v3136 = vrot.slane %v3115, 5
    %v3137 = vsel %vm712, %v3136, %v3135
    %v3139 = vsub.f32 %v2608, %v3137
    %v3141 = vrot.slane %v3139, 4
    %v3142 = vrot.slane %v3139, 5
    %v3143 = vrot.slane %v3139, 6
    %v3144 = vrot.slane %v3139, 7
    %v3145 = vrot.slane %v3139, 1
    %v3146 = vrot.slane %v3139, 2
    %v3147 = vrot.slane %v3139, 3
    %v3156 = vmul.f32 %v2941, %v3141
    %v3157 = vmul.f32 %v2956, %v3142
    %v3158 = vmul.f32 %v2971, %v3143
    %v3159 = vmul.f32 %v2986, %v3144
    %v3160 = vmul.f32 %v3001, %v3139
    %v3161 = vmul.f32 %v3016, %v3145
    %v3162 = vmul.f32 %v3031, %v3146
    %v3163 = vmul.f32 %v3046, %v3147
    %v3164 = vadd.f32 %v3108, %v3156
    %v3165 = vadd.f32 %v3109, %v3157
    %v3166 = vadd.f32 %v3110, %v3158
    %v3167 = vadd.f32 %v3111, %v3159
    %v3168 = vadd.f32 %v3112, %v3160
    %v3169 = vadd.f32 %v3113, %v3161
    %v3170 = vadd.f32 %v3114, %v3162
    %v3171 = vadd.f32 %v3115, %v3163
    %v3173 = vsub.f32 %v3164, %v2613
    %v3174 = vsub.f32 %v3165, %v2614
    %v3175 = vsub.f32 %v3166, %v2615
    %v3176 = vsub.f32 %v3167, %v2616
    %v3177 = vsub.f32 %v3168, %v2608
    %v3178 = vsub.f32 %v3169, %v2610
    %v3179 = vsub.f32 %v3170, %v2611
    %v3180 = vsub.f32 %v3171, %v2612
    %3182 = vset.pattern.permute.xlu0 4
    %3183 = vperm.xlu0 %3182, %v2632
    %v3184 = vpop.permute.xlu0 %3183
    %v3194 = vrot.slane %v3173, 4
    %v3195 = vrot.slane %v3174, 3
    %v3196 = vsel %vm694, %v3195, %v3194
    %v3197 = vrot.slane %v3175, 2
    %v3198 = vsel %vm697, %v3197, %v3196
    %v3199 = vrot.slane %v3176, 1
    %v3200 = vsel %vm700, %v3199, %v3198
    %v3201 = vsel %vm703, %v3177, %v3200
    %v3202 = vrot.slane %v3178, 7
    %v3203 = vsel %vm706, %v3202, %v3201
    %v3204 = vrot.slane %v3179, 6
    %v3205 = vsel %vm709, %v3204, %v3203
    %v3206 = vrot.slane %v3180, 5
    %v3207 = vsel %vm712, %v3206, %v3205
    %v3209 = vmul.f32 %v3184, %v3207
    %v3210 = vadd.f32 %v2608, %v3209
    %v3212 = vrot.slane %v3210, 1
    %v3213 = vrot.slane %v3210, 2
    %v3214 = vrot.slane %v3210, 3
    %v3215 = vrot.slane %v3210, 4
    %v3216 = vrot.slane %v3210, 5
    %v3217 = vrot.slane %v3210, 6
    %v3218 = vrot.slane %v3210, 7
    %3226 = vst.msk [vmem:[#allocation15 + $0x4] sm:$0x1] %vm817, %v3210
    %3227 = vst.msk [vmem:[#allocation15 + $0xc] sm:$0x1] %vm817, %v3212
    %3228 = vst.msk [vmem:[#allocation15 + $0x14] sm:$0x1] %vm817, %v3213
    %3229 = vst.msk [vmem:[#allocation15 + $0x1c] sm:$0x1] %vm817, %v3214
    %3230 = vst.msk [vmem:[#allocation15 + $0x24] sm:$0x1] %vm817, %v3215
    %3231 = vst.msk [vmem:[#allocation15 + $0x2c] sm:$0x1] %vm817, %v3216
    %3232 = vst.msk [vmem:[#allocation15 + $0x34] sm:$0x1] %vm817, %v3217
    %3233 = vst.msk [vmem:[#allocation15 + $0x3c] sm:$0x1] %vm817, %v3218
    %v3234 = vld [vmem:[#allocation3] sm:$0xff]
    %v3235 = vpack.c.bf16 %v3210, %v3210
    %v3237 = vsel %vm175, %v3235, 0
    %3239 = vmatpush.bf16.msra.mxu0 0
    %3240 = vmatpush.bf16.msra.mxu0 0
    %3241 = vmatpush.bf16.msra.mxu0 0
    %3242 = vmatpush.bf16.msra.mxu0 0
    %3243 = vmatpush.bf16.msra.mxu0 0
    %3244 = vmatpush.bf16.msra.mxu0 0
    %3245 = vmatpush.bf16.msra.mxu0 %v172
    %3246 = vmatpush.bf16.msra.mxu0 %v171
    %3247 = vmatmul.bf16.gmra.mxu0 %v3237
    %v3248 = vpop.f32.mrf.mxu0
    %v3249 = vadd.f32 0.0, %v3248
    %v3250 = vpop.f32.mrf.mxu0
    %3251 = vdwg.mxu0
    %3252 = vmatpush.bf16.msra.mxu0 0
    %3253 = vmatpush.bf16.msra.mxu0 0
    %3254 = vmatpush.bf16.msra.mxu0 0
    %3255 = vmatpush.bf16.msra.mxu0 0
    %3256 = vmatpush.bf16.msra.mxu0 0
    %3257 = vmatpush.bf16.msra.mxu0 0
    %3258 = vmatpush.bf16.msra.mxu0 %v201
    %3259 = vmatpush.bf16.msra.mxu0 %v200
    %3260 = vmatmul.bf16.gmra.mxu0 %v3237
    %v3261 = vpop.f32.mrf.mxu0
    %v3262 = vadd.f32 0.0, %v3261
    %v3263 = vpop.f32.mrf.mxu0
    %3264 = vdwg.mxu0
    %v3265 = vld [vmem:[#allocation6] sm:$0x4]
    %v3266 = vld [vmem:[#allocation6 + $0x4] sm:$0x4]
    %v3267 = vld [vmem:[#allocation6 + $0x8] sm:$0x4]
    %v3268 = vld [vmem:[#allocation6 + $0xc] sm:$0x4]
    %v3269 = vld [vmem:[#allocation6 + $0x10] sm:$0x4]
    %v3270 = vld [vmem:[#allocation6 + $0x14] sm:$0x4]
    %v3271 = vld [vmem:[#allocation6 + $0x18] sm:$0x4]
    %v3272 = vld [vmem:[#allocation6 + $0x1c] sm:$0x4]
    %v3273 = vunpack.c.l.bf16 %v3265
    %v3274 = vunpack.c.l.bf16 %v3266
    %v3275 = vunpack.c.l.bf16 %v3267
    %v3276 = vunpack.c.l.bf16 %v3268
    %v3277 = vunpack.c.l.bf16 %v3269
    %v3278 = vunpack.c.l.bf16 %v3270
    %v3279 = vunpack.c.l.bf16 %v3271
    %v3280 = vunpack.c.l.bf16 %v3272
    %v3282 = vrot.slane %v3249, 3
    %v3283 = vrot.slane %v3249, 4
    %v3284 = vrot.slane %v3249, 5
    %v3285 = vrot.slane %v3249, 6
    %v3286 = vrot.slane %v3249, 7
    %v3287 = vrot.slane %v3249, 1
    %v3288 = vrot.slane %v3249, 2
    %v3297 = vadd.f32 %v3273, %v3282
    %v3298 = vadd.f32 %v3274, %v3283
    %v3299 = vadd.f32 %v3275, %v3284
    %v3300 = vadd.f32 %v3276, %v3285
    %v3301 = vadd.f32 %v3277, %v3286
    %v3302 = vadd.f32 %v3278, %v3249
    %v3303 = vadd.f32 %v3279, %v3287
    %v3304 = vadd.f32 %v3280, %v3288
    %v3305 = vxor.u32 %v3297, 2147483648
    %v3306 = vxor.u32 %v3298, 2147483648
    %v3307 = vxor.u32 %v3299, 2147483648
    %v3308 = vxor.u32 %v3300, 2147483648
    %v3309 = vxor.u32 %v3301, 2147483648
    %v3310 = vxor.u32 %v3302, 2147483648
    %v3311 = vxor.u32 %v3303, 2147483648
    %v3312 = vxor.u32 %v3304, 2147483648
    %v3313 = vmul.f32 %v3305, 1.442695
    %v3314 = vpow.pop %v3313
    %v3315 = vmul.f32 %v3306, 1.442695
    %v3316 = vpow.pop %v3315
    %v3317 = vmul.f32 %v3307, 1.442695
    %v3318 = vpow.pop %v3317
    %v3319 = vmul.f32 %v3308, 1.442695
    %v3320 = vpow.pop %v3319
    %v3321 = vmul.f32 %v3309, 1.442695
    %v3322 = vpow.pop %v3321
    %v3323 = vmul.f32 %v3310, 1.442695
    %v3324 = vpow.pop %v3323
    %v3325 = vmul.f32 %v3311, 1.442695
    %v3326 = vpow.pop %v3325
    %v3327 = vmul.f32 %v3312, 1.442695
    %v3328 = vpow.pop %v3327
    %v3329 = vadd.f32 %v3314, 1.0
    %v3330 = vadd.f32 %v3316, 1.0
    %v3331 = vadd.f32 %v3318, 1.0
    %v3332 = vadd.f32 %v3320, 1.0
    %v3333 = vadd.f32 %v3322, 1.0
    %v3334 = vadd.f32 %v3324, 1.0
    %v3335 = vadd.f32 %v3326, 1.0
    %v3336 = vadd.f32 %v3328, 1.0
    %v3337 = vrcp.pop %v3329
    %v3338 = vmul.f32 %v3329, %v3337
    %v3339 = vsub.f32 1.0, %v3338
    %v3340 = vmul.f32 %v3337, %v3339
    %v3341 = vadd.f32 %v3337, %v3340
    %vm3342 = vweird.f32 %v3329
    %vm3343 = vweird.f32 %v3337
    %vm3344 = vmor %vm3342, %vm3343
    %v3345 = vsel %vm3344, %v3337, %v3341
    %v3346 = vand.u32 2147483647, %v3329
    %vm3347 = vcmp.eq.f32.partialorder %v3346, 8.507059e+37
    %v3348 = vand.u32 %v3329, 2147483648
    %v3349 = vor.u32 1.1754944e-38, %v3348
    %v3350 = vsel %vm3347, %v3349, %v3345
    %v3351 = vmul.f32 1.0, %v3350
    %v3352 = vrcp.pop %v3330
    %v3353 = vmul.f32 %v3330, %v3352
    %v3354 = vsub.f32 1.0, %v3353
    %v3355 = vmul.f32 %v3352, %v3354
    %v3356 = vadd.f32 %v3352, %v3355
    %vm3357 = vweird.f32 %v3330
    %vm3358 = vweird.f32 %v3352
    %vm3359 = vmor %vm3357, %vm3358
    %v3360 = vsel %vm3359, %v3352, %v3356
    %v3361 = vand.u32 2147483647, %v3330
    %vm3362 = vcmp.eq.f32.partialorder %v3361, 8.507059e+37
    %v3363 = vand.u32 %v3330, 2147483648
    %v3364 = vor.u32 1.1754944e-38, %v3363
    %v3365 = vsel %vm3362, %v3364, %v3360
    %v3366 = vmul.f32 1.0, %v3365
    %v3367 = vrcp.pop %v3331
    %v3368 = vmul.f32 %v3331, %v3367
    %v3369 = vsub.f32 1.0, %v3368
    %v3370 = vmul.f32 %v3367, %v3369
    %v3371 = vadd.f32 %v3367, %v3370
    %vm3372 = vweird.f32 %v3331
    %vm3373 = vweird.f32 %v3367
    %vm3374 = vmor %vm3372, %vm3373
    %v3375 = vsel %vm3374, %v3367, %v3371
    %v3376 = vand.u32 2147483647, %v3331
    %vm3377 = vcmp.eq.f32.partialorder %v3376, 8.507059e+37
    %v3378 = vand.u32 %v3331, 2147483648
    %v3379 = vor.u32 1.1754944e-38, %v3378
    %v3380 = vsel %vm3377, %v3379, %v3375
    %v3381 = vmul.f32 1.0, %v3380
    %v3382 = vrcp.pop %v3332
    %v3383 = vmul.f32 %v3332, %v3382
    %v3384 = vsub.f32 1.0, %v3383
    %v3385 = vmul.f32 %v3382, %v3384
    %v3386 = vadd.f32 %v3382, %v3385
    %vm3387 = vweird.f32 %v3332
    %vm3388 = vweird.f32 %v3382
    %vm3389 = vmor %vm3387, %vm3388
    %v3390 = vsel %vm3389, %v3382, %v3386
    %v3391 = vand.u32 2147483647, %v3332
    %vm3392 = vcmp.eq.f32.partialorder %v3391, 8.507059e+37
    %v3393 = vand.u32 %v3332, 2147483648
    %v3394 = vor.u32 1.1754944e-38, %v3393
    %v3395 = vsel %vm3392, %v3394, %v3390
    %v3396 = vmul.f32 1.0, %v3395
    %v3397 = vrcp.pop %v3333
    %v3398 = vmul.f32 %v3333, %v3397
    %v3399 = vsub.f32 1.0, %v3398
    %v3400 = vmul.f32 %v3397, %v3399
    %v3401 = vadd.f32 %v3397, %v3400
    %vm3402 = vweird.f32 %v3333
    %vm3403 = vweird.f32 %v3397
    %vm3404 = vmor %vm3402, %vm3403
    %v3405 = vsel %vm3404, %v3397, %v3401
    %v3406 = vand.u32 2147483647, %v3333
    %vm3407 = vcmp.eq.f32.partialorder %v3406, 8.507059e+37
    %v3408 = vand.u32 %v3333, 2147483648
    %v3409 = vor.u32 1.1754944e-38, %v3408
    %v3410 = vsel %vm3407, %v3409, %v3405
    %v3411 = vmul.f32 1.0, %v3410
    %v3412 = vrcp.pop %v3334
    %v3413 = vmul.f32 %v3334, %v3412
    %v3414 = vsub.f32 1.0, %v3413
    %v3415 = vmul.f32 %v3412, %v3414
    %v3416 = vadd.f32 %v3412, %v3415
    %vm3417 = vweird.f32 %v3334
    %vm3418 = vweird.f32 %v3412
    %vm3419 = vmor %vm3417, %vm3418
    %v3420 = vsel %vm3419, %v3412, %v3416
    %v3421 = vand.u32 2147483647, %v3334
    %vm3422 = vcmp.eq.f32.partialorder %v3421, 8.507059e+37
    %v3423 = vand.u32 %v3334, 2147483648
    %v3424 = vor.u32 1.1754944e-38, %v3423
    %v3425 = vsel %vm3422, %v3424, %v3420
    %v3426 = vmul.f32 1.0, %v3425
    %v3427 = vrcp.pop %v3335
    %v3428 = vmul.f32 %v3335, %v3427
    %v3429 = vsub.f32 1.0, %v3428
    %v3430 = vmul.f32 %v3427, %v3429
    %v3431 = vadd.f32 %v3427, %v3430
    %vm3432 = vweird.f32 %v3335
    %vm3433 = vweird.f32 %v3427
    %vm3434 = vmor %vm3432, %vm3433
    %v3435 = vsel %vm3434, %v3427, %v3431
    %v3436 = vand.u32 2147483647, %v3335
    %vm3437 = vcmp.eq.f32.partialorder %v3436, 8.507059e+37
    %v3438 = vand.u32 %v3335, 2147483648
    %v3439 = vor.u32 1.1754944e-38, %v3438
    %v3440 = vsel %vm3437, %v3439, %v3435
    %v3441 = vmul.f32 1.0, %v3440
    %v3442 = vrcp.pop %v3336
    %v3443 = vmul.f32 %v3336, %v3442
    %v3444 = vsub.f32 1.0, %v3443
    %v3445 = vmul.f32 %v3442, %v3444
    %v3446 = vadd.f32 %v3442, %v3445
    %vm3447 = vweird.f32 %v3336
    %vm3448 = vweird.f32 %v3442
    %vm3449 = vmor %vm3447, %vm3448
    %v3450 = vsel %vm3449, %v3442, %v3446
    %v3451 = vand.u32 2147483647, %v3336
    %vm3452 = vcmp.eq.f32.partialorder %v3451, 8.507059e+37
    %v3453 = vand.u32 %v3336, 2147483648
    %v3454 = vor.u32 1.1754944e-38, %v3453
    %v3455 = vsel %vm3452, %v3454, %v3450
    %v3456 = vmul.f32 1.0, %v3455
    %v3457 = vld [vmem:[#allocation8] sm:$0x4]
    %v3458 = vld [vmem:[#allocation8 + $0x4] sm:$0x4]
    %v3459 = vld [vmem:[#allocation8 + $0x8] sm:$0x4]
    %v3460 = vld [vmem:[#allocation8 + $0xc] sm:$0x4]
    %v3461 = vld [vmem:[#allocation8 + $0x10] sm:$0x4]
    %v3462 = vld [vmem:[#allocation8 + $0x14] sm:$0x4]
    %v3463 = vld [vmem:[#allocation8 + $0x18] sm:$0x4]
    %v3464 = vld [vmem:[#allocation8 + $0x1c] sm:$0x4]
    %v3465 = vunpack.c.l.bf16 %v3457
    %v3466 = vunpack.c.l.bf16 %v3458
    %v3467 = vunpack.c.l.bf16 %v3459
    %v3468 = vunpack.c.l.bf16 %v3460
    %v3469 = vunpack.c.l.bf16 %v3461
    %v3470 = vunpack.c.l.bf16 %v3462
    %v3471 = vunpack.c.l.bf16 %v3463
    %v3472 = vunpack.c.l.bf16 %v3464
    %v3474 = vrot.slane %v3262, 3
    %v3475 = vrot.slane %v3262, 4
    %v3476 = vrot.slane %v3262, 5
    %v3477 = vrot.slane %v3262, 6
    %v3478 = vrot.slane %v3262, 7
    %v3479 = vrot.slane %v3262, 1
    %v3480 = vrot.slane %v3262, 2
    %v3489 = vadd.f32 %v3465, %v3474
    %v3490 = vadd.f32 %v3466, %v3475
    %v3491 = vadd.f32 %v3467, %v3476
    %v3492 = vadd.f32 %v3468, %v3477
    %v3493 = vadd.f32 %v3469, %v3478
    %v3494 = vadd.f32 %v3470, %v3262
    %v3495 = vadd.f32 %v3471, %v3479
    %v3496 = vadd.f32 %v3472, %v3480
    %v3497 = vxor.u32 %v3489, 2147483648
    %v3498 = vxor.u32 %v3490, 2147483648
    %v3499 = vxor.u32 %v3491, 2147483648
    %v3500 = vxor.u32 %v3492, 2147483648
    %v3501 = vxor.u32 %v3493, 2147483648
    %v3502 = vxor.u32 %v3494, 2147483648
    %v3503 = vxor.u32 %v3495, 2147483648
    %v3504 = vxor.u32 %v3496, 2147483648
    %v3505 = vmul.f32 %v3497, 1.442695
    %v3506 = vpow.pop %v3505
    %v3507 = vmul.f32 %v3498, 1.442695
    %v3508 = vpow.pop %v3507
    %v3509 = vmul.f32 %v3499, 1.442695
    %v3510 = vpow.pop %v3509
    %v3511 = vmul.f32 %v3500, 1.442695
    %v3512 = vpow.pop %v3511
    %v3513 = vmul.f32 %v3501, 1.442695
    %v3514 = vpow.pop %v3513
    %v3515 = vmul.f32 %v3502, 1.442695
    %v3516 = vpow.pop %v3515
    %v3517 = vmul.f32 %v3503, 1.442695
    %v3518 = vpow.pop %v3517
    %v3519 = vmul.f32 %v3504, 1.442695
    %v3520 = vpow.pop %v3519
    %v3521 = vadd.f32 %v3506, 1.0
    %v3522 = vadd.f32 %v3508, 1.0
    %v3523 = vadd.f32 %v3510, 1.0
    %v3524 = vadd.f32 %v3512, 1.0
    %v3525 = vadd.f32 %v3514, 1.0
    %v3526 = vadd.f32 %v3516, 1.0
    %v3527 = vadd.f32 %v3518, 1.0
    %v3528 = vadd.f32 %v3520, 1.0
    %v3529 = vrcp.pop %v3521
    %v3530 = vmul.f32 %v3521, %v3529
    %v3531 = vsub.f32 1.0, %v3530
    %v3532 = vmul.f32 %v3529, %v3531
    %v3533 = vadd.f32 %v3529, %v3532
    %vm3534 = vweird.f32 %v3521
    %vm3535 = vweird.f32 %v3529
    %vm3536 = vmor %vm3534, %vm3535
    %v3537 = vsel %vm3536, %v3529, %v3533
    %v3538 = vand.u32 2147483647, %v3521
    %vm3539 = vcmp.eq.f32.partialorder %v3538, 8.507059e+37
    %v3540 = vand.u32 %v3521, 2147483648
    %v3541 = vor.u32 1.1754944e-38, %v3540
    %v3542 = vsel %vm3539, %v3541, %v3537
    %v3543 = vmul.f32 1.0, %v3542
    %v3544 = vrcp.pop %v3522
    %v3545 = vmul.f32 %v3522, %v3544
    %v3546 = vsub.f32 1.0, %v3545
    %v3547 = vmul.f32 %v3544, %v3546
    %v3548 = vadd.f32 %v3544, %v3547
    %vm3549 = vweird.f32 %v3522
    %vm3550 = vweird.f32 %v3544
    %vm3551 = vmor %vm3549, %vm3550
    %v3552 = vsel %vm3551, %v3544, %v3548
    %v3553 = vand.u32 2147483647, %v3522
    %vm3554 = vcmp.eq.f32.partialorder %v3553, 8.507059e+37
    %v3555 = vand.u32 %v3522, 2147483648
    %v3556 = vor.u32 1.1754944e-38, %v3555
    %v3557 = vsel %vm3554, %v3556, %v3552
    %v3558 = vmul.f32 1.0, %v3557
    %v3559 = vrcp.pop %v3523
    %v3560 = vmul.f32 %v3523, %v3559
    %v3561 = vsub.f32 1.0, %v3560
    %v3562 = vmul.f32 %v3559, %v3561
    %v3563 = vadd.f32 %v3559, %v3562
    %vm3564 = vweird.f32 %v3523
    %vm3565 = vweird.f32 %v3559
    %vm3566 = vmor %vm3564, %vm3565
    %v3567 = vsel %vm3566, %v3559, %v3563
    %v3568 = vand.u32 2147483647, %v3523
    %vm3569 = vcmp.eq.f32.partialorder %v3568, 8.507059e+37
    %v3570 = vand.u32 %v3523, 2147483648
    %v3571 = vor.u32 1.1754944e-38, %v3570
    %v3572 = vsel %vm3569, %v3571, %v3567
    %v3573 = vmul.f32 1.0, %v3572
    %v3574 = vrcp.pop %v3524
    %v3575 = vmul.f32 %v3524, %v3574
    %v3576 = vsub.f32 1.0, %v3575
    %v3577 = vmul.f32 %v3574, %v3576
    %v3578 = vadd.f32 %v3574, %v3577
    %vm3579 = vweird.f32 %v3524
    %vm3580 = vweird.f32 %v3574
    %vm3581 = vmor %vm3579, %vm3580
    %v3582 = vsel %vm3581, %v3574, %v3578
    %v3583 = vand.u32 2147483647, %v3524
    %vm3584 = vcmp.eq.f32.partialorder %v3583, 8.507059e+37
    %v3585 = vand.u32 %v3524, 2147483648
    %v3586 = vor.u32 1.1754944e-38, %v3585
    %v3587 = vsel %vm3584, %v3586, %v3582
    %v3588 = vmul.f32 1.0, %v3587
    %v3589 = vrcp.pop %v3525
    %v3590 = vmul.f32 %v3525, %v3589
    %v3591 = vsub.f32 1.0, %v3590
    %v3592 = vmul.f32 %v3589, %v3591
    %v3593 = vadd.f32 %v3589, %v3592
    %vm3594 = vweird.f32 %v3525
    %vm3595 = vweird.f32 %v3589
    %vm3596 = vmor %vm3594, %vm3595
    %v3597 = vsel %vm3596, %v3589, %v3593
    %v3598 = vand.u32 2147483647, %v3525
    %vm3599 = vcmp.eq.f32.partialorder %v3598, 8.507059e+37
    %v3600 = vand.u32 %v3525, 2147483648
    %v3601 = vor.u32 1.1754944e-38, %v3600
    %v3602 = vsel %vm3599, %v3601, %v3597
    %v3603 = vmul.f32 1.0, %v3602
    %v3604 = vrcp.pop %v3526
    %v3605 = vmul.f32 %v3526, %v3604
    %v3606 = vsub.f32 1.0, %v3605
    %v3607 = vmul.f32 %v3604, %v3606
    %v3608 = vadd.f32 %v3604, %v3607
    %vm3609 = vweird.f32 %v3526
    %vm3610 = vweird.f32 %v3604
    %vm3611 = vmor %vm3609, %vm3610
    %v3612 = vsel %vm3611, %v3604, %v3608
    %v3613 = vand.u32 2147483647, %v3526
    %vm3614 = vcmp.eq.f32.partialorder %v3613, 8.507059e+37
    %v3615 = vand.u32 %v3526, 2147483648
    %v3616 = vor.u32 1.1754944e-38, %v3615
    %v3617 = vsel %vm3614, %v3616, %v3612
    %v3618 = vmul.f32 1.0, %v3617
    %v3619 = vrcp.pop %v3527
    %v3620 = vmul.f32 %v3527, %v3619
    %v3621 = vsub.f32 1.0, %v3620
    %v3622 = vmul.f32 %v3619, %v3621
    %v3623 = vadd.f32 %v3619, %v3622
    %vm3624 = vweird.f32 %v3527
    %vm3625 = vweird.f32 %v3619
    %vm3626 = vmor %vm3624, %vm3625
    %v3627 = vsel %vm3626, %v3619, %v3623
    %v3628 = vand.u32 2147483647, %v3527
    %vm3629 = vcmp.eq.f32.partialorder %v3628, 8.507059e+37
    %v3630 = vand.u32 %v3527, 2147483648
    %v3631 = vor.u32 1.1754944e-38, %v3630
    %v3632 = vsel %vm3629, %v3631, %v3627
    %v3633 = vmul.f32 1.0, %v3632
    %v3634 = vrcp.pop %v3528
    %v3635 = vmul.f32 %v3528, %v3634
    %v3636 = vsub.f32 1.0, %v3635
    %v3637 = vmul.f32 %v3634, %v3636
    %v3638 = vadd.f32 %v3634, %v3637
    %vm3639 = vweird.f32 %v3528
    %vm3640 = vweird.f32 %v3634
    %vm3641 = vmor %vm3639, %vm3640
    %v3642 = vsel %vm3641, %v3634, %v3638
    %v3643 = vand.u32 2147483647, %v3528
    %vm3644 = vcmp.eq.f32.partialorder %v3643, 8.507059e+37
    %v3645 = vand.u32 %v3528, 2147483648
    %v3646 = vor.u32 1.1754944e-38, %v3645
    %v3647 = vsel %vm3644, %v3646, %v3642
    %v3648 = vmul.f32 1.0, %v3647
    %v3649 = vld [vmem:[#allocation9] sm:$0x4]
    %v3650 = vld [vmem:[#allocation9 + $0x4] sm:$0x4]
    %v3651 = vld [vmem:[#allocation9 + $0x8] sm:$0x4]
    %v3652 = vld [vmem:[#allocation9 + $0xc] sm:$0x4]
    %v3653 = vld [vmem:[#allocation9 + $0x10] sm:$0x4]
    %v3654 = vld [vmem:[#allocation9 + $0x14] sm:$0x4]
    %v3655 = vld [vmem:[#allocation9 + $0x18] sm:$0x4]
    %v3656 = vld [vmem:[#allocation9 + $0x1c] sm:$0x4]
    %v3657 = vunpack.c.l.bf16 %v3649
    %v3658 = vunpack.c.l.bf16 %v3650
    %v3659 = vunpack.c.l.bf16 %v3651
    %v3660 = vunpack.c.l.bf16 %v3652
    %v3661 = vunpack.c.l.bf16 %v3653
    %v3662 = vunpack.c.l.bf16 %v3654
    %v3663 = vunpack.c.l.bf16 %v3655
    %v3664 = vunpack.c.l.bf16 %v3656
    %3665 = vmatpush.bf16.msra.mxu0 0
    %3666 = vmatpush.bf16.msra.mxu0 0
    %3667 = vmatpush.bf16.msra.mxu0 0
    %3668 = vmatpush.bf16.msra.mxu0 0
    %3669 = vmatpush.bf16.msra.mxu0 0
    %3670 = vmatpush.bf16.msra.mxu0 0
    %3671 = vmatpush.bf16.msra.mxu0 %v629
    %3672 = vmatpush.bf16.msra.mxu0 %v628
    %3673 = vmatmul.bf16.gmra.mxu0 %v3237
    %v3674 = vpop.f32.mrf.mxu0
    %v3675 = vadd.f32 %v618, %v3674
    %v3676 = vpop.f32.mrf.mxu0
    %3677 = vdwg.mxu0
    %v3679 = vrot.slane %v3675, 3
    %v3680 = vrot.slane %v3675, 4
    %v3681 = vrot.slane %v3675, 5
    %v3682 = vrot.slane %v3675, 6
    %v3683 = vrot.slane %v3675, 7
    %v3684 = vrot.slane %v3675, 1
    %v3685 = vrot.slane %v3675, 2
    %v3694 = vmul.f32 %v3351, %v3679
    %v3695 = vmul.f32 %v3366, %v3680
    %v3696 = vmul.f32 %v3381, %v3681
    %v3697 = vmul.f32 %v3396, %v3682
    %v3698 = vmul.f32 %v3411, %v3683
    %v3699 = vmul.f32 %v3426, %v3675
    %v3700 = vmul.f32 %v3441, %v3684
    %v3701 = vmul.f32 %v3456, %v3685
    %v3702 = vadd.f32 %v3657, %v3694
    %v3703 = vadd.f32 %v3658, %v3695
    %v3704 = vadd.f32 %v3659, %v3696
    %v3705 = vadd.f32 %v3660, %v3697
    %v3706 = vadd.f32 %v3661, %v3698
    %v3707 = vadd.f32 %v3662, %v3699
    %v3708 = vadd.f32 %v3663, %v3700
    %v3709 = vadd.f32 %v3664, %v3701
    %v3710 = vtanh.pop %v3702
    %v3711 = vtanh.pop %v3703
    %v3712 = vtanh.pop %v3704
    %v3713 = vtanh.pop %v3705
    %v3714 = vtanh.pop %v3706
    %v3715 = vtanh.pop %v3707
    %v3716 = vtanh.pop %v3708
    %v3717 = vtanh.pop %v3709
    %v3726 = vrot.slane %v3710, 5
    %v3727 = vrot.slane %v3711, 4
    %v3728 = vsel %vm694, %v3727, %v3726
    %v3729 = vrot.slane %v3712, 3
    %v3730 = vsel %vm697, %v3729, %v3728
    %v3731 = vrot.slane %v3713, 2
    %v3732 = vsel %vm700, %v3731, %v3730
    %v3733 = vrot.slane %v3714, 1
    %v3734 = vsel %vm703, %v3733, %v3732
    %v3735 = vsel %vm706, %v3715, %v3734
    %v3736 = vrot.slane %v3716, 7
    %v3737 = vsel %vm709, %v3736, %v3735
    %v3738 = vrot.slane %v3717, 6
    %v3739 = vsel %vm712, %v3738, %v3737
    %v3741 = vsub.f32 %v3210, %v3739
    %v3743 = vrot.slane %v3741, 3
    %v3744 = vrot.slane %v3741, 4
    %v3745 = vrot.slane %v3741, 5
    %v3746 = vrot.slane %v3741, 6
    %v3747 = vrot.slane %v3741, 7
    %v3748 = vrot.slane %v3741, 1
    %v3749 = vrot.slane %v3741, 2
    %v3758 = vmul.f32 %v3543, %v3743
    %v3759 = vmul.f32 %v3558, %v3744
    %v3760 = vmul.f32 %v3573, %v3745
    %v3761 = vmul.f32 %v3588, %v3746
    %v3762 = vmul.f32 %v3603, %v3747
    %v3763 = vmul.f32 %v3618, %v3741
    %v3764 = vmul.f32 %v3633, %v3748
    %v3765 = vmul.f32 %v3648, %v3749
    %v3766 = vadd.f32 %v3710, %v3758
    %v3767 = vadd.f32 %v3711, %v3759
    %v3768 = vadd.f32 %v3712, %v3760
    %v3769 = vadd.f32 %v3713, %v3761
    %v3770 = vadd.f32 %v3714, %v3762
    %v3771 = vadd.f32 %v3715, %v3763
    %v3772 = vadd.f32 %v3716, %v3764
    %v3773 = vadd.f32 %v3717, %v3765
    %v3775 = vsub.f32 %v3766, %v3214
    %v3776 = vsub.f32 %v3767, %v3215
    %v3777 = vsub.f32 %v3768, %v3216
    %v3778 = vsub.f32 %v3769, %v3217
    %v3779 = vsub.f32 %v3770, %v3218
    %v3780 = vsub.f32 %v3771, %v3210
    %v3781 = vsub.f32 %v3772, %v3212
    %v3782 = vsub.f32 %v3773, %v3213
    %3784 = vset.pattern.permute.xlu0 5
    %3785 = vperm.xlu0 %3784, %v3234
    %v3786 = vpop.permute.xlu0 %3785
    %v3796 = vrot.slane %v3775, 5
    %v3797 = vrot.slane %v3776, 4
    %v3798 = vsel %vm694, %v3797, %v3796
    %v3799 = vrot.slane %v3777, 3
    %v3800 = vsel %vm697, %v3799, %v3798
    %v3801 = vrot.slane %v3778, 2
    %v3802 = vsel %vm700, %v3801, %v3800
    %v3803 = vrot.slane %v3779, 1
    %v3804 = vsel %vm703, %v3803, %v3802
    %v3805 = vsel %vm706, %v3780, %v3804
    %v3806 = vrot.slane %v3781, 7
    %v3807 = vsel %vm709, %v3806, %v3805
    %v3808 = vrot.slane %v3782, 6
    %v3809 = vsel %vm712, %v3808, %v3807
    %v3811 = vmul.f32 %v3786, %v3809
    %v3812 = vadd.f32 %v3210, %v3811
    %v3814 = vrot.slane %v3812, 1
    %v3815 = vrot.slane %v3812, 2
    %v3816 = vrot.slane %v3812, 3
    %v3817 = vrot.slane %v3812, 4
    %v3818 = vrot.slane %v3812, 5
    %v3819 = vrot.slane %v3812, 6
    %v3820 = vrot.slane %v3812, 7
    %3828 = vst.msk [vmem:[#allocation15 + $0x5] sm:$0x1] %vm817, %v3812
    %3829 = vst.msk [vmem:[#allocation15 + $0xd] sm:$0x1] %vm817, %v3814
    %3830 = vst.msk [vmem:[#allocation15 + $0x15] sm:$0x1] %vm817, %v3815
    %3831 = vst.msk [vmem:[#allocation15 + $0x1d] sm:$0x1] %vm817, %v3816
    %3832 = vst.msk [vmem:[#allocation15 + $0x25] sm:$0x1] %vm817, %v3817
    %3833 = vst.msk [vmem:[#allocation15 + $0x2d] sm:$0x1] %vm817, %v3818
    %3834 = vst.msk [vmem:[#allocation15 + $0x35] sm:$0x1] %vm817, %v3819
    %3835 = vst.msk [vmem:[#allocation15 + $0x3d] sm:$0x1] %vm817, %v3820
    %v3836 = vld [vmem:[#allocation3] sm:$0xff]
    %v3837 = vpack.c.bf16 %v3812, %v3812
    %v3839 = vsel %vm175, %v3837, 0
    %3841 = vmatpush.bf16.msra.mxu0 0
    %3842 = vmatpush.bf16.msra.mxu0 0
    %3843 = vmatpush.bf16.msra.mxu0 0
    %3844 = vmatpush.bf16.msra.mxu0 0
    %3845 = vmatpush.bf16.msra.mxu0 0
    %3846 = vmatpush.bf16.msra.mxu0 0
    %3847 = vmatpush.bf16.msra.mxu0 %v172
    %3848 = vmatpush.bf16.msra.mxu0 %v171
    %3849 = vmatmul.bf16.gmra.mxu0 %v3839
    %v3850 = vpop.f32.mrf.mxu0
    %v3851 = vadd.f32 0.0, %v3850
    %v3852 = vpop.f32.mrf.mxu0
    %3853 = vdwg.mxu0
    %3854 = vmatpush.bf16.msra.mxu0 0
    %3855 = vmatpush.bf16.msra.mxu0 0
    %3856 = vmatpush.bf16.msra.mxu0 0
    %3857 = vmatpush.bf16.msra.mxu0 0
    %3858 = vmatpush.bf16.msra.mxu0 0
    %3859 = vmatpush.bf16.msra.mxu0 0
    %3860 = vmatpush.bf16.msra.mxu0 %v201
    %3861 = vmatpush.bf16.msra.mxu0 %v200
    %3862 = vmatmul.bf16.gmra.mxu0 %v3839
    %v3863 = vpop.f32.mrf.mxu0
    %v3864 = vadd.f32 0.0, %v3863
    %v3865 = vpop.f32.mrf.mxu0
    %3866 = vdwg.mxu0
    %v3867 = vld [vmem:[#allocation6] sm:$0x8]
    %v3868 = vld [vmem:[#allocation6 + $0x4] sm:$0x8]
    %v3869 = vld [vmem:[#allocation6 + $0x8] sm:$0x8]
    %v3870 = vld [vmem:[#allocation6 + $0xc] sm:$0x8]
    %v3871 = vld [vmem:[#allocation6 + $0x10] sm:$0x8]
    %v3872 = vld [vmem:[#allocation6 + $0x14] sm:$0x8]
    %v3873 = vld [vmem:[#allocation6 + $0x18] sm:$0x8]
    %v3874 = vld [vmem:[#allocation6 + $0x1c] sm:$0x8]
    %v3875 = vunpack.c.l.bf16 %v3867
    %v3876 = vunpack.c.l.bf16 %v3868
    %v3877 = vunpack.c.l.bf16 %v3869
    %v3878 = vunpack.c.l.bf16 %v3870
    %v3879 = vunpack.c.l.bf16 %v3871
    %v3880 = vunpack.c.l.bf16 %v3872
    %v3881 = vunpack.c.l.bf16 %v3873
    %v3882 = vunpack.c.l.bf16 %v3874
    %v3884 = vrot.slane %v3851, 2
    %v3885 = vrot.slane %v3851, 3
    %v3886 = vrot.slane %v3851, 4
    %v3887 = vrot.slane %v3851, 5
    %v3888 = vrot.slane %v3851, 6
    %v3889 = vrot.slane %v3851, 7
    %v3890 = vrot.slane %v3851, 1
    %v3899 = vadd.f32 %v3875, %v3884
    %v3900 = vadd.f32 %v3876, %v3885
    %v3901 = vadd.f32 %v3877, %v3886
    %v3902 = vadd.f32 %v3878, %v3887
    %v3903 = vadd.f32 %v3879, %v3888
    %v3904 = vadd.f32 %v3880, %v3889
    %v3905 = vadd.f32 %v3881, %v3851
    %v3906 = vadd.f32 %v3882, %v3890
    %v3907 = vxor.u32 %v3899, 2147483648
    %v3908 = vxor.u32 %v3900, 2147483648
    %v3909 = vxor.u32 %v3901, 2147483648
    %v3910 = vxor.u32 %v3902, 2147483648
    %v3911 = vxor.u32 %v3903, 2147483648
    %v3912 = vxor.u32 %v3904, 2147483648
    %v3913 = vxor.u32 %v3905, 2147483648
    %v3914 = vxor.u32 %v3906, 2147483648
    %v3915 = vmul.f32 %v3907, 1.442695
    %v3916 = vpow.pop %v3915
    %v3917 = vmul.f32 %v3908, 1.442695
    %v3918 = vpow.pop %v3917
    %v3919 = vmul.f32 %v3909, 1.442695
    %v3920 = vpow.pop %v3919
    %v3921 = vmul.f32 %v3910, 1.442695
    %v3922 = vpow.pop %v3921
    %v3923 = vmul.f32 %v3911, 1.442695
    %v3924 = vpow.pop %v3923
    %v3925 = vmul.f32 %v3912, 1.442695
    %v3926 = vpow.pop %v3925
    %v3927 = vmul.f32 %v3913, 1.442695
    %v3928 = vpow.pop %v3927
    %v3929 = vmul.f32 %v3914, 1.442695
    %v3930 = vpow.pop %v3929
    %v3931 = vadd.f32 %v3916, 1.0
    %v3932 = vadd.f32 %v3918, 1.0
    %v3933 = vadd.f32 %v3920, 1.0
    %v3934 = vadd.f32 %v3922, 1.0
    %v3935 = vadd.f32 %v3924, 1.0
    %v3936 = vadd.f32 %v3926, 1.0
    %v3937 = vadd.f32 %v3928, 1.0
    %v3938 = vadd.f32 %v3930, 1.0
    %v3939 = vrcp.pop %v3931
    %v3940 = vmul.f32 %v3931, %v3939
    %v3941 = vsub.f32 1.0, %v3940
    %v3942 = vmul.f32 %v3939, %v3941
    %v3943 = vadd.f32 %v3939, %v3942
    %vm3944 = vweird.f32 %v3931
    %vm3945 = vweird.f32 %v3939
    %vm3946 = vmor %vm3944, %vm3945
    %v3947 = vsel %vm3946, %v3939, %v3943
    %v3948 = vand.u32 2147483647, %v3931
    %vm3949 = vcmp.eq.f32.partialorder %v3948, 8.507059e+37
    %v3950 = vand.u32 %v3931, 2147483648
    %v3951 = vor.u32 1.1754944e-38, %v3950
    %v3952 = vsel %vm3949, %v3951, %v3947
    %v3953 = vmul.f32 1.0, %v3952
    %v3954 = vrcp.pop %v3932
    %v3955 = vmul.f32 %v3932, %v3954
    %v3956 = vsub.f32 1.0, %v3955
    %v3957 = vmul.f32 %v3954, %v3956
    %v3958 = vadd.f32 %v3954, %v3957
    %vm3959 = vweird.f32 %v3932
    %vm3960 = vweird.f32 %v3954
    %vm3961 = vmor %vm3959, %vm3960
    %v3962 = vsel %vm3961, %v3954, %v3958
    %v3963 = vand.u32 2147483647, %v3932
    %vm3964 = vcmp.eq.f32.partialorder %v3963, 8.507059e+37
    %v3965 = vand.u32 %v3932, 2147483648
    %v3966 = vor.u32 1.1754944e-38, %v3965
    %v3967 = vsel %vm3964, %v3966, %v3962
    %v3968 = vmul.f32 1.0, %v3967
    %v3969 = vrcp.pop %v3933
    %v3970 = vmul.f32 %v3933, %v3969
    %v3971 = vsub.f32 1.0, %v3970
    %v3972 = vmul.f32 %v3969, %v3971
    %v3973 = vadd.f32 %v3969, %v3972
    %vm3974 = vweird.f32 %v3933
    %vm3975 = vweird.f32 %v3969
    %vm3976 = vmor %vm3974, %vm3975
    %v3977 = vsel %vm3976, %v3969, %v3973
    %v3978 = vand.u32 2147483647, %v3933
    %vm3979 = vcmp.eq.f32.partialorder %v3978, 8.507059e+37
    %v3980 = vand.u32 %v3933, 2147483648
    %v3981 = vor.u32 1.1754944e-38, %v3980
    %v3982 = vsel %vm3979, %v3981, %v3977
    %v3983 = vmul.f32 1.0, %v3982
    %v3984 = vrcp.pop %v3934
    %v3985 = vmul.f32 %v3934, %v3984
    %v3986 = vsub.f32 1.0, %v3985
    %v3987 = vmul.f32 %v3984, %v3986
    %v3988 = vadd.f32 %v3984, %v3987
    %vm3989 = vweird.f32 %v3934
    %vm3990 = vweird.f32 %v3984
    %vm3991 = vmor %vm3989, %vm3990
    %v3992 = vsel %vm3991, %v3984, %v3988
    %v3993 = vand.u32 2147483647, %v3934
    %vm3994 = vcmp.eq.f32.partialorder %v3993, 8.507059e+37
    %v3995 = vand.u32 %v3934, 2147483648
    %v3996 = vor.u32 1.1754944e-38, %v3995
    %v3997 = vsel %vm3994, %v3996, %v3992
    %v3998 = vmul.f32 1.0, %v3997
    %v3999 = vrcp.pop %v3935
    %v4000 = vmul.f32 %v3935, %v3999
    %v4001 = vsub.f32 1.0, %v4000
    %v4002 = vmul.f32 %v3999, %v4001
    %v4003 = vadd.f32 %v3999, %v4002
    %vm4004 = vweird.f32 %v3935
    %vm4005 = vweird.f32 %v3999
    %vm4006 = vmor %vm4004, %vm4005
    %v4007 = vsel %vm4006, %v3999, %v4003
    %v4008 = vand.u32 2147483647, %v3935
    %vm4009 = vcmp.eq.f32.partialorder %v4008, 8.507059e+37
    %v4010 = vand.u32 %v3935, 2147483648
    %v4011 = vor.u32 1.1754944e-38, %v4010
    %v4012 = vsel %vm4009, %v4011, %v4007
    %v4013 = vmul.f32 1.0, %v4012
    %v4014 = vrcp.pop %v3936
    %v4015 = vmul.f32 %v3936, %v4014
    %v4016 = vsub.f32 1.0, %v4015
    %v4017 = vmul.f32 %v4014, %v4016
    %v4018 = vadd.f32 %v4014, %v4017
    %vm4019 = vweird.f32 %v3936
    %vm4020 = vweird.f32 %v4014
    %vm4021 = vmor %vm4019, %vm4020
    %v4022 = vsel %vm4021, %v4014, %v4018
    %v4023 = vand.u32 2147483647, %v3936
    %vm4024 = vcmp.eq.f32.partialorder %v4023, 8.507059e+37
    %v4025 = vand.u32 %v3936, 2147483648
    %v4026 = vor.u32 1.1754944e-38, %v4025
    %v4027 = vsel %vm4024, %v4026, %v4022
    %v4028 = vmul.f32 1.0, %v4027
    %v4029 = vrcp.pop %v3937
    %v4030 = vmul.f32 %v3937, %v4029
    %v4031 = vsub.f32 1.0, %v4030
    %v4032 = vmul.f32 %v4029, %v4031
    %v4033 = vadd.f32 %v4029, %v4032
    %vm4034 = vweird.f32 %v3937
    %vm4035 = vweird.f32 %v4029
    %vm4036 = vmor %vm4034, %vm4035
    %v4037 = vsel %vm4036, %v4029, %v4033
    %v4038 = vand.u32 2147483647, %v3937
    %vm4039 = vcmp.eq.f32.partialorder %v4038, 8.507059e+37
    %v4040 = vand.u32 %v3937, 2147483648
    %v4041 = vor.u32 1.1754944e-38, %v4040
    %v4042 = vsel %vm4039, %v4041, %v4037
    %v4043 = vmul.f32 1.0, %v4042
    %v4044 = vrcp.pop %v3938
    %v4045 = vmul.f32 %v3938, %v4044
    %v4046 = vsub.f32 1.0, %v4045
    %v4047 = vmul.f32 %v4044, %v4046
    %v4048 = vadd.f32 %v4044, %v4047
    %vm4049 = vweird.f32 %v3938
    %vm4050 = vweird.f32 %v4044
    %vm4051 = vmor %vm4049, %vm4050
    %v4052 = vsel %vm4051, %v4044, %v4048
    %v4053 = vand.u32 2147483647, %v3938
    %vm4054 = vcmp.eq.f32.partialorder %v4053, 8.507059e+37
    %v4055 = vand.u32 %v3938, 2147483648
    %v4056 = vor.u32 1.1754944e-38, %v4055
    %v4057 = vsel %vm4054, %v4056, %v4052
    %v4058 = vmul.f32 1.0, %v4057
    %v4059 = vld [vmem:[#allocation8] sm:$0x8]
    %v4060 = vld [vmem:[#allocation8 + $0x4] sm:$0x8]
    %v4061 = vld [vmem:[#allocation8 + $0x8] sm:$0x8]
    %v4062 = vld [vmem:[#allocation8 + $0xc] sm:$0x8]
    %v4063 = vld [vmem:[#allocation8 + $0x10] sm:$0x8]
    %v4064 = vld [vmem:[#allocation8 + $0x14] sm:$0x8]
    %v4065 = vld [vmem:[#allocation8 + $0x18] sm:$0x8]
    %v4066 = vld [vmem:[#allocation8 + $0x1c] sm:$0x8]
    %v4067 = vunpack.c.l.bf16 %v4059
    %v4068 = vunpack.c.l.bf16 %v4060
    %v4069 = vunpack.c.l.bf16 %v4061
    %v4070 = vunpack.c.l.bf16 %v4062
    %v4071 = vunpack.c.l.bf16 %v4063
    %v4072 = vunpack.c.l.bf16 %v4064
    %v4073 = vunpack.c.l.bf16 %v4065
    %v4074 = vunpack.c.l.bf16 %v4066
    %v4076 = vrot.slane %v3864, 2
    %v4077 = vrot.slane %v3864, 3
    %v4078 = vrot.slane %v3864, 4
    %v4079 = vrot.slane %v3864, 5
    %v4080 = vrot.slane %v3864, 6
    %v4081 = vrot.slane %v3864, 7
    %v4082 = vrot.slane %v3864, 1
    %v4091 = vadd.f32 %v4067, %v4076
    %v4092 = vadd.f32 %v4068, %v4077
    %v4093 = vadd.f32 %v4069, %v4078
    %v4094 = vadd.f32 %v4070, %v4079
    %v4095 = vadd.f32 %v4071, %v4080
    %v4096 = vadd.f32 %v4072, %v4081
    %v4097 = vadd.f32 %v4073, %v3864
    %v4098 = vadd.f32 %v4074, %v4082
    %v4099 = vxor.u32 %v4091, 2147483648
    %v4100 = vxor.u32 %v4092, 2147483648
    %v4101 = vxor.u32 %v4093, 2147483648
    %v4102 = vxor.u32 %v4094, 2147483648
    %v4103 = vxor.u32 %v4095, 2147483648
    %v4104 = vxor.u32 %v4096, 2147483648
    %v4105 = vxor.u32 %v4097, 2147483648
    %v4106 = vxor.u32 %v4098, 2147483648
    %v4107 = vmul.f32 %v4099, 1.442695
    %v4108 = vpow.pop %v4107
    %v4109 = vmul.f32 %v4100, 1.442695
    %v4110 = vpow.pop %v4109
    %v4111 = vmul.f32 %v4101, 1.442695
    %v4112 = vpow.pop %v4111
    %v4113 = vmul.f32 %v4102, 1.442695
    %v4114 = vpow.pop %v4113
    %v4115 = vmul.f32 %v4103, 1.442695
    %v4116 = vpow.pop %v4115
    %v4117 = vmul.f32 %v4104, 1.442695
    %v4118 = vpow.pop %v4117
    %v4119 = vmul.f32 %v4105, 1.442695
    %v4120 = vpow.pop %v4119
    %v4121 = vmul.f32 %v4106, 1.442695
    %v4122 = vpow.pop %v4121
    %v4123 = vadd.f32 %v4108, 1.0
    %v4124 = vadd.f32 %v4110, 1.0
    %v4125 = vadd.f32 %v4112, 1.0
    %v4126 = vadd.f32 %v4114, 1.0
    %v4127 = vadd.f32 %v4116, 1.0
    %v4128 = vadd.f32 %v4118, 1.0
    %v4129 = vadd.f32 %v4120, 1.0
    %v4130 = vadd.f32 %v4122, 1.0
    %v4131 = vrcp.pop %v4123
    %v4132 = vmul.f32 %v4123, %v4131
    %v4133 = vsub.f32 1.0, %v4132
    %v4134 = vmul.f32 %v4131, %v4133
    %v4135 = vadd.f32 %v4131, %v4134
    %vm4136 = vweird.f32 %v4123
    %vm4137 = vweird.f32 %v4131
    %vm4138 = vmor %vm4136, %vm4137
    %v4139 = vsel %vm4138, %v4131, %v4135
    %v4140 = vand.u32 2147483647, %v4123
    %vm4141 = vcmp.eq.f32.partialorder %v4140, 8.507059e+37
    %v4142 = vand.u32 %v4123, 2147483648
    %v4143 = vor.u32 1.1754944e-38, %v4142
    %v4144 = vsel %vm4141, %v4143, %v4139
    %v4145 = vmul.f32 1.0, %v4144
    %v4146 = vrcp.pop %v4124
    %v4147 = vmul.f32 %v4124, %v4146
    %v4148 = vsub.f32 1.0, %v4147
    %v4149 = vmul.f32 %v4146, %v4148
    %v4150 = vadd.f32 %v4146, %v4149
    %vm4151 = vweird.f32 %v4124
    %vm4152 = vweird.f32 %v4146
    %vm4153 = vmor %vm4151, %vm4152
    %v4154 = vsel %vm4153, %v4146, %v4150
    %v4155 = vand.u32 2147483647, %v4124
    %vm4156 = vcmp.eq.f32.partialorder %v4155, 8.507059e+37
    %v4157 = vand.u32 %v4124, 2147483648
    %v4158 = vor.u32 1.1754944e-38, %v4157
    %v4159 = vsel %vm4156, %v4158, %v4154
    %v4160 = vmul.f32 1.0, %v4159
    %v4161 = vrcp.pop %v4125
    %v4162 = vmul.f32 %v4125, %v4161
    %v4163 = vsub.f32 1.0, %v4162
    %v4164 = vmul.f32 %v4161, %v4163
    %v4165 = vadd.f32 %v4161, %v4164
    %vm4166 = vweird.f32 %v4125
    %vm4167 = vweird.f32 %v4161
    %vm4168 = vmor %vm4166, %vm4167
    %v4169 = vsel %vm4168, %v4161, %v4165
    %v4170 = vand.u32 2147483647, %v4125
    %vm4171 = vcmp.eq.f32.partialorder %v4170, 8.507059e+37
    %v4172 = vand.u32 %v4125, 2147483648
    %v4173 = vor.u32 1.1754944e-38, %v4172
    %v4174 = vsel %vm4171, %v4173, %v4169
    %v4175 = vmul.f32 1.0, %v4174
    %v4176 = vrcp.pop %v4126
    %v4177 = vmul.f32 %v4126, %v4176
    %v4178 = vsub.f32 1.0, %v4177
    %v4179 = vmul.f32 %v4176, %v4178
    %v4180 = vadd.f32 %v4176, %v4179
    %vm4181 = vweird.f32 %v4126
    %vm4182 = vweird.f32 %v4176
    %vm4183 = vmor %vm4181, %vm4182
    %v4184 = vsel %vm4183, %v4176, %v4180
    %v4185 = vand.u32 2147483647, %v4126
    %vm4186 = vcmp.eq.f32.partialorder %v4185, 8.507059e+37
    %v4187 = vand.u32 %v4126, 2147483648
    %v4188 = vor.u32 1.1754944e-38, %v4187
    %v4189 = vsel %vm4186, %v4188, %v4184
    %v4190 = vmul.f32 1.0, %v4189
    %v4191 = vrcp.pop %v4127
    %v4192 = vmul.f32 %v4127, %v4191
    %v4193 = vsub.f32 1.0, %v4192
    %v4194 = vmul.f32 %v4191, %v4193
    %v4195 = vadd.f32 %v4191, %v4194
    %vm4196 = vweird.f32 %v4127
    %vm4197 = vweird.f32 %v4191
    %vm4198 = vmor %vm4196, %vm4197
    %v4199 = vsel %vm4198, %v4191, %v4195
    %v4200 = vand.u32 2147483647, %v4127
    %vm4201 = vcmp.eq.f32.partialorder %v4200, 8.507059e+37
    %v4202 = vand.u32 %v4127, 2147483648
    %v4203 = vor.u32 1.1754944e-38, %v4202
    %v4204 = vsel %vm4201, %v4203, %v4199
    %v4205 = vmul.f32 1.0, %v4204
    %v4206 = vrcp.pop %v4128
    %v4207 = vmul.f32 %v4128, %v4206
    %v4208 = vsub.f32 1.0, %v4207
    %v4209 = vmul.f32 %v4206, %v4208
    %v4210 = vadd.f32 %v4206, %v4209
    %vm4211 = vweird.f32 %v4128
    %vm4212 = vweird.f32 %v4206
    %vm4213 = vmor %vm4211, %vm4212
    %v4214 = vsel %vm4213, %v4206, %v4210
    %v4215 = vand.u32 2147483647, %v4128
    %vm4216 = vcmp.eq.f32.partialorder %v4215, 8.507059e+37
    %v4217 = vand.u32 %v4128, 2147483648
    %v4218 = vor.u32 1.1754944e-38, %v4217
    %v4219 = vsel %vm4216, %v4218, %v4214
    %v4220 = vmul.f32 1.0, %v4219
    %v4221 = vrcp.pop %v4129
    %v4222 = vmul.f32 %v4129, %v4221
    %v4223 = vsub.f32 1.0, %v4222
    %v4224 = vmul.f32 %v4221, %v4223
    %v4225 = vadd.f32 %v4221, %v4224
    %vm4226 = vweird.f32 %v4129
    %vm4227 = vweird.f32 %v4221
    %vm4228 = vmor %vm4226, %vm4227
    %v4229 = vsel %vm4228, %v4221, %v4225
    %v4230 = vand.u32 2147483647, %v4129
    %vm4231 = vcmp.eq.f32.partialorder %v4230, 8.507059e+37
    %v4232 = vand.u32 %v4129, 2147483648
    %v4233 = vor.u32 1.1754944e-38, %v4232
    %v4234 = vsel %vm4231, %v4233, %v4229
    %v4235 = vmul.f32 1.0, %v4234
    %v4236 = vrcp.pop %v4130
    %v4237 = vmul.f32 %v4130, %v4236
    %v4238 = vsub.f32 1.0, %v4237
    %v4239 = vmul.f32 %v4236, %v4238
    %v4240 = vadd.f32 %v4236, %v4239
    %vm4241 = vweird.f32 %v4130
    %vm4242 = vweird.f32 %v4236
    %vm4243 = vmor %vm4241, %vm4242
    %v4244 = vsel %vm4243, %v4236, %v4240
    %v4245 = vand.u32 2147483647, %v4130
    %vm4246 = vcmp.eq.f32.partialorder %v4245, 8.507059e+37
    %v4247 = vand.u32 %v4130, 2147483648
    %v4248 = vor.u32 1.1754944e-38, %v4247
    %v4249 = vsel %vm4246, %v4248, %v4244
    %v4250 = vmul.f32 1.0, %v4249
    %v4251 = vld [vmem:[#allocation9] sm:$0x8]
    %v4252 = vld [vmem:[#allocation9 + $0x4] sm:$0x8]
    %v4253 = vld [vmem:[#allocation9 + $0x8] sm:$0x8]
    %v4254 = vld [vmem:[#allocation9 + $0xc] sm:$0x8]
    %v4255 = vld [vmem:[#allocation9 + $0x10] sm:$0x8]
    %v4256 = vld [vmem:[#allocation9 + $0x14] sm:$0x8]
    %v4257 = vld [vmem:[#allocation9 + $0x18] sm:$0x8]
    %v4258 = vld [vmem:[#allocation9 + $0x1c] sm:$0x8]
    %v4259 = vunpack.c.l.bf16 %v4251
    %v4260 = vunpack.c.l.bf16 %v4252
    %v4261 = vunpack.c.l.bf16 %v4253
    %v4262 = vunpack.c.l.bf16 %v4254
    %v4263 = vunpack.c.l.bf16 %v4255
    %v4264 = vunpack.c.l.bf16 %v4256
    %v4265 = vunpack.c.l.bf16 %v4257
    %v4266 = vunpack.c.l.bf16 %v4258
    %4267 = vmatpush.bf16.msra.mxu0 0
    %4268 = vmatpush.bf16.msra.mxu0 0
    %4269 = vmatpush.bf16.msra.mxu0 0
    %4270 = vmatpush.bf16.msra.mxu0 0
    %4271 = vmatpush.bf16.msra.mxu0 0
    %4272 = vmatpush.bf16.msra.mxu0 0
    %4273 = vmatpush.bf16.msra.mxu0 %v629
    %4274 = vmatpush.bf16.msra.mxu0 %v628
    %4275 = vmatmul.bf16.gmra.mxu0 %v3839
    %v4276 = vpop.f32.mrf.mxu0
    %v4277 = vadd.f32 %v618, %v4276
    %v4278 = vpop.f32.mrf.mxu0
    %4279 = vdwg.mxu0
    %v4281 = vrot.slane %v4277, 2
    %v4282 = vrot.slane %v4277, 3
    %v4283 = vrot.slane %v4277, 4
    %v4284 = vrot.slane %v4277, 5
    %v4285 = vrot.slane %v4277, 6
    %v4286 = vrot.slane %v4277, 7
    %v4287 = vrot.slane %v4277, 1
    %v4296 = vmul.f32 %v3953, %v4281
    %v4297 = vmul.f32 %v3968, %v4282
    %v4298 = vmul.f32 %v3983, %v4283
    %v4299 = vmul.f32 %v3998, %v4284
    %v4300 = vmul.f32 %v4013, %v4285
    %v4301 = vmul.f32 %v4028, %v4286
    %v4302 = vmul.f32 %v4043, %v4277
    %v4303 = vmul.f32 %v4058, %v4287
    %v4304 = vadd.f32 %v4259, %v4296
    %v4305 = vadd.f32 %v4260, %v4297
    %v4306 = vadd.f32 %v4261, %v4298
    %v4307 = vadd.f32 %v4262, %v4299
    %v4308 = vadd.f32 %v4263, %v4300
    %v4309 = vadd.f32 %v4264, %v4301
    %v4310 = vadd.f32 %v4265, %v4302
    %v4311 = vadd.f32 %v4266, %v4303
    %v4312 = vtanh.pop %v4304
    %v4313 = vtanh.pop %v4305
    %v4314 = vtanh.pop %v4306
    %v4315 = vtanh.pop %v4307
    %v4316 = vtanh.pop %v4308
    %v4317 = vtanh.pop %v4309
    %v4318 = vtanh.pop %v4310
    %v4319 = vtanh.pop %v4311
    %v4328 = vrot.slane %v4312, 6
    %v4329 = vrot.slane %v4313, 5
    %v4330 = vsel %vm694, %v4329, %v4328
    %v4331 = vrot.slane %v4314, 4
    %v4332 = vsel %vm697, %v4331, %v4330
    %v4333 = vrot.slane %v4315, 3
    %v4334 = vsel %vm700, %v4333, %v4332
    %v4335 = vrot.slane %v4316, 2
    %v4336 = vsel %vm703, %v4335, %v4334
    %v4337 = vrot.slane %v4317, 1
    %v4338 = vsel %vm706, %v4337, %v4336
    %v4339 = vsel %vm709, %v4318, %v4338
    %v4340 = vrot.slane %v4319, 7
    %v4341 = vsel %vm712, %v4340, %v4339
    %v4343 = vsub.f32 %v3812, %v4341
    %v4345 = vrot.slane %v4343, 2
    %v4346 = vrot.slane %v4343, 3
    %v4347 = vrot.slane %v4343, 4
    %v4348 = vrot.slane %v4343, 5
    %v4349 = vrot.slane %v4343, 6
    %v4350 = vrot.slane %v4343, 7
    %v4351 = vrot.slane %v4343, 1
    %v4360 = vmul.f32 %v4145, %v4345
    %v4361 = vmul.f32 %v4160, %v4346
    %v4362 = vmul.f32 %v4175, %v4347
    %v4363 = vmul.f32 %v4190, %v4348
    %v4364 = vmul.f32 %v4205, %v4349
    %v4365 = vmul.f32 %v4220, %v4350
    %v4366 = vmul.f32 %v4235, %v4343
    %v4367 = vmul.f32 %v4250, %v4351
    %v4368 = vadd.f32 %v4312, %v4360
    %v4369 = vadd.f32 %v4313, %v4361
    %v4370 = vadd.f32 %v4314, %v4362
    %v4371 = vadd.f32 %v4315, %v4363
    %v4372 = vadd.f32 %v4316, %v4364
    %v4373 = vadd.f32 %v4317, %v4365
    %v4374 = vadd.f32 %v4318, %v4366
    %v4375 = vadd.f32 %v4319, %v4367
    %v4377 = vsub.f32 %v4368, %v3815
    %v4378 = vsub.f32 %v4369, %v3816
    %v4379 = vsub.f32 %v4370, %v3817
    %v4380 = vsub.f32 %v4371, %v3818
    %v4381 = vsub.f32 %v4372, %v3819
    %v4382 = vsub.f32 %v4373, %v3820
    %v4383 = vsub.f32 %v4374, %v3812
    %v4384 = vsub.f32 %v4375, %v3814
    %4386 = vset.pattern.permute.xlu0 6
    %4387 = vperm.xlu0 %4386, %v3836
    %v4388 = vpop.permute.xlu0 %4387
    %v4398 = vrot.slane %v4377, 6
    %v4399 = vrot.slane %v4378, 5
    %v4400 = vsel %vm694, %v4399, %v4398
    %v4401 = vrot.slane %v4379, 4
    %v4402 = vsel %vm697, %v4401, %v4400
    %v4403 = vrot.slane %v4380, 3
    %v4404 = vsel %vm700, %v4403, %v4402
    %v4405 = vrot.slane %v4381, 2
    %v4406 = vsel %vm703, %v4405, %v4404
    %v4407 = vrot.slane %v4382, 1
    %v4408 = vsel %vm706, %v4407, %v4406
    %v4409 = vsel %vm709, %v4383, %v4408
    %v4410 = vrot.slane %v4384, 7
    %v4411 = vsel %vm712, %v4410, %v4409
    %v4413 = vmul.f32 %v4388, %v4411
    %v4414 = vadd.f32 %v3812, %v4413
    %v4416 = vrot.slane %v4414, 1
    %v4417 = vrot.slane %v4414, 2
    %v4418 = vrot.slane %v4414, 3
    %v4419 = vrot.slane %v4414, 4
    %v4420 = vrot.slane %v4414, 5
    %v4421 = vrot.slane %v4414, 6
    %v4422 = vrot.slane %v4414, 7
    %4430 = vst.msk [vmem:[#allocation15 + $0x6] sm:$0x1] %vm817, %v4414
    %4431 = vst.msk [vmem:[#allocation15 + $0xe] sm:$0x1] %vm817, %v4416
    %4432 = vst.msk [vmem:[#allocation15 + $0x16] sm:$0x1] %vm817, %v4417
    %4433 = vst.msk [vmem:[#allocation15 + $0x1e] sm:$0x1] %vm817, %v4418
    %4434 = vst.msk [vmem:[#allocation15 + $0x26] sm:$0x1] %vm817, %v4419
    %4435 = vst.msk [vmem:[#allocation15 + $0x2e] sm:$0x1] %vm817, %v4420
    %4436 = vst.msk [vmem:[#allocation15 + $0x36] sm:$0x1] %vm817, %v4421
    %4437 = vst.msk [vmem:[#allocation15 + $0x3e] sm:$0x1] %vm817, %v4422
    %v4438 = vld [vmem:[#allocation3] sm:$0xff]
    %v4439 = vpack.c.bf16 %v4414, %v4414
    %v4441 = vsel %vm175, %v4439, 0
    %4443 = vmatpush.bf16.msra.mxu0 0
    %4444 = vmatpush.bf16.msra.mxu0 0
    %4445 = vmatpush.bf16.msra.mxu0 0
    %4446 = vmatpush.bf16.msra.mxu0 0
    %4447 = vmatpush.bf16.msra.mxu0 0
    %4448 = vmatpush.bf16.msra.mxu0 0
    %4449 = vmatpush.bf16.msra.mxu0 %v172
    %4450 = vmatpush.bf16.msra.mxu0 %v171
    %4451 = vmatmul.bf16.gmra.mxu0 %v4441
    %v4452 = vpop.f32.mrf.mxu0
    %v4453 = vadd.f32 0.0, %v4452
    %v4454 = vpop.f32.mrf.mxu0
    %4455 = vdwg.mxu0
    %4456 = vmatpush.bf16.msra.mxu0 0
    %4457 = vmatpush.bf16.msra.mxu0 0
    %4458 = vmatpush.bf16.msra.mxu0 0
    %4459 = vmatpush.bf16.msra.mxu0 0
    %4460 = vmatpush.bf16.msra.mxu0 0
    %4461 = vmatpush.bf16.msra.mxu0 0
    %4462 = vmatpush.bf16.msra.mxu0 %v201
    %4463 = vmatpush.bf16.msra.mxu0 %v200
    %4464 = vmatmul.bf16.gmra.mxu0 %v4441
    %v4465 = vpop.f32.mrf.mxu0
    %v4466 = vadd.f32 0.0, %v4465
    %v4467 = vpop.f32.mrf.mxu0
    %4468 = vdwg.mxu0
    %v4469 = vld [vmem:[#allocation6] sm:$0x8]
    %v4470 = vld [vmem:[#allocation6 + $0x4] sm:$0x8]
    %v4471 = vld [vmem:[#allocation6 + $0x8] sm:$0x8]
    %v4472 = vld [vmem:[#allocation6 + $0xc] sm:$0x8]
    %v4473 = vld [vmem:[#allocation6 + $0x10] sm:$0x8]
    %v4474 = vld [vmem:[#allocation6 + $0x14] sm:$0x8]
    %v4475 = vld [vmem:[#allocation6 + $0x18] sm:$0x8]
    %v4476 = vld [vmem:[#allocation6 + $0x1c] sm:$0x8]
    %v4477 = vunpack.c.l.bf16 %v4469
    %v4478 = vunpack.c.l.bf16 %v4470
    %v4479 = vunpack.c.l.bf16 %v4471
    %v4480 = vunpack.c.l.bf16 %v4472
    %v4481 = vunpack.c.l.bf16 %v4473
    %v4482 = vunpack.c.l.bf16 %v4474
    %v4483 = vunpack.c.l.bf16 %v4475
    %v4484 = vunpack.c.l.bf16 %v4476
    %v4486 = vrot.slane %v4453, 1
    %v4487 = vrot.slane %v4453, 2
    %v4488 = vrot.slane %v4453, 3
    %v4489 = vrot.slane %v4453, 4
    %v4490 = vrot.slane %v4453, 5
    %v4491 = vrot.slane %v4453, 6
    %v4492 = vrot.slane %v4453, 7
    %v4501 = vadd.f32 %v4477, %v4486
    %v4502 = vadd.f32 %v4478, %v4487
    %v4503 = vadd.f32 %v4479, %v4488
    %v4504 = vadd.f32 %v4480, %v4489
    %v4505 = vadd.f32 %v4481, %v4490
    %v4506 = vadd.f32 %v4482, %v4491
    %v4507 = vadd.f32 %v4483, %v4492
    %v4508 = vadd.f32 %v4484, %v4453
    %v4509 = vxor.u32 %v4501, 2147483648
    %v4510 = vxor.u32 %v4502, 2147483648
    %v4511 = vxor.u32 %v4503, 2147483648
    %v4512 = vxor.u32 %v4504, 2147483648
    %v4513 = vxor.u32 %v4505, 2147483648
    %v4514 = vxor.u32 %v4506, 2147483648
    %v4515 = vxor.u32 %v4507, 2147483648
    %v4516 = vxor.u32 %v4508, 2147483648
    %v4517 = vmul.f32 %v4509, 1.442695
    %v4518 = vpow.pop %v4517
    %v4519 = vmul.f32 %v4510, 1.442695
    %v4520 = vpow.pop %v4519
    %v4521 = vmul.f32 %v4511, 1.442695
    %v4522 = vpow.pop %v4521
    %v4523 = vmul.f32 %v4512, 1.442695
    %v4524 = vpow.pop %v4523
    %v4525 = vmul.f32 %v4513, 1.442695
    %v4526 = vpow.pop %v4525
    %v4527 = vmul.f32 %v4514, 1.442695
    %v4528 = vpow.pop %v4527
    %v4529 = vmul.f32 %v4515, 1.442695
    %v4530 = vpow.pop %v4529
    %v4531 = vmul.f32 %v4516, 1.442695
    %v4532 = vpow.pop %v4531
    %v4533 = vadd.f32 %v4518, 1.0
    %v4534 = vadd.f32 %v4520, 1.0
    %v4535 = vadd.f32 %v4522, 1.0
    %v4536 = vadd.f32 %v4524, 1.0
    %v4537 = vadd.f32 %v4526, 1.0
    %v4538 = vadd.f32 %v4528, 1.0
    %v4539 = vadd.f32 %v4530, 1.0
    %v4540 = vadd.f32 %v4532, 1.0
    %v4541 = vrcp.pop %v4533
    %v4542 = vmul.f32 %v4533, %v4541
    %v4543 = vsub.f32 1.0, %v4542
    %v4544 = vmul.f32 %v4541, %v4543
    %v4545 = vadd.f32 %v4541, %v4544
    %vm4546 = vweird.f32 %v4533
    %vm4547 = vweird.f32 %v4541
    %vm4548 = vmor %vm4546, %vm4547
    %v4549 = vsel %vm4548, %v4541, %v4545
    %v4550 = vand.u32 2147483647, %v4533
    %vm4551 = vcmp.eq.f32.partialorder %v4550, 8.507059e+37
    %v4552 = vand.u32 %v4533, 2147483648
    %v4553 = vor.u32 1.1754944e-38, %v4552
    %v4554 = vsel %vm4551, %v4553, %v4549
    %v4555 = vmul.f32 1.0, %v4554
    %v4556 = vrcp.pop %v4534
    %v4557 = vmul.f32 %v4534, %v4556
    %v4558 = vsub.f32 1.0, %v4557
    %v4559 = vmul.f32 %v4556, %v4558
    %v4560 = vadd.f32 %v4556, %v4559
    %vm4561 = vweird.f32 %v4534
    %vm4562 = vweird.f32 %v4556
    %vm4563 = vmor %vm4561, %vm4562
    %v4564 = vsel %vm4563, %v4556, %v4560
    %v4565 = vand.u32 2147483647, %v4534
    %vm4566 = vcmp.eq.f32.partialorder %v4565, 8.507059e+37
    %v4567 = vand.u32 %v4534, 2147483648
    %v4568 = vor.u32 1.1754944e-38, %v4567
    %v4569 = vsel %vm4566, %v4568, %v4564
    %v4570 = vmul.f32 1.0, %v4569
    %v4571 = vrcp.pop %v4535
    %v4572 = vmul.f32 %v4535, %v4571
    %v4573 = vsub.f32 1.0, %v4572
    %v4574 = vmul.f32 %v4571, %v4573
    %v4575 = vadd.f32 %v4571, %v4574
    %vm4576 = vweird.f32 %v4535
    %vm4577 = vweird.f32 %v4571
    %vm4578 = vmor %vm4576, %vm4577
    %v4579 = vsel %vm4578, %v4571, %v4575
    %v4580 = vand.u32 2147483647, %v4535
    %vm4581 = vcmp.eq.f32.partialorder %v4580, 8.507059e+37
    %v4582 = vand.u32 %v4535, 2147483648
    %v4583 = vor.u32 1.1754944e-38, %v4582
    %v4584 = vsel %vm4581, %v4583, %v4579
    %v4585 = vmul.f32 1.0, %v4584
    %v4586 = vrcp.pop %v4536
    %v4587 = vmul.f32 %v4536, %v4586
    %v4588 = vsub.f32 1.0, %v4587
    %v4589 = vmul.f32 %v4586, %v4588
    %v4590 = vadd.f32 %v4586, %v4589
    %vm4591 = vweird.f32 %v4536
    %vm4592 = vweird.f32 %v4586
    %vm4593 = vmor %vm4591, %vm4592
    %v4594 = vsel %vm4593, %v4586, %v4590
    %v4595 = vand.u32 2147483647, %v4536
    %vm4596 = vcmp.eq.f32.partialorder %v4595, 8.507059e+37
    %v4597 = vand.u32 %v4536, 2147483648
    %v4598 = vor.u32 1.1754944e-38, %v4597
    %v4599 = vsel %vm4596, %v4598, %v4594
    %v4600 = vmul.f32 1.0, %v4599
    %v4601 = vrcp.pop %v4537
    %v4602 = vmul.f32 %v4537, %v4601
    %v4603 = vsub.f32 1.0, %v4602
    %v4604 = vmul.f32 %v4601, %v4603
    %v4605 = vadd.f32 %v4601, %v4604
    %vm4606 = vweird.f32 %v4537
    %vm4607 = vweird.f32 %v4601
    %vm4608 = vmor %vm4606, %vm4607
    %v4609 = vsel %vm4608, %v4601, %v4605
    %v4610 = vand.u32 2147483647, %v4537
    %vm4611 = vcmp.eq.f32.partialorder %v4610, 8.507059e+37
    %v4612 = vand.u32 %v4537, 2147483648
    %v4613 = vor.u32 1.1754944e-38, %v4612
    %v4614 = vsel %vm4611, %v4613, %v4609
    %v4615 = vmul.f32 1.0, %v4614
    %v4616 = vrcp.pop %v4538
    %v4617 = vmul.f32 %v4538, %v4616
    %v4618 = vsub.f32 1.0, %v4617
    %v4619 = vmul.f32 %v4616, %v4618
    %v4620 = vadd.f32 %v4616, %v4619
    %vm4621 = vweird.f32 %v4538
    %vm4622 = vweird.f32 %v4616
    %vm4623 = vmor %vm4621, %vm4622
    %v4624 = vsel %vm4623, %v4616, %v4620
    %v4625 = vand.u32 2147483647, %v4538
    %vm4626 = vcmp.eq.f32.partialorder %v4625, 8.507059e+37
    %v4627 = vand.u32 %v4538, 2147483648
    %v4628 = vor.u32 1.1754944e-38, %v4627
    %v4629 = vsel %vm4626, %v4628, %v4624
    %v4630 = vmul.f32 1.0, %v4629
    %v4631 = vrcp.pop %v4539
    %v4632 = vmul.f32 %v4539, %v4631
    %v4633 = vsub.f32 1.0, %v4632
    %v4634 = vmul.f32 %v4631, %v4633
    %v4635 = vadd.f32 %v4631, %v4634
    %vm4636 = vweird.f32 %v4539
    %vm4637 = vweird.f32 %v4631
    %vm4638 = vmor %vm4636, %vm4637
    %v4639 = vsel %vm4638, %v4631, %v4635
    %v4640 = vand.u32 2147483647, %v4539
    %vm4641 = vcmp.eq.f32.partialorder %v4640, 8.507059e+37
    %v4642 = vand.u32 %v4539, 2147483648
    %v4643 = vor.u32 1.1754944e-38, %v4642
    %v4644 = vsel %vm4641, %v4643, %v4639
    %v4645 = vmul.f32 1.0, %v4644
    %v4646 = vrcp.pop %v4540
    %v4647 = vmul.f32 %v4540, %v4646
    %v4648 = vsub.f32 1.0, %v4647
    %v4649 = vmul.f32 %v4646, %v4648
    %v4650 = vadd.f32 %v4646, %v4649
    %vm4651 = vweird.f32 %v4540
    %vm4652 = vweird.f32 %v4646
    %vm4653 = vmor %vm4651, %vm4652
    %v4654 = vsel %vm4653, %v4646, %v4650
    %v4655 = vand.u32 2147483647, %v4540
    %vm4656 = vcmp.eq.f32.partialorder %v4655, 8.507059e+37
    %v4657 = vand.u32 %v4540, 2147483648
    %v4658 = vor.u32 1.1754944e-38, %v4657
    %v4659 = vsel %vm4656, %v4658, %v4654
    %v4660 = vmul.f32 1.0, %v4659
    %v4661 = vld [vmem:[#allocation8] sm:$0x8]
    %v4662 = vld [vmem:[#allocation8 + $0x4] sm:$0x8]
    %v4663 = vld [vmem:[#allocation8 + $0x8] sm:$0x8]
    %v4664 = vld [vmem:[#allocation8 + $0xc] sm:$0x8]
    %v4665 = vld [vmem:[#allocation8 + $0x10] sm:$0x8]
    %v4666 = vld [vmem:[#allocation8 + $0x14] sm:$0x8]
    %v4667 = vld [vmem:[#allocation8 + $0x18] sm:$0x8]
    %v4668 = vld [vmem:[#allocation8 + $0x1c] sm:$0x8]
    %v4669 = vunpack.c.l.bf16 %v4661
    %v4670 = vunpack.c.l.bf16 %v4662
    %v4671 = vunpack.c.l.bf16 %v4663
    %v4672 = vunpack.c.l.bf16 %v4664
    %v4673 = vunpack.c.l.bf16 %v4665
    %v4674 = vunpack.c.l.bf16 %v4666
    %v4675 = vunpack.c.l.bf16 %v4667
    %v4676 = vunpack.c.l.bf16 %v4668
    %v4678 = vrot.slane %v4466, 1
    %v4679 = vrot.slane %v4466, 2
    %v4680 = vrot.slane %v4466, 3
    %v4681 = vrot.slane %v4466, 4
    %v4682 = vrot.slane %v4466, 5
    %v4683 = vrot.slane %v4466, 6
    %v4684 = vrot.slane %v4466, 7
    %v4693 = vadd.f32 %v4669, %v4678
    %v4694 = vadd.f32 %v4670, %v4679
    %v4695 = vadd.f32 %v4671, %v4680
    %v4696 = vadd.f32 %v4672, %v4681
    %v4697 = vadd.f32 %v4673, %v4682
    %v4698 = vadd.f32 %v4674, %v4683
    %v4699 = vadd.f32 %v4675, %v4684
    %v4700 = vadd.f32 %v4676, %v4466
    %v4701 = vxor.u32 %v4693, 2147483648
    %v4702 = vxor.u32 %v4694, 2147483648
    %v4703 = vxor.u32 %v4695, 2147483648
    %v4704 = vxor.u32 %v4696, 2147483648
    %v4705 = vxor.u32 %v4697, 2147483648
    %v4706 = vxor.u32 %v4698, 2147483648
    %v4707 = vxor.u32 %v4699, 2147483648
    %v4708 = vxor.u32 %v4700, 2147483648
    %v4709 = vmul.f32 %v4701, 1.442695
    %v4710 = vpow.pop %v4709
    %v4711 = vmul.f32 %v4702, 1.442695
    %v4712 = vpow.pop %v4711
    %v4713 = vmul.f32 %v4703, 1.442695
    %v4714 = vpow.pop %v4713
    %v4715 = vmul.f32 %v4704, 1.442695
    %v4716 = vpow.pop %v4715
    %v4717 = vmul.f32 %v4705, 1.442695
    %v4718 = vpow.pop %v4717
    %v4719 = vmul.f32 %v4706, 1.442695
    %v4720 = vpow.pop %v4719
    %v4721 = vmul.f32 %v4707, 1.442695
    %v4722 = vpow.pop %v4721
    %v4723 = vmul.f32 %v4708, 1.442695
    %v4724 = vpow.pop %v4723
    %v4725 = vadd.f32 %v4710, 1.0
    %v4726 = vadd.f32 %v4712, 1.0
    %v4727 = vadd.f32 %v4714, 1.0
    %v4728 = vadd.f32 %v4716, 1.0
    %v4729 = vadd.f32 %v4718, 1.0
    %v4730 = vadd.f32 %v4720, 1.0
    %v4731 = vadd.f32 %v4722, 1.0
    %v4732 = vadd.f32 %v4724, 1.0
    %v4733 = vrcp.pop %v4725
    %v4734 = vmul.f32 %v4725, %v4733
    %v4735 = vsub.f32 1.0, %v4734
    %v4736 = vmul.f32 %v4733, %v4735
    %v4737 = vadd.f32 %v4733, %v4736
    %vm4738 = vweird.f32 %v4725
    %vm4739 = vweird.f32 %v4733
    %vm4740 = vmor %vm4738, %vm4739
    %v4741 = vsel %vm4740, %v4733, %v4737
    %v4742 = vand.u32 2147483647, %v4725
    %vm4743 = vcmp.eq.f32.partialorder %v4742, 8.507059e+37
    %v4744 = vand.u32 %v4725, 2147483648
    %v4745 = vor.u32 1.1754944e-38, %v4744
    %v4746 = vsel %vm4743, %v4745, %v4741
    %v4747 = vmul.f32 1.0, %v4746
    %v4748 = vrcp.pop %v4726
    %v4749 = vmul.f32 %v4726, %v4748
    %v4750 = vsub.f32 1.0, %v4749
    %v4751 = vmul.f32 %v4748, %v4750
    %v4752 = vadd.f32 %v4748, %v4751
    %vm4753 = vweird.f32 %v4726
    %vm4754 = vweird.f32 %v4748
    %vm4755 = vmor %vm4753, %vm4754
    %v4756 = vsel %vm4755, %v4748, %v4752
    %v4757 = vand.u32 2147483647, %v4726
    %vm4758 = vcmp.eq.f32.partialorder %v4757, 8.507059e+37
    %v4759 = vand.u32 %v4726, 2147483648
    %v4760 = vor.u32 1.1754944e-38, %v4759
    %v4761 = vsel %vm4758, %v4760, %v4756
    %v4762 = vmul.f32 1.0, %v4761
    %v4763 = vrcp.pop %v4727
    %v4764 = vmul.f32 %v4727, %v4763
    %v4765 = vsub.f32 1.0, %v4764
    %v4766 = vmul.f32 %v4763, %v4765
    %v4767 = vadd.f32 %v4763, %v4766
    %vm4768 = vweird.f32 %v4727
    %vm4769 = vweird.f32 %v4763
    %vm4770 = vmor %vm4768, %vm4769
    %v4771 = vsel %vm4770, %v4763, %v4767
    %v4772 = vand.u32 2147483647, %v4727
    %vm4773 = vcmp.eq.f32.partialorder %v4772, 8.507059e+37
    %v4774 = vand.u32 %v4727, 2147483648
    %v4775 = vor.u32 1.1754944e-38, %v4774
    %v4776 = vsel %vm4773, %v4775, %v4771
    %v4777 = vmul.f32 1.0, %v4776
    %v4778 = vrcp.pop %v4728
    %v4779 = vmul.f32 %v4728, %v4778
    %v4780 = vsub.f32 1.0, %v4779
    %v4781 = vmul.f32 %v4778, %v4780
    %v4782 = vadd.f32 %v4778, %v4781
    %vm4783 = vweird.f32 %v4728
    %vm4784 = vweird.f32 %v4778
    %vm4785 = vmor %vm4783, %vm4784
    %v4786 = vsel %vm4785, %v4778, %v4782
    %v4787 = vand.u32 2147483647, %v4728
    %vm4788 = vcmp.eq.f32.partialorder %v4787, 8.507059e+37
    %v4789 = vand.u32 %v4728, 2147483648
    %v4790 = vor.u32 1.1754944e-38, %v4789
    %v4791 = vsel %vm4788, %v4790, %v4786
    %v4792 = vmul.f32 1.0, %v4791
    %v4793 = vrcp.pop %v4729
    %v4794 = vmul.f32 %v4729, %v4793
    %v4795 = vsub.f32 1.0, %v4794
    %v4796 = vmul.f32 %v4793, %v4795
    %v4797 = vadd.f32 %v4793, %v4796
    %vm4798 = vweird.f32 %v4729
    %vm4799 = vweird.f32 %v4793
    %vm4800 = vmor %vm4798, %vm4799
    %v4801 = vsel %vm4800, %v4793, %v4797
    %v4802 = vand.u32 2147483647, %v4729
    %vm4803 = vcmp.eq.f32.partialorder %v4802, 8.507059e+37
    %v4804 = vand.u32 %v4729, 2147483648
    %v4805 = vor.u32 1.1754944e-38, %v4804
    %v4806 = vsel %vm4803, %v4805, %v4801
    %v4807 = vmul.f32 1.0, %v4806
    %v4808 = vrcp.pop %v4730
    %v4809 = vmul.f32 %v4730, %v4808
    %v4810 = vsub.f32 1.0, %v4809
    %v4811 = vmul.f32 %v4808, %v4810
    %v4812 = vadd.f32 %v4808, %v4811
    %vm4813 = vweird.f32 %v4730
    %vm4814 = vweird.f32 %v4808
    %vm4815 = vmor %vm4813, %vm4814
    %v4816 = vsel %vm4815, %v4808, %v4812
    %v4817 = vand.u32 2147483647, %v4730
    %vm4818 = vcmp.eq.f32.partialorder %v4817, 8.507059e+37
    %v4819 = vand.u32 %v4730, 2147483648
    %v4820 = vor.u32 1.1754944e-38, %v4819
    %v4821 = vsel %vm4818, %v4820, %v4816
    %v4822 = vmul.f32 1.0, %v4821
    %v4823 = vrcp.pop %v4731
    %v4824 = vmul.f32 %v4731, %v4823
    %v4825 = vsub.f32 1.0, %v4824
    %v4826 = vmul.f32 %v4823, %v4825
    %v4827 = vadd.f32 %v4823, %v4826
    %vm4828 = vweird.f32 %v4731
    %vm4829 = vweird.f32 %v4823
    %vm4830 = vmor %vm4828, %vm4829
    %v4831 = vsel %vm4830, %v4823, %v4827
    %v4832 = vand.u32 2147483647, %v4731
    %vm4833 = vcmp.eq.f32.partialorder %v4832, 8.507059e+37
    %v4834 = vand.u32 %v4731, 2147483648
    %v4835 = vor.u32 1.1754944e-38, %v4834
    %v4836 = vsel %vm4833, %v4835, %v4831
    %v4837 = vmul.f32 1.0, %v4836
    %v4838 = vrcp.pop %v4732
    %v4839 = vmul.f32 %v4732, %v4838
    %v4840 = vsub.f32 1.0, %v4839
    %v4841 = vmul.f32 %v4838, %v4840
    %v4842 = vadd.f32 %v4838, %v4841
    %vm4843 = vweird.f32 %v4732
    %vm4844 = vweird.f32 %v4838
    %vm4845 = vmor %vm4843, %vm4844
    %v4846 = vsel %vm4845, %v4838, %v4842
    %v4847 = vand.u32 2147483647, %v4732
    %vm4848 = vcmp.eq.f32.partialorder %v4847, 8.507059e+37
    %v4849 = vand.u32 %v4732, 2147483648
    %v4850 = vor.u32 1.1754944e-38, %v4849
    %v4851 = vsel %vm4848, %v4850, %v4846
    %v4852 = vmul.f32 1.0, %v4851
    %v4853 = vld [vmem:[#allocation9] sm:$0x8]
    %v4854 = vld [vmem:[#allocation9 + $0x4] sm:$0x8]
    %v4855 = vld [vmem:[#allocation9 + $0x8] sm:$0x8]
    %v4856 = vld [vmem:[#allocation9 + $0xc] sm:$0x8]
    %v4857 = vld [vmem:[#allocation9 + $0x10] sm:$0x8]
    %v4858 = vld [vmem:[#allocation9 + $0x14] sm:$0x8]
    %v4859 = vld [vmem:[#allocation9 + $0x18] sm:$0x8]
    %v4860 = vld [vmem:[#allocation9 + $0x1c] sm:$0x8]
    %v4861 = vunpack.c.l.bf16 %v4853
    %v4862 = vunpack.c.l.bf16 %v4854
    %v4863 = vunpack.c.l.bf16 %v4855
    %v4864 = vunpack.c.l.bf16 %v4856
    %v4865 = vunpack.c.l.bf16 %v4857
    %v4866 = vunpack.c.l.bf16 %v4858
    %v4867 = vunpack.c.l.bf16 %v4859
    %v4868 = vunpack.c.l.bf16 %v4860
    %4869 = vmatpush.bf16.msra.mxu0 0
    %4870 = vmatpush.bf16.msra.mxu0 0
    %4871 = vmatpush.bf16.msra.mxu0 0
    %4872 = vmatpush.bf16.msra.mxu0 0
    %4873 = vmatpush.bf16.msra.mxu0 0
    %4874 = vmatpush.bf16.msra.mxu0 0
    %4875 = vmatpush.bf16.msra.mxu0 %v629
    %4876 = vmatpush.bf16.msra.mxu0 %v628
    %4877 = vmatmul.bf16.gmra.mxu0 %v4441
    %v4878 = vpop.f32.mrf.mxu0
    %v4879 = vadd.f32 %v618, %v4878
    %v4880 = vpop.f32.mrf.mxu0
    %4881 = vdwg.mxu0
    %v4883 = vrot.slane %v4879, 1
    %v4884 = vrot.slane %v4879, 2
    %v4885 = vrot.slane %v4879, 3
    %v4886 = vrot.slane %v4879, 4
    %v4887 = vrot.slane %v4879, 5
    %v4888 = vrot.slane %v4879, 6
    %v4889 = vrot.slane %v4879, 7
    %v4898 = vmul.f32 %v4555, %v4883
    %v4899 = vmul.f32 %v4570, %v4884
    %v4900 = vmul.f32 %v4585, %v4885
    %v4901 = vmul.f32 %v4600, %v4886
    %v4902 = vmul.f32 %v4615, %v4887
    %v4903 = vmul.f32 %v4630, %v4888
    %v4904 = vmul.f32 %v4645, %v4889
    %v4905 = vmul.f32 %v4660, %v4879
    %v4906 = vadd.f32 %v4861, %v4898
    %v4907 = vadd.f32 %v4862, %v4899
    %v4908 = vadd.f32 %v4863, %v4900
    %v4909 = vadd.f32 %v4864, %v4901
    %v4910 = vadd.f32 %v4865, %v4902
    %v4911 = vadd.f32 %v4866, %v4903
    %v4912 = vadd.f32 %v4867, %v4904
    %v4913 = vadd.f32 %v4868, %v4905
    %v4914 = vtanh.pop %v4906
    %v4915 = vtanh.pop %v4907
    %v4916 = vtanh.pop %v4908
    %v4917 = vtanh.pop %v4909
    %v4918 = vtanh.pop %v4910
    %v4919 = vtanh.pop %v4911
    %v4920 = vtanh.pop %v4912
    %v4921 = vtanh.pop %v4913
    %v4930 = vrot.slane %v4914, 7
    %v4931 = vrot.slane %v4915, 6
    %v4932 = vsel %vm694, %v4931, %v4930
    %v4933 = vrot.slane %v4916, 5
    %v4934 = vsel %vm697, %v4933, %v4932
    %v4935 = vrot.slane %v4917, 4
    %v4936 = vsel %vm700, %v4935, %v4934
    %v4937 = vrot.slane %v4918, 3
    %v4938 = vsel %vm703, %v4937, %v4936
    %v4939 = vrot.slane %v4919, 2
    %v4940 = vsel %vm706, %v4939, %v4938
    %v4941 = vrot.slane %v4920, 1
    %v4942 = vsel %vm709, %v4941, %v4940
    %v4943 = vsel %vm712, %v4921, %v4942
    %v4945 = vsub.f32 %v4414, %v4943
    %v4947 = vrot.slane %v4945, 1
    %v4948 = vrot.slane %v4945, 2
    %v4949 = vrot.slane %v4945, 3
    %v4950 = vrot.slane %v4945, 4
    %v4951 = vrot.slane %v4945, 5
    %v4952 = vrot.slane %v4945, 6
    %v4953 = vrot.slane %v4945, 7
    %v4962 = vmul.f32 %v4747, %v4947
    %v4963 = vmul.f32 %v4762, %v4948
    %v4964 = vmul.f32 %v4777, %v4949
    %v4965 = vmul.f32 %v4792, %v4950
    %v4966 = vmul.f32 %v4807, %v4951
    %v4967 = vmul.f32 %v4822, %v4952
    %v4968 = vmul.f32 %v4837, %v4953
    %v4969 = vmul.f32 %v4852, %v4945
    %v4970 = vadd.f32 %v4914, %v4962
    %v4971 = vadd.f32 %v4915, %v4963
    %v4972 = vadd.f32 %v4916, %v4964
    %v4973 = vadd.f32 %v4917, %v4965
    %v4974 = vadd.f32 %v4918, %v4966
    %v4975 = vadd.f32 %v4919, %v4967
    %v4976 = vadd.f32 %v4920, %v4968
    %v4977 = vadd.f32 %v4921, %v4969
    %v4979 = vsub.f32 %v4970, %v4416
    %v4980 = vsub.f32 %v4971, %v4417
    %v4981 = vsub.f32 %v4972, %v4418
    %v4982 = vsub.f32 %v4973, %v4419
    %v4983 = vsub.f32 %v4974, %v4420
    %v4984 = vsub.f32 %v4975, %v4421
    %v4985 = vsub.f32 %v4976, %v4422
    %v4986 = vsub.f32 %v4977, %v4414
    %4988 = vset.pattern.permute.xlu0 7
    %4989 = vperm.xlu0 %4988, %v4438
    %v4990 = vpop.permute.xlu0 %4989
    %v5000 = vrot.slane %v4979, 7
    %v5001 = vrot.slane %v4980, 6
    %v5002 = vsel %vm694, %v5001, %v5000
    %v5003 = vrot.slane %v4981, 5
    %v5004 = vsel %vm697, %v5003, %v5002
    %v5005 = vrot.slane %v4982, 4
    %v5006 = vsel %vm700, %v5005, %v5004
    %v5007 = vrot.slane %v4983, 3
    %v5008 = vsel %vm703, %v5007, %v5006
    %v5009 = vrot.slane %v4984, 2
    %v5010 = vsel %vm706, %v5009, %v5008
    %v5011 = vrot.slane %v4985, 1
    %v5012 = vsel %vm709, %v5011, %v5010
    %v5013 = vsel %vm712, %v4986, %v5012
    %v5015 = vmul.f32 %v4990, %v5013
    %v5016 = vadd.f32 %v4414, %v5015
    %v5018 = vrot.slane %v5016, 1
    %v5019 = vrot.slane %v5016, 2
    %v5020 = vrot.slane %v5016, 3
    %v5021 = vrot.slane %v5016, 4
    %v5022 = vrot.slane %v5016, 5
    %v5023 = vrot.slane %v5016, 6
    %v5024 = vrot.slane %v5016, 7
    %5032 = vst.msk [vmem:[#allocation15 + $0x7] sm:$0x1] %vm817, %v5016
    %5033 = vst.msk [vmem:[#allocation15 + $0xf] sm:$0x1] %vm817, %v5018
    %5034 = vst.msk [vmem:[#allocation15 + $0x17] sm:$0x1] %vm817, %v5019
    %5035 = vst.msk [vmem:[#allocation15 + $0x1f] sm:$0x1] %vm817, %v5020
    %5036 = vst.msk [vmem:[#allocation15 + $0x27] sm:$0x1] %vm817, %v5021
    %5037 = vst.msk [vmem:[#allocation15 + $0x2f] sm:$0x1] %vm817, %v5022
    %5038 = vst.msk [vmem:[#allocation15 + $0x37] sm:$0x1] %vm817, %v5023
    %5039 = vst.msk [vmem:[#allocation15 + $0x3f] sm:$0x1] %vm817, %v5024
    %5040 = vst.msk [vmem:[#allocation2] sm:$0xff] %vm175, %v5016
    %5041 = vst.msk [vmem:[#allocation16] sm:$0xff] %vm175, %v5016
    // Predicated region
    $region66: #{tpu_custom_call.1} parent=1 // pred_check
      _
    $region67: #{tpu_custom_call.1} parent=1 // pred_check_branch
      %5043 = sbr.rel (0) target = $region69
    $region68: #{tpu_custom_call.1} parent=1 // pred_region
      %5045 = vsyncadd [#allocation5], 0
      %s5046 = sshll.u32 [#allocation15], 4
      %s5047 = int_to_ptr.vmem [resolvable:$true] %s5046
      %s5048 = sshll.u32 %s8, 4
      %s5049 = int_to_ptr.hbm [resolvable:$true] %s5048
      %5054 = dma.vmem_to_hbm [thread:$0]  %s5047, 1024, %s5049, [#allocation5], 128, 128, 8
    $region69: #{tpu_custom_call.1} parent=1 // pred_fallthru
      _
    // Predicated region
    $region70: #{tpu_custom_call.1} parent=1 // pred_check
      _
    $region71: #{tpu_custom_call.1} parent=1 // pred_check_branch
      %5056 = sbr.rel (0) target = $region73
    $region72: #{tpu_custom_call.1} parent=1 // pred_region
      %5058 = vsyncadd [#allocation17], 0
      %s5060 = sshll.u32 [#allocation16], 4
      %s5061 = int_to_ptr.vmem [resolvable:$true] %s5060
      %s5062 = sshll.u32 %s9, 4
      %s5063 = int_to_ptr.hbm [resolvable:$true] %s5062
      %5065 = dma.vmem_to_hbm [thread:$0]  %s5061, 128, %s5063, [#allocation17]
    $region73: #{tpu_custom_call.1} parent=1 // pred_fallthru
      _
    // Predicated region
    $region74: #{tpu_custom_call.1} parent=1 // pred_check
      _
    $region75: #{tpu_custom_call.1} parent=1 // pred_check_branch
      %5067 = sbr.rel (0) target = $region77
    $region76: #{tpu_custom_call.1} parent=1 // pred_region
      %5069 = dma.done [#allocation5], 1024
    $region77: #{tpu_custom_call.1} parent=1 // pred_fallthru
      _
    // Predicated region
    $region78: #{tpu_custom_call.1} parent=1 // pred_check
      _
    $region79: #{tpu_custom_call.1} parent=1 // pred_check_branch
      %5071 = sbr.rel (0) target = $region81
    $region80: #{tpu_custom_call.1} parent=1 // pred_region
      %5073 = dma.done [#allocation17], 128
    $region81: #{tpu_custom_call.1} parent=1 // pred_fallthru
      _
    %5074 = vsyncpa [#allocation4], 1
    %5075 = vsyncpa [#allocation7], 1
    %5076 = vsyncpa [#allocation10], 1
    %5077 = vsyncpa [#allocation13], 1
    %5078 = vsyncpa [#allocation5], 1
    %5079 = vsyncpa [#allocation17], 1

</llo_original>
